<compile_context>
chip_gen: v7x
topology: tpu7x:2x2x1
jax: 0.10.0
libtpu: 0.0.40
codegen_flags: <defaults>
</compile_context>

<pallas_src>
import functools
import math

import numpy as np
import jax
import jax.numpy as jnp
from jax.experimental import pallas as pl
from jax.experimental.pallas import tpu as pltpu


# ------------------------------ fused kernel --------------------------------

def fused_forward_kernel(x_ref, att_ref, c0_ref, h0_ref,
                         wcx_ref, wch_ref, wca_ref, bc_ref,
                         wa2a_ref, ba2a_ref, wh2a_ref, bh2a_ref,
                         wd2d_ref, bd2d_ref,
                         wproj_ref, bproj_ref,
                         outc_ref, outh_ref, logp_ref):
    B, A, R = att_ref.shape
    L = c0_ref.shape[0]
    P = wcx_ref.shape[2] // (4 * R)         # num_parallels
    PR = P * R

    x = x_ref[...]
    att = att_ref[...]
    att_flat = att.reshape(B * A, R)

    # All 2L a2a projections of `att` at once (one lane-dense matmul).
    att_v_all = (jnp.dot(att_flat, wa2a_ref[...],
                         preferred_element_type=jnp.float32) + ba2a_ref[...])

    def soft_attention(k, h):
        # lstm_soft_att.forward(att, h) for attention module k.
        att_v = att_v_all[:, k * A:(k + 1) * A].reshape(B, A, A)
        att_h = (jnp.dot(h, wh2a_ref[k], preferred_element_type=jnp.float32)
                 + bh2a_ref[k])                                     # (B, A)
        dot = jnp.tanh(att_v + att_h[:, :, None])                   # (B, A, A)
        score = jnp.sum(dot * wd2d_ref[k], axis=-1) + bd2d_ref[k]   # (B, A)
        score = score - jnp.max(score, axis=-1, keepdims=True)
        e = jnp.exp(score)
        inv = pl.reciprocal(jnp.sum(e, axis=-1, keepdims=True), approx=True)
        wgt = e * inv                                               # softmax
        return jnp.sum(att * wgt[:, :, None], axis=1)               # (B, R)

    top_prev = None
    for i in range(L):
        prev_c = c0_ref[i]                                          # (B, R)
        prev_h = h0_ref[i]
        xt = x if i == 0 else x + top_prev
        att_res = soft_attention(2 * i, prev_h)

        # num_parallels lstm_core_with_att cores, gate-major packed weights:
        # columns [(gate*P + j)*R : +R] = core j, gate in {in,f,o,g}.
        sums = (jnp.dot(xt, wcx_ref[i], preferred_element_type=jnp.float32)
                + jnp.dot(prev_h, wch_ref[i], preferred_element_type=jnp.float32)
                + jnp.dot(att_res, wca_ref[i], preferred_element_type=jnp.float32)
                + bc_ref[i])                                        # (B, 4*P*R)
        sig = jax.nn.sigmoid(sums[:, :3 * PR])                      # lane-dense
        in_g = sig[:, 0 * PR:1 * PR]
        f_g = sig[:, 1 * PR:2 * PR]
        o_g = sig[:, 2 * PR:3 * PR]
        g = jnp.tanh(sums[:, 3 * PR:4 * PR])

        nc_list, nh_list = [], []
        for j in range(P):                                          # tiny, static
            sl = slice(j * R, (j + 1) * R)
            nc = f_g[:, sl] * prev_c + in_g[:, sl] * g[:, sl]
            nh = o_g[:, sl] * jnp.tanh(nc)
            nc_list.append(nc)
            nh_list.append(nh)
        inv_p = 1.0 / P
        next_c = sum(nc_list) * inv_p                               # mean over cores
        next_h = sum(nh_list) * inv_p

        att_res2 = soft_attention(2 * i + 1, next_h)
        top_h = att_res2 + next_h
        # TODO(synk): training-mode F.dropout (RNG) not implemented; dropout=0.

        z = (jnp.dot(top_h, wproj_ref[i], preferred_element_type=jnp.float32)
             + bproj_ref[i])                                        # (B, O)
        m = jnp.max(z, axis=-1, keepdims=True)
        lse = m + jnp.log(jnp.sum(jnp.exp(z - m), axis=-1, keepdims=True))

        outc_ref[i] = next_c
        outh_ref[i] = top_h
        logp_ref[i] = z - lse
        top_prev = top_h


# -------------------------------- wrapper ------------------------------------

def forward(packed, x, att, inputs, *, num_layers, rnn_size, att_size,
            output_size):
    B = x.shape[0]
    c0 = jnp.stack([inputs[2 * i] for i in range(num_layers)], axis=0)
    h0 = jnp.stack([inputs[2 * i + 1] for i in range(num_layers)], axis=0)
    args = (x, att, c0, h0,
            packed["wcx"], packed["wch"], packed["wca"], packed["bc"],
            packed["wa2a"], packed["ba2a"], packed["wh2a"], packed["bh2a"],
            packed["wd2d"], packed["bd2d"],
            packed["wproj"], packed["bproj"])
    vmem = pl.BlockSpec(memory_space=pltpu.MemorySpace.VMEM)
    out_shape = (
        jax.ShapeDtypeStruct((num_layers, B, rnn_size), jnp.float32),
        jax.ShapeDtypeStruct((num_layers, B, rnn_size), jnp.float32),
        jax.ShapeDtypeStruct((num_layers, B, output_size), jnp.float32),
    )
    outc, outh, logp = pl.pallas_call(
        fused_forward_kernel,
        out_shape=out_shape,
        in_specs=[vmem] * len(args),
        out_specs=(vmem, vmem, vmem),
    )(*args)
    outputs, logprobs = [], []
    for i in range(num_layers):
        outputs.append(outc[i])      # next_c
        outputs.append(outh[i])      # top_h
        logprobs.append(logp[i])
    return outputs, logprobs


# --------------------------- parameter building ------------------------------

def _linear_init(key, out_f, in_f):
    kw, kb = jax.random.split(key)
    bound = 1.0 / math.sqrt(in_f)
    w = jax.random.uniform(kw, (out_f, in_f), jnp.float32, -bound, bound)
    b = jax.random.uniform(kb, (out_f,), jnp.float32, -bound, bound)
    return w, b


def init_raw_params(key, *, input_size, rnn_size, att_size, output_size,
                    num_layers, num_parallels):
    assert input_size == rnn_size, "x + outputs[-1] requires input_size == rnn_size"
    n_keys = 3 * num_layers * num_parallels + 3 * 2 * num_layers + num_layers
    keys = iter(jax.random.split(key, n_keys))
    cores = []
    for _ in range(num_layers * num_parallels):
        i2h_w, i2h_b = _linear_init(next(keys), 4 * rnn_size, input_size)
        h2h_w, h2h_b = _linear_init(next(keys), 4 * rnn_size, rnn_size)
        a2h_w, a2h_b = _linear_init(next(keys), 4 * rnn_size, rnn_size)
        cores.append(dict(i2h_w=i2h_w, i2h_b=i2h_b, h2h_w=h2h_w, h2h_b=h2h_b,
                          a2h_w=a2h_w, a2h_b=a2h_b))
    attens = []
    for _ in range(2 * num_layers):
        a2a_w, a2a_b = _linear_init(next(keys), att_size, rnn_size)
        h2a_w, h2a_b = _linear_init(next(keys), att_size, rnn_size)
        d2d_w, d2d_b = _linear_init(next(keys), 1, att_size)
        attens.append(dict(a2a_w=a2a_w, a2a_b=a2a_b, h2a_w=h2a_w, h2a_b=h2a_b,
                           d2d_w=d2d_w, d2d_b=d2d_b))
    projs = []
    for _ in range(num_layers):
        w, b = _linear_init(next(keys), output_size, rnn_size)
        projs.append(dict(w=w, b=b))
    return dict(cores=cores, attens=attens, projs=projs)


def pack_params(raw, *, rnn_size, att_size, output_size, num_layers,
                num_parallels):
    R, A, O, L, P = rnn_size, att_size, output_size, num_layers, num_parallels
    wcx = np.zeros((L, R, 4 * P * R), np.float32)
    wch = np.zeros((L, R, 4 * P * R), np.float32)
    wca = np.zeros((L, R, 4 * P * R), np.float32)
    bc = np.zeros((L, 1, 4 * P * R), np.float32)
    for i in range(L):
        for j in range(P):
            core = raw["cores"][i * P + j]
            wi = np.asarray(core["i2h_w"]).T           # (R, 4R)
            wh = np.asarray(core["h2h_w"]).T
            wa = np.asarray(core["a2h_w"]).T
            bcat = (np.asarray(core["i2h_b"]) + np.asarray(core["h2h_b"])
                    + np.asarray(core["a2h_b"]))        # (4R,)
            for g in range(4):                          # gate-major, core-minor
                col = (g * P + j) * R
                wcx[i, :, col:col + R] = wi[:, g * R:(g + 1) * R]
                wch[i, :, col:col + R] = wh[:, g * R:(g + 1) * R]
                wca[i, :, col:col + R] = wa[:, g * R:(g + 1) * R]
                bc[i, 0, col:col + R] = bcat[g * R:(g + 1) * R]

    wa2a = np.zeros((R, 2 * L * A), np.float32)
    ba2a = np.zeros((1, 2 * L * A), np.float32)
    wh2a = np.zeros((2 * L, R, A), np.float32)
    bh2a = np.zeros((2 * L, 1, A), np.float32)
    wd2d = np.zeros((2 * L, 1, A), np.float32)
    bd2d = np.zeros((2 * L, 1, 1), np.float32)
    for k in range(2 * L):
        a = raw["attens"][k]
        wa2a[:, k * A:(k + 1) * A] = np.asarray(a["a2a_w"]).T
        ba2a[0, k * A:(k + 1) * A] = np.asarray(a["a2a_b"])
        wh2a[k] = np.asarray(a["h2a_w"]).T
        bh2a[k, 0] = np.asarray(a["h2a_b"])
        wd2d[k, 0] = np.asarray(a["d2d_w"])[0]
        bd2d[k, 0, 0] = np.asarray(a["d2d_b"])[0]

    wproj = np.stack([np.asarray(p["w"]).T for p in raw["projs"]], axis=0)
    bproj = np.stack([np.asarray(p["b"])[None, :] for p in raw["projs"]], axis=0)

    j32 = lambda v: jnp.asarray(v, jnp.float32)
    return dict(wcx=j32(wcx), wch=j32(wch), wca=j32(wca), bc=j32(bc),
                wa2a=j32(wa2a), ba2a=j32(ba2a), wh2a=j32(wh2a), bh2a=j32(bh2a),
                wd2d=j32(wd2d), bd2d=j32(bd2d), wproj=j32(wproj), bproj=j32(bproj))


# --------------------------- pure-JAX reference -------------------------------

def reference_forward(raw, x, att, inputs, *, num_layers, num_parallels,
                      rnn_size, att_size):
    R, A = rnn_size, att_size

    def linear(w, b, v):
        return v @ w.T + b

    def soft_att(a, att, h):
        B = att.shape[0]
        v = linear(a["a2a_w"], a["a2a_b"], att.reshape(-1, R)).reshape(B, A, A)
        ah = linear(a["h2a_w"], a["h2a_b"], h)
        d = jnp.tanh(v + ah[:, :, None])
        d = linear(a["d2d_w"], a["d2d_b"], d.reshape(-1, A)).reshape(B, A)
        w = jax.nn.softmax(d, axis=-1)
        return jnp.einsum("bar,ba->br", att, w)

    outputs, logprobs = [], []
    for i in range(num_layers):
        prev_c, prev_h = inputs[2 * i], inputs[2 * i + 1]
        xt = x if i == 0 else x + outputs[-1]
        att_res = soft_att(raw["attens"][2 * i], att, prev_h)
        ncs, nhs = [], []
        for j in range(num_parallels):
            core = raw["cores"][i * num_parallels + j]
            s = (linear(core["i2h_w"], core["i2h_b"], xt)
                 + linear(core["h2h_w"], core["h2h_b"], prev_h)
                 + linear(core["a2h_w"], core["a2h_b"], att_res))
            sig = jax.nn.sigmoid(s[:, :3 * R])
            in_g, f_g, o_g = sig[:, :R], sig[:, R:2 * R], sig[:, 2 * R:3 * R]
            g = jnp.tanh(s[:, 3 * R:])
            nc = f_g * prev_c + in_g * g
            ncs.append(nc)
            nhs.append(o_g * jnp.tanh(nc))
        next_c = jnp.mean(jnp.stack(ncs, axis=1), axis=1)
        next_h = jnp.mean(jnp.stack(nhs, axis=1), axis=1)
        att_res2 = soft_att(raw["attens"][2 * i + 1], att, next_h)
        top_h = att_res2 + next_h
        outputs.append(next_c)
        outputs.append(top_h)
        z = linear(raw["projs"][i]["w"], raw["projs"][i]["b"], top_h)
        logprobs.append(jax.nn.log_softmax(z, axis=-1))
    return outputs, logprobs


# ----------------------------------- main -------------------------------------

if __name__ == "__main__":
    B = 2
    input_size = rnn_size = 32
    att_size = 8
    output_size = 16
    num_layers = 3
    num_parallels = 2
    dropout = 0.0   # TODO(synk): training-mode dropout RNG not modeled.

    key = jax.random.PRNGKey(0)
    kp, kx, ka, ki = jax.random.split(key, 4)
    raw = init_raw_params(kp, input_size=input_size, rnn_size=rnn_size,
                          att_size=att_size, output_size=output_size,
                          num_layers=num_layers, num_parallels=num_parallels)
    packed = pack_params(raw, rnn_size=rnn_size, att_size=att_size,
                         output_size=output_size, num_layers=num_layers,
                         num_parallels=num_parallels)

    x = jax.random.normal(kx, (B, rnn_size), jnp.float32)
    att = jax.random.normal(ka, (B, att_size, rnn_size), jnp.float32)
    inputs = tuple(
        jax.random.normal(jax.random.fold_in(ki, j), (B, rnn_size), jnp.float32)
        for j in range(2 * num_layers))

    fwd = jax.jit(functools.partial(
        forward, num_layers=num_layers, rnn_size=rnn_size,
        att_size=att_size, output_size=output_size))

    outputs, logprobs = fwd(packed, x, att, inputs)
    jax.block_until_ready(logprobs)
    jax.block_until_ready(outputs)

    # Validate against a pure-JAX reference (relaxed tol: approx-recip softmax).
    ref_out, ref_lp = reference_forward(
        raw, x, att, inputs, num_layers=num_layers,
        num_parallels=num_parallels, rnn_size=rnn_size, att_size=att_size)
    for got, want in zip(outputs, ref_out):
        np.testing.assert_allclose(np.asarray(got), np.asarray(want),
                                   rtol=5e-3, atol=5e-3)
    for got, want in zip(logprobs, ref_lp):
        np.testing.assert_allclose(np.asarray(got), np.asarray(want),
                                   rtol=5e-3, atol=5e-3)

    assert len(outputs) == 2 * num_layers and outputs[0].shape == (B, rnn_size)
    assert len(logprobs) == num_layers and logprobs[0].shape == (B, output_size)
    print("KERNEL_OK")
</pallas_src>

<mosaic_0001>
module attributes {stable_mosaic.version = 11 : i64} {
  func.func @fused_forward_kernel(%arg0: memref<2x32xf32, #tpu.memory_space<vmem>>, %arg1: memref<2x8x32xf32, #tpu.memory_space<vmem>>, %arg2: memref<3x2x32xf32, #tpu.memory_space<vmem>>, %arg3: memref<3x2x32xf32, #tpu.memory_space<vmem>>, %arg4: memref<3x32x256xf32, #tpu.memory_space<vmem>>, %arg5: memref<3x32x256xf32, #tpu.memory_space<vmem>>, %arg6: memref<3x32x256xf32, #tpu.memory_space<vmem>>, %arg7: memref<3x1x256xf32, #tpu.memory_space<vmem>>, %arg8: memref<32x48xf32, #tpu.memory_space<vmem>>, %arg9: memref<1x48xf32, #tpu.memory_space<vmem>>, %arg10: memref<6x32x8xf32, #tpu.memory_space<vmem>>, %arg11: memref<6x1x8xf32, #tpu.memory_space<vmem>>, %arg12: memref<6x1x8xf32, #tpu.memory_space<vmem>>, %arg13: memref<6x1x1xf32, #tpu.memory_space<vmem>>, %arg14: memref<3x32x16xf32, #tpu.memory_space<vmem>>, %arg15: memref<3x1x16xf32, #tpu.memory_space<vmem>>, %arg16: memref<3x2x32xf32, #tpu.memory_space<vmem>>, %arg17: memref<3x2x32xf32, #tpu.memory_space<vmem>>, %arg18: memref<3x2x16xf32, #tpu.memory_space<vmem>>) attributes {dimension_semantics = [], scalar_prefetch = 0 : i64, scratch_operands = 0 : i64, tpu.core_type = #tpu.core_type<tc>} {
    %c0 = arith.constant 0 : index
    %c0_0 = arith.constant 0 : index
    %0 = vector.load %arg0[%c0, %c0_0] : memref<2x32xf32, #tpu.memory_space<vmem>>, vector<2x32xf32>
    %c0_1 = arith.constant 0 : index
    %c0_2 = arith.constant 0 : index
    %c0_3 = arith.constant 0 : index
    %1 = vector.load %arg1[%c0_1, %c0_2, %c0_3] : memref<2x8x32xf32, #tpu.memory_space<vmem>>, vector<2x8x32xf32>
    %2 = vector.shape_cast %1 : vector<2x8x32xf32> to vector<16x32xf32>
    %c0_4 = arith.constant 0 : index
    %c0_5 = arith.constant 0 : index
    %3 = vector.load %arg8[%c0_4, %c0_5] : memref<32x48xf32, #tpu.memory_space<vmem>>, vector<32x48xf32>
    %cst = arith.constant dense<0.000000e+00> : vector<16x48xf32>
    %4 = tpu.matmul %2, %3, %cst {dimension_numbers = #tpu.dot_dimension_numbers<[1], [0], [0], [1], [0, 0, 1, 1], [], []>} : vector<16x32xf32>, vector<32x48xf32>, vector<16x48xf32> -> vector<16x48xf32>
    %c0_6 = arith.constant 0 : index
    %c0_7 = arith.constant 0 : index
    %5 = vector.load %arg9[%c0_6, %c0_7] : memref<1x48xf32, #tpu.memory_space<vmem>>, vector<1x48xf32>
    %6 = vector.broadcast %5 : vector<1x48xf32> to vector<16x48xf32>
    %7 = arith.addf %4, %6 : vector<16x48xf32>
    %c0_8 = arith.constant 0 : index
    %c0_9 = arith.constant 0 : index
    %c0_10 = arith.constant 0 : index
    %8 = vector.load %arg2[%c0_8, %c0_9, %c0_10] : memref<3x2x32xf32, #tpu.memory_space<vmem>>, vector<1x2x32xf32>
    %9 = vector.shape_cast %8 : vector<1x2x32xf32> to vector<2x32xf32>
    %c0_11 = arith.constant 0 : index
    %c0_12 = arith.constant 0 : index
    %c0_13 = arith.constant 0 : index
    %10 = vector.load %arg3[%c0_11, %c0_12, %c0_13] : memref<3x2x32xf32, #tpu.memory_space<vmem>>, vector<1x2x32xf32>
    %11 = vector.shape_cast %10 : vector<1x2x32xf32> to vector<2x32xf32>
    %12 = vector.extract_strided_slice %7 {offsets = [0, 0], sizes = [16, 8], strides = [1, 1]} : vector<16x48xf32> to vector<16x8xf32>
    %13 = vector.shape_cast %12 : vector<16x8xf32> to vector<2x8x8xf32>
    %c0_14 = arith.constant 0 : index
    %c0_15 = arith.constant 0 : index
    %c0_16 = arith.constant 0 : index
    %14 = vector.load %arg10[%c0_14, %c0_15, %c0_16] : memref<6x32x8xf32, #tpu.memory_space<vmem>>, vector<1x32x8xf32>
    %15 = vector.shape_cast %14 : vector<1x32x8xf32> to vector<32x8xf32>
    %cst_17 = arith.constant dense<0.000000e+00> : vector<2x8xf32>
    %16 = tpu.matmul %11, %15, %cst_17 {dimension_numbers = #tpu.dot_dimension_numbers<[1], [0], [0], [1], [0, 0, 1, 1], [], []>} : vector<2x32xf32>, vector<32x8xf32>, vector<2x8xf32> -> vector<2x8xf32>
    %c0_18 = arith.constant 0 : index
    %c0_19 = arith.constant 0 : index
    %c0_20 = arith.constant 0 : index
    %17 = vector.load %arg11[%c0_18, %c0_19, %c0_20] : memref<6x1x8xf32, #tpu.memory_space<vmem>>, vector<1x1x8xf32>
    %18 = vector.shape_cast %17 : vector<1x1x8xf32> to vector<1x8xf32>
    %19 = vector.broadcast %18 : vector<1x8xf32> to vector<2x8xf32>
    %20 = arith.addf %16, %19 : vector<2x8xf32>
    %21 = vector.shape_cast %20 : vector<2x8xf32> to vector<2x8x1xf32>
    %22 = vector.broadcast %21 : vector<2x8x1xf32> to vector<2x8x8xf32>
    %23 = arith.addf %13, %22 : vector<2x8x8xf32>
    %24 = math.tanh %23 : vector<2x8x8xf32>
    %c0_21 = arith.constant 0 : index
    %c0_22 = arith.constant 0 : index
    %c0_23 = arith.constant 0 : index
    %25 = vector.load %arg12[%c0_21, %c0_22, %c0_23] : memref<6x1x8xf32, #tpu.memory_space<vmem>>, vector<1x1x8xf32>
    %26 = vector.shape_cast %25 : vector<1x1x8xf32> to vector<1x8xf32>
    %27 = vector.shape_cast %26 : vector<1x8xf32> to vector<1x1x8xf32>
    %28 = vector.broadcast %27 : vector<1x1x8xf32> to vector<2x8x8xf32>
    %29 = arith.mulf %24, %28 : vector<2x8x8xf32>
    %cst_24 = arith.constant dense<0.000000e+00> : vector<2x8xf32>
    %30 = vector.multi_reduction <add>, %29, %cst_24 [2] : vector<2x8x8xf32> to vector<2x8xf32>
    %c0_25 = arith.constant 0 : index
    %c0_26 = arith.constant 0 : index
    %c0_27 = arith.constant 0 : index
    %31 = vector.load %arg13[%c0_25, %c0_26, %c0_27] : memref<6x1x1xf32, #tpu.memory_space<vmem>>, vector<1x1x1xf32>
    %32 = vector.shape_cast %31 : vector<1x1x1xf32> to vector<1x1xf32>
    %33 = vector.broadcast %32 : vector<1x1xf32> to vector<2x8xf32>
    %34 = arith.addf %30, %33 : vector<2x8xf32>
    %cst_28 = arith.constant dense<0xFF800000> : vector<2xf32>
    %35 = vector.multi_reduction <maximumf>, %34, %cst_28 [1] : vector<2x8xf32> to vector<2xf32>
    %36 = vector.shape_cast %35 : vector<2xf32> to vector<2x1xf32>
    %37 = vector.broadcast %36 : vector<2x1xf32> to vector<2x8xf32>
    %38 = arith.subf %34, %37 : vector<2x8xf32>
    %39 = math.exp %38 : vector<2x8xf32>
    %cst_29 = arith.constant dense<0.000000e+00> : vector<2xf32>
    %40 = vector.multi_reduction <add>, %39, %cst_29 [1] : vector<2x8xf32> to vector<2xf32>
    %41 = vector.shape_cast %40 : vector<2xf32> to vector<2x1xf32>
    %42 = tpu.reciprocal %41 {approx = true} : vector<2x1xf32> -> vector<2x1xf32>
    %43 = vector.broadcast %42 : vector<2x1xf32> to vector<2x8xf32>
    %44 = arith.mulf %39, %43 : vector<2x8xf32>
    %45 = vector.shape_cast %44 : vector<2x8xf32> to vector<2x8x1xf32>
    %46 = vector.broadcast %45 : vector<2x8x1xf32> to vector<2x8x32xf32>
    %47 = arith.mulf %1, %46 : vector<2x8x32xf32>
    %cst_30 = arith.constant dense<0.000000e+00> : vector<2x32xf32>
    %48 = vector.multi_reduction <add>, %47, %cst_30 [1] : vector<2x8x32xf32> to vector<2x32xf32>
    %c0_31 = arith.constant 0 : index
    %c0_32 = arith.constant 0 : index
    %c0_33 = arith.constant 0 : index
    %49 = vector.load %arg4[%c0_31, %c0_32, %c0_33] : memref<3x32x256xf32, #tpu.memory_space<vmem>>, vector<1x32x256xf32>
    %50 = vector.shape_cast %49 : vector<1x32x256xf32> to vector<32x256xf32>
    %cst_34 = arith.constant dense<0.000000e+00> : vector<2x256xf32>
    %51 = tpu.matmul %0, %50, %cst_34 {dimension_numbers = #tpu.dot_dimension_numbers<[1], [0], [0], [1], [0, 0, 1, 1], [], []>} : vector<2x32xf32>, vector<32x256xf32>, vector<2x256xf32> -> vector<2x256xf32>
    %c0_35 = arith.constant 0 : index
    %c0_36 = arith.constant 0 : index
    %c0_37 = arith.constant 0 : index
    %52 = vector.load %arg5[%c0_35, %c0_36, %c0_37] : memref<3x32x256xf32, #tpu.memory_space<vmem>>, vector<1x32x256xf32>
    %53 = vector.shape_cast %52 : vector<1x32x256xf32> to vector<32x256xf32>
    %cst_38 = arith.constant dense<0.000000e+00> : vector<2x256xf32>
    %54 = tpu.matmul %11, %53, %cst_38 {dimension_numbers = #tpu.dot_dimension_numbers<[1], [0], [0], [1], [0, 0, 1, 1], [], []>} : vector<2x32xf32>, vector<32x256xf32>, vector<2x256xf32> -> vector<2x256xf32>
    %55 = arith.addf %51, %54 : vector<2x256xf32>
    %c0_39 = arith.constant 0 : index
    %c0_40 = arith.constant 0 : index
    %c0_41 = arith.constant 0 : index
    %56 = vector.load %arg6[%c0_39, %c0_40, %c0_41] : memref<3x32x256xf32, #tpu.memory_space<vmem>>, vector<1x32x256xf32>
    %57 = vector.shape_cast %56 : vector<1x32x256xf32> to vector<32x256xf32>
    %cst_42 = arith.constant dense<0.000000e+00> : vector<2x256xf32>
    %58 = tpu.matmul %48, %57, %cst_42 {dimension_numbers = #tpu.dot_dimension_numbers<[1], [0], [0], [1], [0, 0, 1, 1], [], []>} : vector<2x32xf32>, vector<32x256xf32>, vector<2x256xf32> -> vector<2x256xf32>
    %59 = arith.addf %55, %58 : vector<2x256xf32>
    %c0_43 = arith.constant 0 : index
    %c0_44 = arith.constant 0 : index
    %c0_45 = arith.constant 0 : index
    %60 = vector.load %arg7[%c0_43, %c0_44, %c0_45] : memref<3x1x256xf32, #tpu.memory_space<vmem>>, vector<1x1x256xf32>
    %61 = vector.shape_cast %60 : vector<1x1x256xf32> to vector<1x256xf32>
    %62 = vector.broadcast %61 : vector<1x256xf32> to vector<2x256xf32>
    %63 = arith.addf %59, %62 : vector<2x256xf32>
    %64 = vector.extract_strided_slice %63 {offsets = [0, 0], sizes = [2, 192], strides = [1, 1]} : vector<2x256xf32> to vector<2x192xf32>
    %65 = arith.negf %64 : vector<2x192xf32>
    %66 = math.exp %65 : vector<2x192xf32>
    %cst_46 = arith.constant 1.000000e+00 : f32
    %67 = vector.broadcast %cst_46 : f32 to vector<2x192xf32>
    %68 = arith.addf %67, %66 : vector<2x192xf32>
    %69 = arith.divf %67, %68 : vector<2x192xf32>
    %70 = vector.extract_strided_slice %69 {offsets = [0, 0], sizes = [2, 64], strides = [1, 1]} : vector<2x192xf32> to vector<2x64xf32>
    %71 = vector.extract_strided_slice %69 {offsets = [0, 64], sizes = [2, 64], strides = [1, 1]} : vector<2x192xf32> to vector<2x64xf32>
    %72 = vector.extract_strided_slice %69 {offsets = [0, 128], sizes = [2, 64], strides = [1, 1]} : vector<2x192xf32> to vector<2x64xf32>
    %73 = vector.extract_strided_slice %63 {offsets = [0, 192], sizes = [2, 64], strides = [1, 1]} : vector<2x256xf32> to vector<2x64xf32>
    %74 = math.tanh %73 : vector<2x64xf32>
    %75 = vector.extract_strided_slice %71 {offsets = [0, 0], sizes = [2, 32], strides = [1, 1]} : vector<2x64xf32> to vector<2x32xf32>
    %76 = arith.mulf %75, %9 : vector<2x32xf32>
    %77 = vector.extract_strided_slice %70 {offsets = [0, 0], sizes = [2, 32], strides = [1, 1]} : vector<2x64xf32> to vector<2x32xf32>
    %78 = vector.extract_strided_slice %74 {offsets = [0, 0], sizes = [2, 32], strides = [1, 1]} : vector<2x64xf32> to vector<2x32xf32>
    %79 = arith.mulf %77, %78 : vector<2x32xf32>
    %80 = arith.addf %76, %79 : vector<2x32xf32>
    %81 = vector.extract_strided_slice %72 {offsets = [0, 0], sizes = [2, 32], strides = [1, 1]} : vector<2x64xf32> to vector<2x32xf32>
    %82 = math.tanh %80 : vector<2x32xf32>
    %83 = arith.mulf %81, %82 : vector<2x32xf32>
    %84 = vector.extract_strided_slice %71 {offsets = [0, 32], sizes = [2, 32], strides = [1, 1]} : vector<2x64xf32> to vector<2x32xf32>
    %85 = arith.mulf %84, %9 : vector<2x32xf32>
    %86 = vector.extract_strided_slice %70 {offsets = [0, 32], sizes = [2, 32], strides = [1, 1]} : vector<2x64xf32> to vector<2x32xf32>
    %87 = vector.extract_strided_slice %74 {offsets = [0, 32], sizes = [2, 32], strides = [1, 1]} : vector<2x64xf32> to vector<2x32xf32>
    %88 = arith.mulf %86, %87 : vector<2x32xf32>
    %89 = arith.addf %85, %88 : vector<2x32xf32>
    %90 = vector.extract_strided_slice %72 {offsets = [0, 32], sizes = [2, 32], strides = [1, 1]} : vector<2x64xf32> to vector<2x32xf32>
    %91 = math.tanh %89 : vector<2x32xf32>
    %92 = arith.mulf %90, %91 : vector<2x32xf32>
    %cst_47 = arith.constant 0.000000e+00 : f32
    %93 = vector.broadcast %cst_47 : f32 to vector<2x32xf32>
    %94 = arith.addf %93, %80 : vector<2x32xf32>
    %95 = arith.addf %94, %89 : vector<2x32xf32>
    %cst_48 = arith.constant 5.000000e-01 : f32
    %96 = vector.broadcast %cst_48 : f32 to vector<2x32xf32>
    %97 = arith.mulf %95, %96 : vector<2x32xf32>
    %cst_49 = arith.constant 0.000000e+00 : f32
    %98 = vector.broadcast %cst_49 : f32 to vector<2x32xf32>
    %99 = arith.addf %98, %83 : vector<2x32xf32>
    %100 = arith.addf %99, %92 : vector<2x32xf32>
    %cst_50 = arith.constant 5.000000e-01 : f32
    %101 = vector.broadcast %cst_50 : f32 to vector<2x32xf32>
    %102 = arith.mulf %100, %101 : vector<2x32xf32>
    %103 = vector.extract_strided_slice %7 {offsets = [0, 8], sizes = [16, 8], strides = [1, 1]} : vector<16x48xf32> to vector<16x8xf32>
    %104 = vector.shape_cast %103 : vector<16x8xf32> to vector<2x8x8xf32>
    %c1 = arith.constant 1 : index
    %c0_51 = arith.constant 0 : index
    %c0_52 = arith.constant 0 : index
    %105 = vector.load %arg10[%c1, %c0_51, %c0_52] : memref<6x32x8xf32, #tpu.memory_space<vmem>>, vector<1x32x8xf32>
    %106 = vector.shape_cast %105 : vector<1x32x8xf32> to vector<32x8xf32>
    %cst_53 = arith.constant dense<0.000000e+00> : vector<2x8xf32>
    %107 = tpu.matmul %102, %106, %cst_53 {dimension_numbers = #tpu.dot_dimension_numbers<[1], [0], [0], [1], [0, 0, 1, 1], [], []>} : vector<2x32xf32>, vector<32x8xf32>, vector<2x8xf32> -> vector<2x8xf32>
    %c1_54 = arith.constant 1 : index
    %c0_55 = arith.constant 0 : index
    %c0_56 = arith.constant 0 : index
    %108 = vector.load %arg11[%c1_54, %c0_55, %c0_56] : memref<6x1x8xf32, #tpu.memory_space<vmem>>, vector<1x1x8xf32>
    %109 = vector.shape_cast %108 : vector<1x1x8xf32> to vector<1x8xf32>
    %110 = vector.broadcast %109 : vector<1x8xf32> to vector<2x8xf32>
    %111 = arith.addf %107, %110 : vector<2x8xf32>
    %112 = vector.shape_cast %111 : vector<2x8xf32> to vector<2x8x1xf32>
    %113 = vector.broadcast %112 : vector<2x8x1xf32> to vector<2x8x8xf32>
    %114 = arith.addf %104, %113 : vector<2x8x8xf32>
    %115 = math.tanh %114 : vector<2x8x8xf32>
    %c1_57 = arith.constant 1 : index
    %c0_58 = arith.constant 0 : index
    %c0_59 = arith.constant 0 : index
    %116 = vector.load %arg12[%c1_57, %c0_58, %c0_59] : memref<6x1x8xf32, #tpu.memory_space<vmem>>, vector<1x1x8xf32>
    %117 = vector.shape_cast %116 : vector<1x1x8xf32> to vector<1x8xf32>
    %118 = vector.shape_cast %117 : vector<1x8xf32> to vector<1x1x8xf32>
    %119 = vector.broadcast %118 : vector<1x1x8xf32> to vector<2x8x8xf32>
    %120 = arith.mulf %115, %119 : vector<2x8x8xf32>
    %cst_60 = arith.constant dense<0.000000e+00> : vector<2x8xf32>
    %121 = vector.multi_reduction <add>, %120, %cst_60 [2] : vector<2x8x8xf32> to vector<2x8xf32>
    %c1_61 = arith.constant 1 : index
    %c0_62 = arith.constant 0 : index
    %c0_63 = arith.constant 0 : index
    %122 = vector.load %arg13[%c1_61, %c0_62, %c0_63] : memref<6x1x1xf32, #tpu.memory_space<vmem>>, vector<1x1x1xf32>
    %123 = vector.shape_cast %122 : vector<1x1x1xf32> to vector<1x1xf32>
    %124 = vector.broadcast %123 : vector<1x1xf32> to vector<2x8xf32>
    %125 = arith.addf %121, %124 : vector<2x8xf32>
    %cst_64 = arith.constant dense<0xFF800000> : vector<2xf32>
    %126 = vector.multi_reduction <maximumf>, %125, %cst_64 [1] : vector<2x8xf32> to vector<2xf32>
    %127 = vector.shape_cast %126 : vector<2xf32> to vector<2x1xf32>
    %128 = vector.broadcast %127 : vector<2x1xf32> to vector<2x8xf32>
    %129 = arith.subf %125, %128 : vector<2x8xf32>
    %130 = math.exp %129 : vector<2x8xf32>
    %cst_65 = arith.constant dense<0.000000e+00> : vector<2xf32>
    %131 = vector.multi_reduction <add>, %130, %cst_65 [1] : vector<2x8xf32> to vector<2xf32>
    %132 = vector.shape_cast %131 : vector<2xf32> to vector<2x1xf32>
    %133 = tpu.reciprocal %132 {approx = true} : vector<2x1xf32> -> vector<2x1xf32>
    %134 = vector.broadcast %133 : vector<2x1xf32> to vector<2x8xf32>
    %135 = arith.mulf %130, %134 : vector<2x8xf32>
    %136 = vector.shape_cast %135 : vector<2x8xf32> to vector<2x8x1xf32>
    %137 = vector.broadcast %136 : vector<2x8x1xf32> to vector<2x8x32xf32>
    %138 = arith.mulf %1, %137 : vector<2x8x32xf32>
    %cst_66 = arith.constant dense<0.000000e+00> : vector<2x32xf32>
    %139 = vector.multi_reduction <add>, %138, %cst_66 [1] : vector<2x8x32xf32> to vector<2x32xf32>
    %140 = arith.addf %139, %102 : vector<2x32xf32>
    %c0_67 = arith.constant 0 : index
    %c0_68 = arith.constant 0 : index
    %c0_69 = arith.constant 0 : index
    %141 = vector.load %arg14[%c0_67, %c0_68, %c0_69] : memref<3x32x16xf32, #tpu.memory_space<vmem>>, vector<1x32x16xf32>
    %142 = vector.shape_cast %141 : vector<1x32x16xf32> to vector<32x16xf32>
    %cst_70 = arith.constant dense<0.000000e+00> : vector<2x16xf32>
    %143 = tpu.matmul %140, %142, %cst_70 {dimension_numbers = #tpu.dot_dimension_numbers<[1], [0], [0], [1], [0, 0, 1, 1], [], []>} : vector<2x32xf32>, vector<32x16xf32>, vector<2x16xf32> -> vector<2x16xf32>
    %c0_71 = arith.constant 0 : index
    %c0_72 = arith.constant 0 : index
    %c0_73 = arith.constant 0 : index
    %144 = vector.load %arg15[%c0_71, %c0_72, %c0_73] : memref<3x1x16xf32, #tpu.memory_space<vmem>>, vector<1x1x16xf32>
    %145 = vector.shape_cast %144 : vector<1x1x16xf32> to vector<1x16xf32>
    %146 = vector.broadcast %145 : vector<1x16xf32> to vector<2x16xf32>
    %147 = arith.addf %143, %146 : vector<2x16xf32>
    %cst_74 = arith.constant dense<0xFF800000> : vector<2xf32>
    %148 = vector.multi_reduction <maximumf>, %147, %cst_74 [1] : vector<2x16xf32> to vector<2xf32>
    %149 = vector.shape_cast %148 : vector<2xf32> to vector<2x1xf32>
    %150 = vector.broadcast %149 : vector<2x1xf32> to vector<2x16xf32>
    %151 = arith.subf %147, %150 : vector<2x16xf32>
    %152 = math.exp %151 : vector<2x16xf32>
    %cst_75 = arith.constant dense<0.000000e+00> : vector<2xf32>
    %153 = vector.multi_reduction <add>, %152, %cst_75 [1] : vector<2x16xf32> to vector<2xf32>
    %154 = vector.shape_cast %153 : vector<2xf32> to vector<2x1xf32>
    %155 = math.log %154 : vector<2x1xf32>
    %156 = arith.addf %149, %155 : vector<2x1xf32>
    %c0_76 = arith.constant 0 : index
    %c0_77 = arith.constant 0 : index
    %c0_78 = arith.constant 0 : index
    %157 = vector.load %arg16[%c0_76, %c0_77, %c0_78] : memref<3x2x32xf32, #tpu.memory_space<vmem>>, vector<1x2x32xf32>
    %158 = vector.shape_cast %157 : vector<1x2x32xf32> to vector<2x32xf32>
    %159 = vector.shape_cast %97 : vector<2x32xf32> to vector<1x2x32xf32>
    tpu.vector_store %arg16[%c0_76, %c0_77, %c0_78], %159 {strides = array<i32>} : memref<3x2x32xf32, #tpu.memory_space<vmem>>, vector<1x2x32xf32>,
    %c0_79 = arith.constant 0 : index
    %c0_80 = arith.constant 0 : index
    %c0_81 = arith.constant 0 : index
    %160 = vector.load %arg17[%c0_79, %c0_80, %c0_81] : memref<3x2x32xf32, #tpu.memory_space<vmem>>, vector<1x2x32xf32>
    %161 = vector.shape_cast %160 : vector<1x2x32xf32> to vector<2x32xf32>
    %162 = vector.shape_cast %140 : vector<2x32xf32> to vector<1x2x32xf32>
    tpu.vector_store %arg17[%c0_79, %c0_80, %c0_81], %162 {strides = array<i32>} : memref<3x2x32xf32, #tpu.memory_space<vmem>>, vector<1x2x32xf32>,
    %163 = vector.broadcast %156 : vector<2x1xf32> to vector<2x16xf32>
    %164 = arith.subf %147, %163 : vector<2x16xf32>
    %c0_82 = arith.constant 0 : index
    %c0_83 = arith.constant 0 : index
    %c0_84 = arith.constant 0 : index
    %165 = vector.load %arg18[%c0_82, %c0_83, %c0_84] : memref<3x2x16xf32, #tpu.memory_space<vmem>>, vector<1x2x16xf32>
    %166 = vector.shape_cast %165 : vector<1x2x16xf32> to vector<2x16xf32>
    %167 = vector.shape_cast %164 : vector<2x16xf32> to vector<1x2x16xf32>
    tpu.vector_store %arg18[%c0_82, %c0_83, %c0_84], %167 {strides = array<i32>} : memref<3x2x16xf32, #tpu.memory_space<vmem>>, vector<1x2x16xf32>,
    %c1_85 = arith.constant 1 : index
    %c0_86 = arith.constant 0 : index
    %c0_87 = arith.constant 0 : index
    %168 = vector.load %arg2[%c1_85, %c0_86, %c0_87] : memref<3x2x32xf32, #tpu.memory_space<vmem>>, vector<1x2x32xf32>
    %169 = vector.shape_cast %168 : vector<1x2x32xf32> to vector<2x32xf32>
    %c1_88 = arith.constant 1 : index
    %c0_89 = arith.constant 0 : index
    %c0_90 = arith.constant 0 : index
    %170 = vector.load %arg3[%c1_88, %c0_89, %c0_90] : memref<3x2x32xf32, #tpu.memory_space<vmem>>, vector<1x2x32xf32>
    %171 = vector.shape_cast %170 : vector<1x2x32xf32> to vector<2x32xf32>
    %172 = arith.addf %0, %140 : vector<2x32xf32>
    %173 = vector.extract_strided_slice %7 {offsets = [0, 16], sizes = [16, 8], strides = [1, 1]} : vector<16x48xf32> to vector<16x8xf32>
    %174 = vector.shape_cast %173 : vector<16x8xf32> to vector<2x8x8xf32>
    %c2 = arith.constant 2 : index
    %c0_91 = arith.constant 0 : index
    %c0_92 = arith.constant 0 : index
    %175 = vector.load %arg10[%c2, %c0_91, %c0_92] : memref<6x32x8xf32, #tpu.memory_space<vmem>>, vector<1x32x8xf32>
    %176 = vector.shape_cast %175 : vector<1x32x8xf32> to vector<32x8xf32>
    %cst_93 = arith.constant dense<0.000000e+00> : vector<2x8xf32>
    %177 = tpu.matmul %171, %176, %cst_93 {dimension_numbers = #tpu.dot_dimension_numbers<[1], [0], [0], [1], [0, 0, 1, 1], [], []>} : vector<2x32xf32>, vector<32x8xf32>, vector<2x8xf32> -> vector<2x8xf32>
    %c2_94 = arith.constant 2 : index
    %c0_95 = arith.constant 0 : index
    %c0_96 = arith.constant 0 : index
    %178 = vector.load %arg11[%c2_94, %c0_95, %c0_96] : memref<6x1x8xf32, #tpu.memory_space<vmem>>, vector<1x1x8xf32>
    %179 = vector.shape_cast %178 : vector<1x1x8xf32> to vector<1x8xf32>
    %180 = vector.broadcast %179 : vector<1x8xf32> to vector<2x8xf32>
    %181 = arith.addf %177, %180 : vector<2x8xf32>
    %182 = vector.shape_cast %181 : vector<2x8xf32> to vector<2x8x1xf32>
    %183 = vector.broadcast %182 : vector<2x8x1xf32> to vector<2x8x8xf32>
    %184 = arith.addf %174, %183 : vector<2x8x8xf32>
    %185 = math.tanh %184 : vector<2x8x8xf32>
    %c2_97 = arith.constant 2 : index
    %c0_98 = arith.constant 0 : index
    %c0_99 = arith.constant 0 : index
    %186 = vector.load %arg12[%c2_97, %c0_98, %c0_99] : memref<6x1x8xf32, #tpu.memory_space<vmem>>, vector<1x1x8xf32>
    %187 = vector.shape_cast %186 : vector<1x1x8xf32> to vector<1x8xf32>
    %188 = vector.shape_cast %187 : vector<1x8xf32> to vector<1x1x8xf32>
    %189 = vector.broadcast %188 : vector<1x1x8xf32> to vector<2x8x8xf32>
    %190 = arith.mulf %185, %189 : vector<2x8x8xf32>
    %cst_100 = arith.constant dense<0.000000e+00> : vector<2x8xf32>
    %191 = vector.multi_reduction <add>, %190, %cst_100 [2] : vector<2x8x8xf32> to vector<2x8xf32>
    %c2_101 = arith.constant 2 : index
    %c0_102 = arith.constant 0 : index
    %c0_103 = arith.constant 0 : index
    %192 = vector.load %arg13[%c2_101, %c0_102, %c0_103] : memref<6x1x1xf32, #tpu.memory_space<vmem>>, vector<1x1x1xf32>
    %193 = vector.shape_cast %192 : vector<1x1x1xf32> to vector<1x1xf32>
    %194 = vector.broadcast %193 : vector<1x1xf32> to vector<2x8xf32>
    %195 = arith.addf %191, %194 : vector<2x8xf32>
    %cst_104 = arith.constant dense<0xFF800000> : vector<2xf32>
    %196 = vector.multi_reduction <maximumf>, %195, %cst_104 [1] : vector<2x8xf32> to vector<2xf32>
    %197 = vector.shape_cast %196 : vector<2xf32> to vector<2x1xf32>
    %198 = vector.broadcast %197 : vector<2x1xf32> to vector<2x8xf32>
    %199 = arith.subf %195, %198 : vector<2x8xf32>
    %200 = math.exp %199 : vector<2x8xf32>
    %cst_105 = arith.constant dense<0.000000e+00> : vector<2xf32>
    %201 = vector.multi_reduction <add>, %200, %cst_105 [1] : vector<2x8xf32> to vector<2xf32>
    %202 = vector.shape_cast %201 : vector<2xf32> to vector<2x1xf32>
    %203 = tpu.reciprocal %202 {approx = true} : vector<2x1xf32> -> vector<2x1xf32>
    %204 = vector.broadcast %203 : vector<2x1xf32> to vector<2x8xf32>
    %205 = arith.mulf %200, %204 : vector<2x8xf32>
    %206 = vector.shape_cast %205 : vector<2x8xf32> to vector<2x8x1xf32>
    %207 = vector.broadcast %206 : vector<2x8x1xf32> to vector<2x8x32xf32>
    %208 = arith.mulf %1, %207 : vector<2x8x32xf32>
    %cst_106 = arith.constant dense<0.000000e+00> : vector<2x32xf32>
    %209 = vector.multi_reduction <add>, %208, %cst_106 [1] : vector<2x8x32xf32> to vector<2x32xf32>
    %c1_107 = arith.constant 1 : index
    %c0_108 = arith.constant 0 : index
    %c0_109 = arith.constant 0 : index
    %210 = vector.load %arg4[%c1_107, %c0_108, %c0_109] : memref<3x32x256xf32, #tpu.memory_space<vmem>>, vector<1x32x256xf32>
    %211 = vector.shape_cast %210 : vector<1x32x256xf32> to vector<32x256xf32>
    %cst_110 = arith.constant dense<0.000000e+00> : vector<2x256xf32>
    %212 = tpu.matmul %172, %211, %cst_110 {dimension_numbers = #tpu.dot_dimension_numbers<[1], [0], [0], [1], [0, 0, 1, 1], [], []>} : vector<2x32xf32>, vector<32x256xf32>, vector<2x256xf32> -> vector<2x256xf32>
    %c1_111 = arith.constant 1 : index
    %c0_112 = arith.constant 0 : index
    %c0_113 = arith.constant 0 : index
    %213 = vector.load %arg5[%c1_111, %c0_112, %c0_113] : memref<3x32x256xf32, #tpu.memory_space<vmem>>, vector<1x32x256xf32>
    %214 = vector.shape_cast %213 : vector<1x32x256xf32> to vector<32x256xf32>
    %cst_114 = arith.constant dense<0.000000e+00> : vector<2x256xf32>
    %215 = tpu.matmul %171, %214, %cst_114 {dimension_numbers = #tpu.dot_dimension_numbers<[1], [0], [0], [1], [0, 0, 1, 1], [], []>} : vector<2x32xf32>, vector<32x256xf32>, vector<2x256xf32> -> vector<2x256xf32>
    %216 = arith.addf %212, %215 : vector<2x256xf32>
    %c1_115 = arith.constant 1 : index
    %c0_116 = arith.constant 0 : index
    %c0_117 = arith.constant 0 : index
    %217 = vector.load %arg6[%c1_115, %c0_116, %c0_117] : memref<3x32x256xf32, #tpu.memory_space<vmem>>, vector<1x32x256xf32>
    %218 = vector.shape_cast %217 : vector<1x32x256xf32> to vector<32x256xf32>
    %cst_118 = arith.constant dense<0.000000e+00> : vector<2x256xf32>
    %219 = tpu.matmul %209, %218, %cst_118 {dimension_numbers = #tpu.dot_dimension_numbers<[1], [0], [0], [1], [0, 0, 1, 1], [], []>} : vector<2x32xf32>, vector<32x256xf32>, vector<2x256xf32> -> vector<2x256xf32>
    %220 = arith.addf %216, %219 : vector<2x256xf32>
    %c1_119 = arith.constant 1 : index
    %c0_120 = arith.constant 0 : index
    %c0_121 = arith.constant 0 : index
    %221 = vector.load %arg7[%c1_119, %c0_120, %c0_121] : memref<3x1x256xf32, #tpu.memory_space<vmem>>, vector<1x1x256xf32>
    %222 = vector.shape_cast %221 : vector<1x1x256xf32> to vector<1x256xf32>
    %223 = vector.broadcast %222 : vector<1x256xf32> to vector<2x256xf32>
    %224 = arith.addf %220, %223 : vector<2x256xf32>
    %225 = vector.extract_strided_slice %224 {offsets = [0, 0], sizes = [2, 192], strides = [1, 1]} : vector<2x256xf32> to vector<2x192xf32>
    %226 = arith.negf %225 : vector<2x192xf32>
    %227 = math.exp %226 : vector<2x192xf32>
    %cst_122 = arith.constant 1.000000e+00 : f32
    %228 = vector.broadcast %cst_122 : f32 to vector<2x192xf32>
    %229 = arith.addf %228, %227 : vector<2x192xf32>
    %230 = arith.divf %228, %229 : vector<2x192xf32>
    %231 = vector.extract_strided_slice %230 {offsets = [0, 0], sizes = [2, 64], strides = [1, 1]} : vector<2x192xf32> to vector<2x64xf32>
    %232 = vector.extract_strided_slice %230 {offsets = [0, 64], sizes = [2, 64], strides = [1, 1]} : vector<2x192xf32> to vector<2x64xf32>
    %233 = vector.extract_strided_slice %230 {offsets = [0, 128], sizes = [2, 64], strides = [1, 1]} : vector<2x192xf32> to vector<2x64xf32>
    %234 = vector.extract_strided_slice %224 {offsets = [0, 192], sizes = [2, 64], strides = [1, 1]} : vector<2x256xf32> to vector<2x64xf32>
    %235 = math.tanh %234 : vector<2x64xf32>
    %236 = vector.extract_strided_slice %232 {offsets = [0, 0], sizes = [2, 32], strides = [1, 1]} : vector<2x64xf32> to vector<2x32xf32>
    %237 = arith.mulf %236, %169 : vector<2x32xf32>
    %238 = vector.extract_strided_slice %231 {offsets = [0, 0], sizes = [2, 32], strides = [1, 1]} : vector<2x64xf32> to vector<2x32xf32>
    %239 = vector.extract_strided_slice %235 {offsets = [0, 0], sizes = [2, 32], strides = [1, 1]} : vector<2x64xf32> to vector<2x32xf32>
    %240 = arith.mulf %238, %239 : vector<2x32xf32>
    %241 = arith.addf %237, %240 : vector<2x32xf32>
    %242 = vector.extract_strided_slice %233 {offsets = [0, 0], sizes = [2, 32], strides = [1, 1]} : vector<2x64xf32> to vector<2x32xf32>
    %243 = math.tanh %241 : vector<2x32xf32>
    %244 = arith.mulf %242, %243 : vector<2x32xf32>
    %245 = vector.extract_strided_slice %232 {offsets = [0, 32], sizes = [2, 32], strides = [1, 1]} : vector<2x64xf32> to vector<2x32xf32>
    %246 = arith.mulf %245, %169 : vector<2x32xf32>
    %247 = vector.extract_strided_slice %231 {offsets = [0, 32], sizes = [2, 32], strides = [1, 1]} : vector<2x64xf32> to vector<2x32xf32>
    %248 = vector.extract_strided_slice %235 {offsets = [0, 32], sizes = [2, 32], strides = [1, 1]} : vector<2x64xf32> to vector<2x32xf32>
    %249 = arith.mulf %247, %248 : vector<2x32xf32>
    %250 = arith.addf %246, %249 : vector<2x32xf32>
    %251 = vector.extract_strided_slice %233 {offsets = [0, 32], sizes = [2, 32], strides = [1, 1]} : vector<2x64xf32> to vector<2x32xf32>
    %252 = math.tanh %250 : vector<2x32xf32>
    %253 = arith.mulf %251, %252 : vector<2x32xf32>
    %cst_123 = arith.constant 0.000000e+00 : f32
    %254 = vector.broadcast %cst_123 : f32 to vector<2x32xf32>
    %255 = arith.addf %254, %241 : vector<2x32xf32>
    %256 = arith.addf %255, %250 : vector<2x32xf32>
    %cst_124 = arith.constant 5.000000e-01 : f32
    %257 = vector.broadcast %cst_124 : f32 to vector<2x32xf32>
    %258 = arith.mulf %256, %257 : vector<2x32xf32>
    %cst_125 = arith.constant 0.000000e+00 : f32
    %259 = vector.broadcast %cst_125 : f32 to vector<2x32xf32>
    %260 = arith.addf %259, %244 : vector<2x32xf32>
    %261 = arith.addf %260, %253 : vector<2x32xf32>
    %cst_126 = arith.constant 5.000000e-01 : f32
    %262 = vector.broadcast %cst_126 : f32 to vector<2x32xf32>
    %263 = arith.mulf %261, %262 : vector<2x32xf32>
    %264 = vector.extract_strided_slice %7 {offsets = [0, 24], sizes = [16, 8], strides = [1, 1]} : vector<16x48xf32> to vector<16x8xf32>
    %265 = vector.shape_cast %264 : vector<16x8xf32> to vector<2x8x8xf32>
    %c3 = arith.constant 3 : index
    %c0_127 = arith.constant 0 : index
    %c0_128 = arith.constant 0 : index
    %266 = vector.load %arg10[%c3, %c0_127, %c0_128] : memref<6x32x8xf32, #tpu.memory_space<vmem>>, vector<1x32x8xf32>
    %267 = vector.shape_cast %266 : vector<1x32x8xf32> to vector<32x8xf32>
    %cst_129 = arith.constant dense<0.000000e+00> : vector<2x8xf32>
    %268 = tpu.matmul %263, %267, %cst_129 {dimension_numbers = #tpu.dot_dimension_numbers<[1], [0], [0], [1], [0, 0, 1, 1], [], []>} : vector<2x32xf32>, vector<32x8xf32>, vector<2x8xf32> -> vector<2x8xf32>
    %c3_130 = arith.constant 3 : index
    %c0_131 = arith.constant 0 : index
    %c0_132 = arith.constant 0 : index
    %269 = vector.load %arg11[%c3_130, %c0_131, %c0_132] : memref<6x1x8xf32, #tpu.memory_space<vmem>>, vector<1x1x8xf32>
    %270 = vector.shape_cast %269 : vector<1x1x8xf32> to vector<1x8xf32>
    %271 = vector.broadcast %270 : vector<1x8xf32> to vector<2x8xf32>
    %272 = arith.addf %268, %271 : vector<2x8xf32>
    %273 = vector.shape_cast %272 : vector<2x8xf32> to vector<2x8x1xf32>
    %274 = vector.broadcast %273 : vector<2x8x1xf32> to vector<2x8x8xf32>
    %275 = arith.addf %265, %274 : vector<2x8x8xf32>
    %276 = math.tanh %275 : vector<2x8x8xf32>
    %c3_133 = arith.constant 3 : index
    %c0_134 = arith.constant 0 : index
    %c0_135 = arith.constant 0 : index
    %277 = vector.load %arg12[%c3_133, %c0_134, %c0_135] : memref<6x1x8xf32, #tpu.memory_space<vmem>>, vector<1x1x8xf32>
    %278 = vector.shape_cast %277 : vector<1x1x8xf32> to vector<1x8xf32>
    %279 = vector.shape_cast %278 : vector<1x8xf32> to vector<1x1x8xf32>
    %280 = vector.broadcast %279 : vector<1x1x8xf32> to vector<2x8x8xf32>
    %281 = arith.mulf %276, %280 : vector<2x8x8xf32>
    %cst_136 = arith.constant dense<0.000000e+00> : vector<2x8xf32>
    %282 = vector.multi_reduction <add>, %281, %cst_136 [2] : vector<2x8x8xf32> to vector<2x8xf32>
    %c3_137 = arith.constant 3 : index
    %c0_138 = arith.constant 0 : index
    %c0_139 = arith.constant 0 : index
    %283 = vector.load %arg13[%c3_137, %c0_138, %c0_139] : memref<6x1x1xf32, #tpu.memory_space<vmem>>, vector<1x1x1xf32>
    %284 = vector.shape_cast %283 : vector<1x1x1xf32> to vector<1x1xf32>
    %285 = vector.broadcast %284 : vector<1x1xf32> to vector<2x8xf32>
    %286 = arith.addf %282, %285 : vector<2x8xf32>
    %cst_140 = arith.constant dense<0xFF800000> : vector<2xf32>
    %287 = vector.multi_reduction <maximumf>, %286, %cst_140 [1] : vector<2x8xf32> to vector<2xf32>
    %288 = vector.shape_cast %287 : vector<2xf32> to vector<2x1xf32>
    %289 = vector.broadcast %288 : vector<2x1xf32> to vector<2x8xf32>
    %290 = arith.subf %286, %289 : vector<2x8xf32>
    %291 = math.exp %290 : vector<2x8xf32>
    %cst_141 = arith.constant dense<0.000000e+00> : vector<2xf32>
    %292 = vector.multi_reduction <add>, %291, %cst_141 [1] : vector<2x8xf32> to vector<2xf32>
    %293 = vector.shape_cast %292 : vector<2xf32> to vector<2x1xf32>
    %294 = tpu.reciprocal %293 {approx = true} : vector<2x1xf32> -> vector<2x1xf32>
    %295 = vector.broadcast %294 : vector<2x1xf32> to vector<2x8xf32>
    %296 = arith.mulf %291, %295 : vector<2x8xf32>
    %297 = vector.shape_cast %296 : vector<2x8xf32> to vector<2x8x1xf32>
    %298 = vector.broadcast %297 : vector<2x8x1xf32> to vector<2x8x32xf32>
    %299 = arith.mulf %1, %298 : vector<2x8x32xf32>
    %cst_142 = arith.constant dense<0.000000e+00> : vector<2x32xf32>
    %300 = vector.multi_reduction <add>, %299, %cst_142 [1] : vector<2x8x32xf32> to vector<2x32xf32>
    %301 = arith.addf %300, %263 : vector<2x32xf32>
    %c1_143 = arith.constant 1 : index
    %c0_144 = arith.constant 0 : index
    %c0_145 = arith.constant 0 : index
    %302 = vector.load %arg14[%c1_143, %c0_144, %c0_145] : memref<3x32x16xf32, #tpu.memory_space<vmem>>, vector<1x32x16xf32>
    %303 = vector.shape_cast %302 : vector<1x32x16xf32> to vector<32x16xf32>
    %cst_146 = arith.constant dense<0.000000e+00> : vector<2x16xf32>
    %304 = tpu.matmul %301, %303, %cst_146 {dimension_numbers = #tpu.dot_dimension_numbers<[1], [0], [0], [1], [0, 0, 1, 1], [], []>} : vector<2x32xf32>, vector<32x16xf32>, vector<2x16xf32> -> vector<2x16xf32>
    %c1_147 = arith.constant 1 : index
    %c0_148 = arith.constant 0 : index
    %c0_149 = arith.constant 0 : index
    %305 = vector.load %arg15[%c1_147, %c0_148, %c0_149] : memref<3x1x16xf32, #tpu.memory_space<vmem>>, vector<1x1x16xf32>
    %306 = vector.shape_cast %305 : vector<1x1x16xf32> to vector<1x16xf32>
    %307 = vector.broadcast %306 : vector<1x16xf32> to vector<2x16xf32>
    %308 = arith.addf %304, %307 : vector<2x16xf32>
    %cst_150 = arith.constant dense<0xFF800000> : vector<2xf32>
    %309 = vector.multi_reduction <maximumf>, %308, %cst_150 [1] : vector<2x16xf32> to vector<2xf32>
    %310 = vector.shape_cast %309 : vector<2xf32> to vector<2x1xf32>
    %311 = vector.broadcast %310 : vector<2x1xf32> to vector<2x16xf32>
    %312 = arith.subf %308, %311 : vector<2x16xf32>
    %313 = math.exp %312 : vector<2x16xf32>
    %cst_151 = arith.constant dense<0.000000e+00> : vector<2xf32>
    %314 = vector.multi_reduction <add>, %313, %cst_151 [1] : vector<2x16xf32> to vector<2xf32>
    %315 = vector.shape_cast %314 : vector<2xf32> to vector<2x1xf32>
    %316 = math.log %315 : vector<2x1xf32>
    %317 = arith.addf %310, %316 : vector<2x1xf32>
    %c1_152 = arith.constant 1 : index
    %c0_153 = arith.constant 0 : index
    %c0_154 = arith.constant 0 : index
    %318 = vector.load %arg16[%c1_152, %c0_153, %c0_154] : memref<3x2x32xf32, #tpu.memory_space<vmem>>, vector<1x2x32xf32>
    %319 = vector.shape_cast %318 : vector<1x2x32xf32> to vector<2x32xf32>
    %320 = vector.shape_cast %258 : vector<2x32xf32> to vector<1x2x32xf32>
    tpu.vector_store %arg16[%c1_152, %c0_153, %c0_154], %320 {strides = array<i32>} : memref<3x2x32xf32, #tpu.memory_space<vmem>>, vector<1x2x32xf32>,
    %c1_155 = arith.constant 1 : index
    %c0_156 = arith.constant 0 : index
    %c0_157 = arith.constant 0 : index
    %321 = vector.load %arg17[%c1_155, %c0_156, %c0_157] : memref<3x2x32xf32, #tpu.memory_space<vmem>>, vector<1x2x32xf32>
    %322 = vector.shape_cast %321 : vector<1x2x32xf32> to vector<2x32xf32>
    %323 = vector.shape_cast %301 : vector<2x32xf32> to vector<1x2x32xf32>
    tpu.vector_store %arg17[%c1_155, %c0_156, %c0_157], %323 {strides = array<i32>} : memref<3x2x32xf32, #tpu.memory_space<vmem>>, vector<1x2x32xf32>,
    %324 = vector.broadcast %317 : vector<2x1xf32> to vector<2x16xf32>
    %325 = arith.subf %308, %324 : vector<2x16xf32>
    %c1_158 = arith.constant 1 : index
    %c0_159 = arith.constant 0 : index
    %c0_160 = arith.constant 0 : index
    %326 = vector.load %arg18[%c1_158, %c0_159, %c0_160] : memref<3x2x16xf32, #tpu.memory_space<vmem>>, vector<1x2x16xf32>
    %327 = vector.shape_cast %326 : vector<1x2x16xf32> to vector<2x16xf32>
    %328 = vector.shape_cast %325 : vector<2x16xf32> to vector<1x2x16xf32>
    tpu.vector_store %arg18[%c1_158, %c0_159, %c0_160], %328 {strides = array<i32>} : memref<3x2x16xf32, #tpu.memory_space<vmem>>, vector<1x2x16xf32>,
    %c2_161 = arith.constant 2 : index
    %c0_162 = arith.constant 0 : index
    %c0_163 = arith.constant 0 : index
    %329 = vector.load %arg2[%c2_161, %c0_162, %c0_163] : memref<3x2x32xf32, #tpu.memory_space<vmem>>, vector<1x2x32xf32>
    %330 = vector.shape_cast %329 : vector<1x2x32xf32> to vector<2x32xf32>
    %c2_164 = arith.constant 2 : index
    %c0_165 = arith.constant 0 : index
    %c0_166 = arith.constant 0 : index
    %331 = vector.load %arg3[%c2_164, %c0_165, %c0_166] : memref<3x2x32xf32, #tpu.memory_space<vmem>>, vector<1x2x32xf32>
    %332 = vector.shape_cast %331 : vector<1x2x32xf32> to vector<2x32xf32>
    %333 = arith.addf %0, %301 : vector<2x32xf32>
    %334 = vector.extract_strided_slice %7 {offsets = [0, 32], sizes = [16, 8], strides = [1, 1]} : vector<16x48xf32> to vector<16x8xf32>
    %335 = vector.shape_cast %334 : vector<16x8xf32> to vector<2x8x8xf32>
    %c4 = arith.constant 4 : index
    %c0_167 = arith.constant 0 : index
    %c0_168 = arith.constant 0 : index
    %336 = vector.load %arg10[%c4, %c0_167, %c0_168] : memref<6x32x8xf32, #tpu.memory_space<vmem>>, vector<1x32x8xf32>
    %337 = vector.shape_cast %336 : vector<1x32x8xf32> to vector<32x8xf32>
    %cst_169 = arith.constant dense<0.000000e+00> : vector<2x8xf32>
    %338 = tpu.matmul %332, %337, %cst_169 {dimension_numbers = #tpu.dot_dimension_numbers<[1], [0], [0], [1], [0, 0, 1, 1], [], []>} : vector<2x32xf32>, vector<32x8xf32>, vector<2x8xf32> -> vector<2x8xf32>
    %c4_170 = arith.constant 4 : index
    %c0_171 = arith.constant 0 : index
    %c0_172 = arith.constant 0 : index
    %339 = vector.load %arg11[%c4_170, %c0_171, %c0_172] : memref<6x1x8xf32, #tpu.memory_space<vmem>>, vector<1x1x8xf32>
    %340 = vector.shape_cast %339 : vector<1x1x8xf32> to vector<1x8xf32>
    %341 = vector.broadcast %340 : vector<1x8xf32> to vector<2x8xf32>
    %342 = arith.addf %338, %341 : vector<2x8xf32>
    %343 = vector.shape_cast %342 : vector<2x8xf32> to vector<2x8x1xf32>
    %344 = vector.broadcast %343 : vector<2x8x1xf32> to vector<2x8x8xf32>
    %345 = arith.addf %335, %344 : vector<2x8x8xf32>
    %346 = math.tanh %345 : vector<2x8x8xf32>
    %c4_173 = arith.constant 4 : index
    %c0_174 = arith.constant 0 : index
    %c0_175 = arith.constant 0 : index
    %347 = vector.load %arg12[%c4_173, %c0_174, %c0_175] : memref<6x1x8xf32, #tpu.memory_space<vmem>>, vector<1x1x8xf32>
    %348 = vector.shape_cast %347 : vector<1x1x8xf32> to vector<1x8xf32>
    %349 = vector.shape_cast %348 : vector<1x8xf32> to vector<1x1x8xf32>
    %350 = vector.broadcast %349 : vector<1x1x8xf32> to vector<2x8x8xf32>
    %351 = arith.mulf %346, %350 : vector<2x8x8xf32>
    %cst_176 = arith.constant dense<0.000000e+00> : vector<2x8xf32>
    %352 = vector.multi_reduction <add>, %351, %cst_176 [2] : vector<2x8x8xf32> to vector<2x8xf32>
    %c4_177 = arith.constant 4 : index
    %c0_178 = arith.constant 0 : index
    %c0_179 = arith.constant 0 : index
    %353 = vector.load %arg13[%c4_177, %c0_178, %c0_179] : memref<6x1x1xf32, #tpu.memory_space<vmem>>, vector<1x1x1xf32>
    %354 = vector.shape_cast %353 : vector<1x1x1xf32> to vector<1x1xf32>
    %355 = vector.broadcast %354 : vector<1x1xf32> to vector<2x8xf32>
    %356 = arith.addf %352, %355 : vector<2x8xf32>
    %cst_180 = arith.constant dense<0xFF800000> : vector<2xf32>
    %357 = vector.multi_reduction <maximumf>, %356, %cst_180 [1] : vector<2x8xf32> to vector<2xf32>
    %358 = vector.shape_cast %357 : vector<2xf32> to vector<2x1xf32>
    %359 = vector.broadcast %358 : vector<2x1xf32> to vector<2x8xf32>
    %360 = arith.subf %356, %359 : vector<2x8xf32>
    %361 = math.exp %360 : vector<2x8xf32>
    %cst_181 = arith.constant dense<0.000000e+00> : vector<2xf32>
    %362 = vector.multi_reduction <add>, %361, %cst_181 [1] : vector<2x8xf32> to vector<2xf32>
    %363 = vector.shape_cast %362 : vector<2xf32> to vector<2x1xf32>
    %364 = tpu.reciprocal %363 {approx = true} : vector<2x1xf32> -> vector<2x1xf32>
    %365 = vector.broadcast %364 : vector<2x1xf32> to vector<2x8xf32>
    %366 = arith.mulf %361, %365 : vector<2x8xf32>
    %367 = vector.shape_cast %366 : vector<2x8xf32> to vector<2x8x1xf32>
    %368 = vector.broadcast %367 : vector<2x8x1xf32> to vector<2x8x32xf32>
    %369 = arith.mulf %1, %368 : vector<2x8x32xf32>
    %cst_182 = arith.constant dense<0.000000e+00> : vector<2x32xf32>
    %370 = vector.multi_reduction <add>, %369, %cst_182 [1] : vector<2x8x32xf32> to vector<2x32xf32>
    %c2_183 = arith.constant 2 : index
    %c0_184 = arith.constant 0 : index
    %c0_185 = arith.constant 0 : index
    %371 = vector.load %arg4[%c2_183, %c0_184, %c0_185] : memref<3x32x256xf32, #tpu.memory_space<vmem>>, vector<1x32x256xf32>
    %372 = vector.shape_cast %371 : vector<1x32x256xf32> to vector<32x256xf32>
    %cst_186 = arith.constant dense<0.000000e+00> : vector<2x256xf32>
    %373 = tpu.matmul %333, %372, %cst_186 {dimension_numbers = #tpu.dot_dimension_numbers<[1], [0], [0], [1], [0, 0, 1, 1], [], []>} : vector<2x32xf32>, vector<32x256xf32>, vector<2x256xf32> -> vector<2x256xf32>
    %c2_187 = arith.constant 2 : index
    %c0_188 = arith.constant 0 : index
    %c0_189 = arith.constant 0 : index
    %374 = vector.load %arg5[%c2_187, %c0_188, %c0_189] : memref<3x32x256xf32, #tpu.memory_space<vmem>>, vector<1x32x256xf32>
    %375 = vector.shape_cast %374 : vector<1x32x256xf32> to vector<32x256xf32>
    %cst_190 = arith.constant dense<0.000000e+00> : vector<2x256xf32>
    %376 = tpu.matmul %332, %375, %cst_190 {dimension_numbers = #tpu.dot_dimension_numbers<[1], [0], [0], [1], [0, 0, 1, 1], [], []>} : vector<2x32xf32>, vector<32x256xf32>, vector<2x256xf32> -> vector<2x256xf32>
    %377 = arith.addf %373, %376 : vector<2x256xf32>
    %c2_191 = arith.constant 2 : index
    %c0_192 = arith.constant 0 : index
    %c0_193 = arith.constant 0 : index
    %378 = vector.load %arg6[%c2_191, %c0_192, %c0_193] : memref<3x32x256xf32, #tpu.memory_space<vmem>>, vector<1x32x256xf32>
    %379 = vector.shape_cast %378 : vector<1x32x256xf32> to vector<32x256xf32>
    %cst_194 = arith.constant dense<0.000000e+00> : vector<2x256xf32>
    %380 = tpu.matmul %370, %379, %cst_194 {dimension_numbers = #tpu.dot_dimension_numbers<[1], [0], [0], [1], [0, 0, 1, 1], [], []>} : vector<2x32xf32>, vector<32x256xf32>, vector<2x256xf32> -> vector<2x256xf32>
    %381 = arith.addf %377, %380 : vector<2x256xf32>
    %c2_195 = arith.constant 2 : index
    %c0_196 = arith.constant 0 : index
    %c0_197 = arith.constant 0 : index
    %382 = vector.load %arg7[%c2_195, %c0_196, %c0_197] : memref<3x1x256xf32, #tpu.memory_space<vmem>>, vector<1x1x256xf32>
    %383 = vector.shape_cast %382 : vector<1x1x256xf32> to vector<1x256xf32>
    %384 = vector.broadcast %383 : vector<1x256xf32> to vector<2x256xf32>
    %385 = arith.addf %381, %384 : vector<2x256xf32>
    %386 = vector.extract_strided_slice %385 {offsets = [0, 0], sizes = [2, 192], strides = [1, 1]} : vector<2x256xf32> to vector<2x192xf32>
    %387 = arith.negf %386 : vector<2x192xf32>
    %388 = math.exp %387 : vector<2x192xf32>
    %cst_198 = arith.constant 1.000000e+00 : f32
    %389 = vector.broadcast %cst_198 : f32 to vector<2x192xf32>
    %390 = arith.addf %389, %388 : vector<2x192xf32>
    %391 = arith.divf %389, %390 : vector<2x192xf32>
    %392 = vector.extract_strided_slice %391 {offsets = [0, 0], sizes = [2, 64], strides = [1, 1]} : vector<2x192xf32> to vector<2x64xf32>
    %393 = vector.extract_strided_slice %391 {offsets = [0, 64], sizes = [2, 64], strides = [1, 1]} : vector<2x192xf32> to vector<2x64xf32>
    %394 = vector.extract_strided_slice %391 {offsets = [0, 128], sizes = [2, 64], strides = [1, 1]} : vector<2x192xf32> to vector<2x64xf32>
    %395 = vector.extract_strided_slice %385 {offsets = [0, 192], sizes = [2, 64], strides = [1, 1]} : vector<2x256xf32> to vector<2x64xf32>
    %396 = math.tanh %395 : vector<2x64xf32>
    %397 = vector.extract_strided_slice %393 {offsets = [0, 0], sizes = [2, 32], strides = [1, 1]} : vector<2x64xf32> to vector<2x32xf32>
    %398 = arith.mulf %397, %330 : vector<2x32xf32>
    %399 = vector.extract_strided_slice %392 {offsets = [0, 0], sizes = [2, 32], strides = [1, 1]} : vector<2x64xf32> to vector<2x32xf32>
    %400 = vector.extract_strided_slice %396 {offsets = [0, 0], sizes = [2, 32], strides = [1, 1]} : vector<2x64xf32> to vector<2x32xf32>
    %401 = arith.mulf %399, %400 : vector<2x32xf32>
    %402 = arith.addf %398, %401 : vector<2x32xf32>
    %403 = vector.extract_strided_slice %394 {offsets = [0, 0], sizes = [2, 32], strides = [1, 1]} : vector<2x64xf32> to vector<2x32xf32>
    %404 = math.tanh %402 : vector<2x32xf32>
    %405 = arith.mulf %403, %404 : vector<2x32xf32>
    %406 = vector.extract_strided_slice %393 {offsets = [0, 32], sizes = [2, 32], strides = [1, 1]} : vector<2x64xf32> to vector<2x32xf32>
    %407 = arith.mulf %406, %330 : vector<2x32xf32>
    %408 = vector.extract_strided_slice %392 {offsets = [0, 32], sizes = [2, 32], strides = [1, 1]} : vector<2x64xf32> to vector<2x32xf32>
    %409 = vector.extract_strided_slice %396 {offsets = [0, 32], sizes = [2, 32], strides = [1, 1]} : vector<2x64xf32> to vector<2x32xf32>
    %410 = arith.mulf %408, %409 : vector<2x32xf32>
    %411 = arith.addf %407, %410 : vector<2x32xf32>
    %412 = vector.extract_strided_slice %394 {offsets = [0, 32], sizes = [2, 32], strides = [1, 1]} : vector<2x64xf32> to vector<2x32xf32>
    %413 = math.tanh %411 : vector<2x32xf32>
    %414 = arith.mulf %412, %413 : vector<2x32xf32>
    %cst_199 = arith.constant 0.000000e+00 : f32
    %415 = vector.broadcast %cst_199 : f32 to vector<2x32xf32>
    %416 = arith.addf %415, %402 : vector<2x32xf32>
    %417 = arith.addf %416, %411 : vector<2x32xf32>
    %cst_200 = arith.constant 5.000000e-01 : f32
    %418 = vector.broadcast %cst_200 : f32 to vector<2x32xf32>
    %419 = arith.mulf %417, %418 : vector<2x32xf32>
    %cst_201 = arith.constant 0.000000e+00 : f32
    %420 = vector.broadcast %cst_201 : f32 to vector<2x32xf32>
    %421 = arith.addf %420, %405 : vector<2x32xf32>
    %422 = arith.addf %421, %414 : vector<2x32xf32>
    %cst_202 = arith.constant 5.000000e-01 : f32
    %423 = vector.broadcast %cst_202 : f32 to vector<2x32xf32>
    %424 = arith.mulf %422, %423 : vector<2x32xf32>
    %425 = vector.extract_strided_slice %7 {offsets = [0, 40], sizes = [16, 8], strides = [1, 1]} : vector<16x48xf32> to vector<16x8xf32>
    %426 = vector.shape_cast %425 : vector<16x8xf32> to vector<2x8x8xf32>
    %c5 = arith.constant 5 : index
    %c0_203 = arith.constant 0 : index
    %c0_204 = arith.constant 0 : index
    %427 = vector.load %arg10[%c5, %c0_203, %c0_204] : memref<6x32x8xf32, #tpu.memory_space<vmem>>, vector<1x32x8xf32>
    %428 = vector.shape_cast %427 : vector<1x32x8xf32> to vector<32x8xf32>
    %cst_205 = arith.constant dense<0.000000e+00> : vector<2x8xf32>
    %429 = tpu.matmul %424, %428, %cst_205 {dimension_numbers = #tpu.dot_dimension_numbers<[1], [0], [0], [1], [0, 0, 1, 1], [], []>} : vector<2x32xf32>, vector<32x8xf32>, vector<2x8xf32> -> vector<2x8xf32>
    %c5_206 = arith.constant 5 : index
    %c0_207 = arith.constant 0 : index
    %c0_208 = arith.constant 0 : index
    %430 = vector.load %arg11[%c5_206, %c0_207, %c0_208] : memref<6x1x8xf32, #tpu.memory_space<vmem>>, vector<1x1x8xf32>
    %431 = vector.shape_cast %430 : vector<1x1x8xf32> to vector<1x8xf32>
    %432 = vector.broadcast %431 : vector<1x8xf32> to vector<2x8xf32>
    %433 = arith.addf %429, %432 : vector<2x8xf32>
    %434 = vector.shape_cast %433 : vector<2x8xf32> to vector<2x8x1xf32>
    %435 = vector.broadcast %434 : vector<2x8x1xf32> to vector<2x8x8xf32>
    %436 = arith.addf %426, %435 : vector<2x8x8xf32>
    %437 = math.tanh %436 : vector<2x8x8xf32>
    %c5_209 = arith.constant 5 : index
    %c0_210 = arith.constant 0 : index
    %c0_211 = arith.constant 0 : index
    %438 = vector.load %arg12[%c5_209, %c0_210, %c0_211] : memref<6x1x8xf32, #tpu.memory_space<vmem>>, vector<1x1x8xf32>
    %439 = vector.shape_cast %438 : vector<1x1x8xf32> to vector<1x8xf32>
    %440 = vector.shape_cast %439 : vector<1x8xf32> to vector<1x1x8xf32>
    %441 = vector.broadcast %440 : vector<1x1x8xf32> to vector<2x8x8xf32>
    %442 = arith.mulf %437, %441 : vector<2x8x8xf32>
    %cst_212 = arith.constant dense<0.000000e+00> : vector<2x8xf32>
    %443 = vector.multi_reduction <add>, %442, %cst_212 [2] : vector<2x8x8xf32> to vector<2x8xf32>
    %c5_213 = arith.constant 5 : index
    %c0_214 = arith.constant 0 : index
    %c0_215 = arith.constant 0 : index
    %444 = vector.load %arg13[%c5_213, %c0_214, %c0_215] : memref<6x1x1xf32, #tpu.memory_space<vmem>>, vector<1x1x1xf32>
    %445 = vector.shape_cast %444 : vector<1x1x1xf32> to vector<1x1xf32>
    %446 = vector.broadcast %445 : vector<1x1xf32> to vector<2x8xf32>
    %447 = arith.addf %443, %446 : vector<2x8xf32>
    %cst_216 = arith.constant dense<0xFF800000> : vector<2xf32>
    %448 = vector.multi_reduction <maximumf>, %447, %cst_216 [1] : vector<2x8xf32> to vector<2xf32>
    %449 = vector.shape_cast %448 : vector<2xf32> to vector<2x1xf32>
    %450 = vector.broadcast %449 : vector<2x1xf32> to vector<2x8xf32>
    %451 = arith.subf %447, %450 : vector<2x8xf32>
    %452 = math.exp %451 : vector<2x8xf32>
    %cst_217 = arith.constant dense<0.000000e+00> : vector<2xf32>
    %453 = vector.multi_reduction <add>, %452, %cst_217 [1] : vector<2x8xf32> to vector<2xf32>
    %454 = vector.shape_cast %453 : vector<2xf32> to vector<2x1xf32>
    %455 = tpu.reciprocal %454 {approx = true} : vector<2x1xf32> -> vector<2x1xf32>
    %456 = vector.broadcast %455 : vector<2x1xf32> to vector<2x8xf32>
    %457 = arith.mulf %452, %456 : vector<2x8xf32>
    %458 = vector.shape_cast %457 : vector<2x8xf32> to vector<2x8x1xf32>
    %459 = vector.broadcast %458 : vector<2x8x1xf32> to vector<2x8x32xf32>
    %460 = arith.mulf %1, %459 : vector<2x8x32xf32>
    %cst_218 = arith.constant dense<0.000000e+00> : vector<2x32xf32>
    %461 = vector.multi_reduction <add>, %460, %cst_218 [1] : vector<2x8x32xf32> to vector<2x32xf32>
    %462 = arith.addf %461, %424 : vector<2x32xf32>
    %c2_219 = arith.constant 2 : index
    %c0_220 = arith.constant 0 : index
    %c0_221 = arith.constant 0 : index
    %463 = vector.load %arg14[%c2_219, %c0_220, %c0_221] : memref<3x32x16xf32, #tpu.memory_space<vmem>>, vector<1x32x16xf32>
    %464 = vector.shape_cast %463 : vector<1x32x16xf32> to vector<32x16xf32>
    %cst_222 = arith.constant dense<0.000000e+00> : vector<2x16xf32>
    %465 = tpu.matmul %462, %464, %cst_222 {dimension_numbers = #tpu.dot_dimension_numbers<[1], [0], [0], [1], [0, 0, 1, 1], [], []>} : vector<2x32xf32>, vector<32x16xf32>, vector<2x16xf32> -> vector<2x16xf32>
    %c2_223 = arith.constant 2 : index
    %c0_224 = arith.constant 0 : index
    %c0_225 = arith.constant 0 : index
    %466 = vector.load %arg15[%c2_223, %c0_224, %c0_225] : memref<3x1x16xf32, #tpu.memory_space<vmem>>, vector<1x1x16xf32>
    %467 = vector.shape_cast %466 : vector<1x1x16xf32> to vector<1x16xf32>
    %468 = vector.broadcast %467 : vector<1x16xf32> to vector<2x16xf32>
    %469 = arith.addf %465, %468 : vector<2x16xf32>
    %cst_226 = arith.constant dense<0xFF800000> : vector<2xf32>
    %470 = vector.multi_reduction <maximumf>, %469, %cst_226 [1] : vector<2x16xf32> to vector<2xf32>
    %471 = vector.shape_cast %470 : vector<2xf32> to vector<2x1xf32>
    %472 = vector.broadcast %471 : vector<2x1xf32> to vector<2x16xf32>
    %473 = arith.subf %469, %472 : vector<2x16xf32>
    %474 = math.exp %473 : vector<2x16xf32>
    %cst_227 = arith.constant dense<0.000000e+00> : vector<2xf32>
    %475 = vector.multi_reduction <add>, %474, %cst_227 [1] : vector<2x16xf32> to vector<2xf32>
    %476 = vector.shape_cast %475 : vector<2xf32> to vector<2x1xf32>
    %477 = math.log %476 : vector<2x1xf32>
    %478 = arith.addf %471, %477 : vector<2x1xf32>
    %c2_228 = arith.constant 2 : index
    %c0_229 = arith.constant 0 : index
    %c0_230 = arith.constant 0 : index
    %479 = vector.load %arg16[%c2_228, %c0_229, %c0_230] : memref<3x2x32xf32, #tpu.memory_space<vmem>>, vector<1x2x32xf32>
    %480 = vector.shape_cast %479 : vector<1x2x32xf32> to vector<2x32xf32>
    %481 = vector.shape_cast %419 : vector<2x32xf32> to vector<1x2x32xf32>
    tpu.vector_store %arg16[%c2_228, %c0_229, %c0_230], %481 {strides = array<i32>} : memref<3x2x32xf32, #tpu.memory_space<vmem>>, vector<1x2x32xf32>,
    %c2_231 = arith.constant 2 : index
    %c0_232 = arith.constant 0 : index
    %c0_233 = arith.constant 0 : index
    %482 = vector.load %arg17[%c2_231, %c0_232, %c0_233] : memref<3x2x32xf32, #tpu.memory_space<vmem>>, vector<1x2x32xf32>
    %483 = vector.shape_cast %482 : vector<1x2x32xf32> to vector<2x32xf32>
    %484 = vector.shape_cast %462 : vector<2x32xf32> to vector<1x2x32xf32>
    tpu.vector_store %arg17[%c2_231, %c0_232, %c0_233], %484 {strides = array<i32>} : memref<3x2x32xf32, #tpu.memory_space<vmem>>, vector<1x2x32xf32>,
    %485 = vector.broadcast %478 : vector<2x1xf32> to vector<2x16xf32>
    %486 = arith.subf %469, %485 : vector<2x16xf32>
    %c2_234 = arith.constant 2 : index
    %c0_235 = arith.constant 0 : index
    %c0_236 = arith.constant 0 : index
    %487 = vector.load %arg18[%c2_234, %c0_235, %c0_236] : memref<3x2x16xf32, #tpu.memory_space<vmem>>, vector<1x2x16xf32>
    %488 = vector.shape_cast %487 : vector<1x2x16xf32> to vector<2x16xf32>
    %489 = vector.shape_cast %486 : vector<2x16xf32> to vector<1x2x16xf32>
    tpu.vector_store %arg18[%c2_234, %c0_235, %c0_236], %489 {strides = array<i32>} : memref<3x2x16xf32, #tpu.memory_space<vmem>>, vector<1x2x16xf32>,
    return
  }
}

</mosaic_0001>

<llo_original>
// kernel: forward.1
$region0: #{forward.1}
  #allocation0 [shape = 'u32[]', space=smem, size = 0x4, offset = 0x4, fixed_abs, tag = 'smem constant byte address 0x4 - core index']
  #allocation1 [shape = 'u32[144,128]{1,0:T(1,128)}', space=vmem, size = 0x12000, scoped, tag = 'internal scratch']
  %s0 = inlined_call_operand.hbm [shape: f32[2,32], index: 0, kind: input, shape index: {}]
  %s1 = inlined_call_operand.vmem [shape: f32[2,8,32], index: 1, kind: input, shape index: {}]
  %s2 = inlined_call_operand.vmem [shape: f32[3,2,32], index: 2, kind: input, shape index: {}]
  %s3 = inlined_call_operand.vmem [shape: f32[3,2,32], index: 3, kind: input, shape index: {}]
  %s4 = inlined_call_operand.vmem [shape: f32[3,32,256], index: 4, kind: input, shape index: {}]
  %s5 = inlined_call_operand.vmem [shape: f32[3,32,256], index: 5, kind: input, shape index: {}]
  %s6 = inlined_call_operand.hbm [shape: f32[3,32,256], index: 6, kind: input, shape index: {}]
  %s7 = inlined_call_operand.hbm [shape: f32[3,1,256], index: 7, kind: input, shape index: {}]
  %s8 = inlined_call_operand.vmem [shape: f32[32,48], index: 8, kind: input, shape index: {}]
  %s9 = inlined_call_operand.hbm [shape: f32[1,48], index: 9, kind: input, shape index: {}]
  %s10 = inlined_call_operand.vmem [shape: f32[6,32,8], index: 10, kind: input, shape index: {}]
  %s11 = inlined_call_operand.hbm [shape: f32[6,1,8], index: 11, kind: input, shape index: {}]
  %s12 = inlined_call_operand.hbm [shape: f32[6,1,8], index: 12, kind: input, shape index: {}]
  %s13 = inlined_call_operand.vmem [shape: f32[6,1,1], index: 13, kind: input, shape index: {}]
  %s14 = inlined_call_operand.vmem [shape: f32[3,32,16], index: 14, kind: input, shape index: {}]
  %s15 = inlined_call_operand.vmem [shape: f32[3,1,16], index: 15, kind: input, shape index: {}]
  %s16 = inlined_call_operand.vmem [shape: f32[3,2,32], index: 16, kind: output, shape index: {0}]
  %s17 = inlined_call_operand.vmem [shape: f32[3,2,32], index: 17, kind: output, shape index: {1}]
  %s18 = inlined_call_operand.vmem [shape: f32[3,2,16], index: 18, kind: output, shape index: {2}]
  %19 = xla_tuple %s16, %s17, %s18
  %s20 = sld [smem:[#allocation0]]
  $region114: #{forward.1} parent=0
    _
  %s22 = ssub.s32 1, %s20
  %s23 = scalar_select 0, %s22, %s20
  $region1: #{forward.1} parent=0
    #allocation2 [shape = 'u8[1024]{0}', space=vmem, size = 0x400, scoped, tag = 'input window, operand 0, single buffered']
    #allocation3 [shape = 's32[1]{0}', space=sflag, size = 0x4, scoped, tag = 'scoped memory for forward.1']
    #allocation4 [shape = 'u8[98304]{0}', space=vmem, size = 0x18000, scoped, tag = 'input window, operand 6, single buffered']
    #allocation5 [shape = 's32[1]{0}', space=sflag, size = 0x4, scoped, tag = 'scoped memory for forward.1']
    #allocation6 [shape = 'u8[3072]{0}', space=vmem, size = 0xc00, scoped, tag = 'input window, operand 7, single buffered']
    #allocation7 [shape = 'u8[512]{0}', space=vmem, size = 0x400, scoped, tag = 'input window, operand 9, single buffered']
    #allocation8 [shape = 's32[1]{0}', space=sflag, size = 0x4, scoped, tag = 'scoped memory for forward.1']
    #allocation9 [shape = 'u8[3072]{0}', space=vmem, size = 0xc00, scoped, tag = 'input window, operand 11, single buffered']
    #allocation10 [shape = 'u8[3072]{0}', space=vmem, size = 0xc00, scoped, tag = 'input window, operand 12, single buffered']
    #allocation11 [shape = 's32[1]{0}', space=sflag, size = 0x4, scoped, tag = 'scoped memory for forward.1']
    %24 = vsyncpa [#allocation3], 0
    %25 = vsyncpa [#allocation5], 0
    %26 = vsyncpa [#allocation8], 0
    %27 = vsyncpa [#allocation11], 0
    // Predicated region
    $region2: #{forward.1} parent=1 // pred_check
      _
    $region3: #{forward.1} parent=1 // pred_check_branch
      %29 = sbr.rel (0) target = $region5
    $region4: #{forward.1} parent=1 // pred_region
      %s31 = ssub.s32 32, 32
      %32 = vsyncadd [#allocation3], %s31
      %s34 = sshll.u32 [#allocation2], 4
      %s35 = int_to_ptr.vmem [resolvable:$true] %s34
      %37 = dma.hbm_to_vmem [thread:$0]  %s0, 32, %s35, [#allocation3]
    $region5: #{forward.1} parent=1 // pred_fallthru
      _
    // Predicated region
    $region6: #{forward.1} parent=1 // pred_check
      _
    $region7: #{forward.1} parent=1 // pred_check_branch
      %39 = sbr.rel (0) target = $region9
    $region8: #{forward.1} parent=1 // pred_region
      _
    $region9: #{forward.1} parent=1 // pred_fallthru
      _
    // Predicated region
    $region10: #{forward.1} parent=1 // pred_check
      _
    $region11: #{forward.1} parent=1 // pred_check_branch
      %41 = sbr.rel (0) target = $region13
    $region12: #{forward.1} parent=1 // pred_region
      _
    $region13: #{forward.1} parent=1 // pred_fallthru
      _
    // Predicated region
    $region14: #{forward.1} parent=1 // pred_check
      _
    $region15: #{forward.1} parent=1 // pred_check_branch
      %43 = sbr.rel (0) target = $region17
    $region16: #{forward.1} parent=1 // pred_region
      _
    $region17: #{forward.1} parent=1 // pred_fallthru
      _
    // Predicated region
    $region18: #{forward.1} parent=1 // pred_check
      _
    $region19: #{forward.1} parent=1 // pred_check_branch
      %45 = sbr.rel (0) target = $region21
    $region20: #{forward.1} parent=1 // pred_region
      _
    $region21: #{forward.1} parent=1 // pred_fallthru
      _
    // Predicated region
    $region22: #{forward.1} parent=1 // pred_check
      _
    $region23: #{forward.1} parent=1 // pred_check_branch
      %47 = sbr.rel (0) target = $region25
    $region24: #{forward.1} parent=1 // pred_region
      _
    $region25: #{forward.1} parent=1 // pred_fallthru
      _
    // Predicated region
    $region26: #{forward.1} parent=1 // pred_check
      _
    $region27: #{forward.1} parent=1 // pred_check_branch
      %49 = sbr.rel (0) target = $region29
    $region28: #{forward.1} parent=1 // pred_region
      %s51 = ssub.s32 3072, 3072
      %52 = vsyncadd [#allocation5], %s51
      %s53 = sshll.u32 [#allocation4], 4
      %s54 = int_to_ptr.vmem [resolvable:$true] %s53
      %59 = dma.hbm_to_vmem [thread:$0]  %s6, 3072, %s54, [#allocation5], 256, 256, 16
    $region29: #{forward.1} parent=1 // pred_fallthru
      _
    // Predicated region
    $region30: #{forward.1} parent=1 // pred_check
      _
    $region31: #{forward.1} parent=1 // pred_check_branch
      %61 = sbr.rel (0) target = $region33
    $region32: #{forward.1} parent=1 // pred_region
      %s63 = ssub.s32 96, 96
      %64 = vsyncadd [#allocation5], %s63
      %s65 = sshll.u32 [#allocation6], 4
      %s66 = int_to_ptr.vmem [resolvable:$true] %s65
      %71 = dma.hbm_to_vmem [thread:$0]  %s7, 96, %s66, [#allocation5], 32, 32, 2
    $region33: #{forward.1} parent=1 // pred_fallthru
      _
    // Predicated region
    $region34: #{forward.1} parent=1 // pred_check
      _
    $region35: #{forward.1} parent=1 // pred_check_branch
      %73 = sbr.rel (0) target = $region37
    $region36: #{forward.1} parent=1 // pred_region
      _
    $region37: #{forward.1} parent=1 // pred_fallthru
      _
    // Predicated region
    $region38: #{forward.1} parent=1 // pred_check
      _
    $region39: #{forward.1} parent=1 // pred_check_branch
      %75 = sbr.rel (0) target = $region41
    $region40: #{forward.1} parent=1 // pred_region
      %s77 = ssub.s32 16, 16
      %78 = vsyncadd [#allocation8], %s77
      %s80 = sshll.u32 [#allocation7], 4
      %s81 = int_to_ptr.vmem [resolvable:$true] %s80
      %83 = dma.hbm_to_vmem [thread:$0]  %s9, 16, %s81, [#allocation8]
    $region41: #{forward.1} parent=1 // pred_fallthru
      _
    // Predicated region
    $region42: #{forward.1} parent=1 // pred_check
      _
    $region43: #{forward.1} parent=1 // pred_check_branch
      %85 = sbr.rel (0) target = $region45
    $region44: #{forward.1} parent=1 // pred_region
      _
    $region45: #{forward.1} parent=1 // pred_fallthru
      _
    // Predicated region
    $region46: #{forward.1} parent=1 // pred_check
      _
    $region47: #{forward.1} parent=1 // pred_check_branch
      %87 = sbr.rel (0) target = $region49
    $region48: #{forward.1} parent=1 // pred_region
      %s89 = ssub.s32 96, 96
      %90 = vsyncadd [#allocation8], %s89
      %s91 = sshll.u32 [#allocation9], 4
      %s92 = int_to_ptr.vmem [resolvable:$true] %s91
      %97 = dma.hbm_to_vmem [thread:$0]  %s11, 96, %s92, [#allocation8], 16, 16, 1
    $region49: #{forward.1} parent=1 // pred_fallthru
      _
    // Predicated region
    $region50: #{forward.1} parent=1 // pred_check
      _
    $region51: #{forward.1} parent=1 // pred_check_branch
      %99 = sbr.rel (0) target = $region53
    $region52: #{forward.1} parent=1 // pred_region
      %s101 = ssub.s32 96, 96
      %102 = vsyncadd [#allocation11], %s101
      %s103 = sshll.u32 [#allocation10], 4
      %s104 = int_to_ptr.vmem [resolvable:$true] %s103
      %109 = dma.hbm_to_vmem [thread:$0]  %s12, 96, %s104, [#allocation11], 16, 16, 1
    $region53: #{forward.1} parent=1 // pred_fallthru
      _
    // Predicated region
    $region54: #{forward.1} parent=1 // pred_check
      _
    $region55: #{forward.1} parent=1 // pred_check_branch
      %111 = sbr.rel (0) target = $region57
    $region56: #{forward.1} parent=1 // pred_region
      _
    $region57: #{forward.1} parent=1 // pred_fallthru
      _
    // Predicated region
    $region58: #{forward.1} parent=1 // pred_check
      _
    $region59: #{forward.1} parent=1 // pred_check_branch
      %113 = sbr.rel (0) target = $region61
    $region60: #{forward.1} parent=1 // pred_region
      _
    $region61: #{forward.1} parent=1 // pred_fallthru
      _
    // Predicated region
    $region62: #{forward.1} parent=1 // pred_check
      _
    $region63: #{forward.1} parent=1 // pred_check_branch
      %115 = sbr.rel (0) target = $region65
    $region64: #{forward.1} parent=1 // pred_region
      _
    $region65: #{forward.1} parent=1 // pred_fallthru
      _
    // Predicated region
    $region66: #{forward.1} parent=1 // pred_check
      _
    $region67: #{forward.1} parent=1 // pred_check_branch
      %117 = sbr.rel (0) target = $region69
    $region68: #{forward.1} parent=1 // pred_region
      %118 = dma.done [#allocation3], 32
    $region69: #{forward.1} parent=1 // pred_fallthru
      _
    // Predicated region
    $region70: #{forward.1} parent=1 // pred_check
      _
    $region71: #{forward.1} parent=1 // pred_check_branch
      %120 = sbr.rel (0) target = $region73
    $region72: #{forward.1} parent=1 // pred_region
      %121 = dma.done [#allocation5], 3072
    $region73: #{forward.1} parent=1 // pred_fallthru
      _
    // Predicated region
    $region74: #{forward.1} parent=1 // pred_check
      _
    $region75: #{forward.1} parent=1 // pred_check_branch
      %123 = sbr.rel (0) target = $region77
    $region76: #{forward.1} parent=1 // pred_region
      %124 = dma.done [#allocation5], 96
    $region77: #{forward.1} parent=1 // pred_fallthru
      _
    // Predicated region
    $region78: #{forward.1} parent=1 // pred_check
      _
    $region79: #{forward.1} parent=1 // pred_check_branch
      %126 = sbr.rel (0) target = $region81
    $region80: #{forward.1} parent=1 // pred_region
      %127 = dma.done [#allocation8], 16
    $region81: #{forward.1} parent=1 // pred_fallthru
      _
    // Predicated region
    $region82: #{forward.1} parent=1 // pred_check
      _
    $region83: #{forward.1} parent=1 // pred_check_branch
      %129 = sbr.rel (0) target = $region85
    $region84: #{forward.1} parent=1 // pred_region
      %130 = dma.done [#allocation8], 96
    $region85: #{forward.1} parent=1 // pred_fallthru
      _
    // Predicated region
    $region86: #{forward.1} parent=1 // pred_check
      _
    $region87: #{forward.1} parent=1 // pred_check_branch
      %132 = sbr.rel (0) target = $region89
    $region88: #{forward.1} parent=1 // pred_region
      %133 = dma.done [#allocation11], 96
    $region89: #{forward.1} parent=1 // pred_fallthru
      _
    %v134 = vld [vmem:[#allocation2] sm:$0x3]
    %v135 = vld [vmem:[%s1] sm:$0xff]
    %v136 = vld [vmem:[%s1 + $0x8] sm:$0xff]
    %v137 = vld [vmem:[%s8] sm:$0xff]
    %v138 = vld [vmem:[%s8 + $0x8] sm:$0xff]
    %v139 = vld [vmem:[%s8 + $0x10] sm:$0xff]
    %v140 = vld [vmem:[%s8 + $0x18] sm:$0xff]
    %v141 = vld [vmem:[#allocation7] sm:$0x1]
    %v143 = vlaneseq
    %v144 = vshrl.u32 %v143, 7
    %v145 = vsub.s32 0, %v144
    %v146 = vrot.slane %v141, %v145
    %vm148 = vcmask 261120
    %v150 = vsel %vm148, %v135, 0
    %v153 = vsel %vm148, %v136, 0
    %155 = vmatprep.subr.mxu0 0.0
    %156 = vmatpush1.msra.mxu0 %v137
    %157 = vmatprep.subr.mxu0 0.0
    %158 = vmatpush1.msra.mxu0 %v138
    %159 = vmatprep.subr.mxu0 0.0
    %160 = vmatpush1.msra.mxu0 %v139
    %161 = vmatprep.subr.mxu0 0.0
    %162 = vmatpush1.msra.mxu0 %v140
    %163 = vmatprep.subr.mxu0 0.0
    %164 = vmatpush1.msra.mxu0 0.0
    %165 = vmatprep.subr.mxu0 0.0
    %166 = vmatpush1.msra.mxu0 0.0
    %167 = vmatprep.subr.mxu0 0.0
    %168 = vmatpush1.msra.mxu0 0.0
    %169 = vmatprep.subr.mxu0 0.0
    %170 = vmatpush1.msra.mxu0 0.0
    %171 = vmatprep.subr.mxu0 0.0
    %172 = vmatpush1.msra.mxu0 0.0
    %173 = vmatprep.subr.mxu0 0.0
    %174 = vmatpush1.msra.mxu0 0.0
    %175 = vmatprep.subr.mxu0 0.0
    %176 = vmatpush1.msra.mxu0 0.0
    %177 = vmatprep.subr.mxu0 0.0
    %178 = vmatpush1.msra.mxu0 0.0
    %179 = vmatprep.subr.mxu0 0.0
    %180 = vmatpush1.msra.mxu0 0.0
    %181 = vmatprep.subr.mxu0 0.0
    %182 = vmatpush1.msra.mxu0 0.0
    %183 = vmatprep.subr.mxu0 0.0
    %184 = vmatpush1.msra.mxu0 0.0
    %185 = vmatprep.subr.mxu0 0.0
    %186 = vmatpush1.msra.mxu0 0.0
    %187 = vmatprep.subr.mxu0 0.0
    %188 = vmatpush1.msra.mxu0 0.0
    %189 = vmatprep.subr.mxu0 0.0
    %190 = vmatpush1.msra.mxu0 0.0
    %191 = vmatprep.subr.mxu0 0.0
    %192 = vmatpush1.msra.mxu0 0.0
    %193 = vmatprep.subr.mxu0 0.0
    %194 = vmatpush1.msra.mxu0 0.0
    %195 = vmatprep.subr.mxu0 0.0
    %196 = vmatpush1.msra.mxu0 0.0
    %197 = vmatprep.subr.mxu0 0.0
    %198 = vmatpush1.msra.mxu0 0.0
    %199 = vmatprep.subr.mxu0 0.0
    %200 = vmatpush1.msra.mxu0 0.0
    %201 = vmatprep.subr.mxu0 0.0
    %202 = vmatpush1.msra.mxu0 0.0
    %203 = vmatprep.subr.mxu0 0.0
    %204 = vmatpush1.msra.mxu0 0.0
    %205 = vmatprep.subr.mxu0 0.0
    %206 = vmatpush1.msra.mxu0 0.0
    %207 = vmatprep.subr.mxu0 0.0
    %208 = vmatpush1.msra.mxu0 0.0
    %209 = vmatprep.subr.mxu0 0.0
    %210 = vmatpush1.msra.mxu0 0.0
    %211 = vmatprep.subr.mxu0 0.0
    %212 = vmatpush1.msra.mxu0 0.0
    %213 = vmatprep.subr.mxu0 0.0
    %214 = vmatpush1.msra.mxu0 0.0
    %215 = vmatprep.subr.mxu0 0.0
    %216 = vmatpush1.msra.mxu0 0.0
    %217 = vmatprep.subr.mxu0 0.0
    %218 = vmatpush1.msra.mxu0 0.0
    %219 = vmatprep.mubr.f32.mxu0 0.0
    %220 = vmatmul.mubr.f32.gmra.mrb[0].mxu0 %v150
    %v221 = vpop.f32.mrb[0].mxu0
    %v222 = vadd.f32 %v146, %v221
    %v223 = vpop.f32.mrb[0].mxu0
    %224 = vmatprep.mubr.f32.mxu0 0.0
    %225 = vmatmul.mubr.f32.gmra.mrb[0].mxu0 %v153
    %v226 = vpop.f32.mrb[0].mxu0
    %v227 = vadd.f32 %v146, %v226
    %v228 = vpop.f32.mrb[0].mxu0
    %229 = vdwg.mxu0
    %v230 = vld [vmem:[%s2] sm:$0x3]
    %v231 = vld [vmem:[%s3] sm:$0x3]
    %v232 = vld [vmem:[%s10] sm:$0xff]
    %v233 = vld [vmem:[%s10 + $0x8] sm:$0xff]
    %v234 = vld [vmem:[%s10 + $0x10] sm:$0xff]
    %v235 = vld [vmem:[%s10 + $0x18] sm:$0xff]
    %v236 = vld [vmem:[#allocation9] sm:$0x1]
    %v238 = vlaneseq
    %v239 = vshrl.u32 %v238, 7
    %v240 = vsub.s32 0, %v239
    %v241 = vrot.slane %v236, %v240
    %v244 = vsel %vm148, %v231, 0
    %246 = vmatprep.subr.mxu0 0.0
    %247 = vmatpush1.msra.mxu0 %v232
    %248 = vmatprep.subr.mxu0 0.0
    %249 = vmatpush1.msra.mxu0 %v233
    %250 = vmatprep.subr.mxu0 0.0
    %251 = vmatpush1.msra.mxu0 %v234
    %252 = vmatprep.subr.mxu0 0.0
    %253 = vmatpush1.msra.mxu0 %v235
    %254 = vmatprep.subr.mxu0 0.0
    %255 = vmatpush1.msra.mxu0 0.0
    %256 = vmatprep.subr.mxu0 0.0
    %257 = vmatpush1.msra.mxu0 0.0
    %258 = vmatprep.subr.mxu0 0.0
    %259 = vmatpush1.msra.mxu0 0.0
    %260 = vmatprep.subr.mxu0 0.0
    %261 = vmatpush1.msra.mxu0 0.0
    %262 = vmatprep.subr.mxu0 0.0
    %263 = vmatpush1.msra.mxu0 0.0
    %264 = vmatprep.subr.mxu0 0.0
    %265 = vmatpush1.msra.mxu0 0.0
    %266 = vmatprep.subr.mxu0 0.0
    %267 = vmatpush1.msra.mxu0 0.0
    %268 = vmatprep.subr.mxu0 0.0
    %269 = vmatpush1.msra.mxu0 0.0
    %270 = vmatprep.subr.mxu0 0.0
    %271 = vmatpush1.msra.mxu0 0.0
    %272 = vmatprep.subr.mxu0 0.0
    %273 = vmatpush1.msra.mxu0 0.0
    %274 = vmatprep.subr.mxu0 0.0
    %275 = vmatpush1.msra.mxu0 0.0
    %276 = vmatprep.subr.mxu0 0.0
    %277 = vmatpush1.msra.mxu0 0.0
    %278 = vmatprep.subr.mxu0 0.0
    %279 = vmatpush1.msra.mxu0 0.0
    %280 = vmatprep.subr.mxu0 0.0
    %281 = vmatpush1.msra.mxu0 0.0
    %282 = vmatprep.subr.mxu0 0.0
    %283 = vmatpush1.msra.mxu0 0.0
    %284 = vmatprep.subr.mxu0 0.0
    %285 = vmatpush1.msra.mxu0 0.0
    %286 = vmatprep.subr.mxu0 0.0
    %287 = vmatpush1.msra.mxu0 0.0
    %288 = vmatprep.subr.mxu0 0.0
    %289 = vmatpush1.msra.mxu0 0.0
    %290 = vmatprep.subr.mxu0 0.0
    %291 = vmatpush1.msra.mxu0 0.0
    %292 = vmatprep.subr.mxu0 0.0
    %293 = vmatpush1.msra.mxu0 0.0
    %294 = vmatprep.subr.mxu0 0.0
    %295 = vmatpush1.msra.mxu0 0.0
    %296 = vmatprep.subr.mxu0 0.0
    %297 = vmatpush1.msra.mxu0 0.0
    %298 = vmatprep.subr.mxu0 0.0
    %299 = vmatpush1.msra.mxu0 0.0
    %300 = vmatprep.subr.mxu0 0.0
    %301 = vmatpush1.msra.mxu0 0.0
    %302 = vmatprep.subr.mxu0 0.0
    %303 = vmatpush1.msra.mxu0 0.0
    %304 = vmatprep.subr.mxu0 0.0
    %305 = vmatpush1.msra.mxu0 0.0
    %306 = vmatprep.subr.mxu0 0.0
    %307 = vmatpush1.msra.mxu0 0.0
    %308 = vmatprep.subr.mxu0 0.0
    %309 = vmatpush1.msra.mxu0 0.0
    %310 = vmatprep.mubr.f32.mxu0 0.0
    %311 = vmatmul.mubr.f32.gmra.mrb[0].mxu0 %v244
    %v312 = vpop.f32.mrb[0].mxu0
    %v313 = vadd.f32 %v241, %v312
    %v314 = vpop.f32.mrb[0].mxu0
    %315 = vdwg.mxu0
    %v316 = vlaneseq
    %v317 = vshrl.u32 %v316, 7
    %v318 = vsub.s32 0, %v317
    %v319 = vrot.slane %v313, %v318
    %321 = vbcast.lane.b32.xlu0 %v319, 256
    %v322 = vpop.permute.xlu0 %321
    %v323 = vlaneseq
    %v324 = vshrl.u32 %v323, 7
    %v325 = vsub.s32 1, %v324
    %v326 = vrot.slane %v313, %v325
    %328 = vbcast.lane.b32.xlu0 %v326, 256
    %v329 = vpop.permute.xlu0 %328
    %v330 = vadd.f32 %v222, %v322
    %v331 = vadd.f32 %v227, %v329
    %v332 = vtanh.pop %v330
    %v333 = vtanh.pop %v331
    %v334 = vld [vmem:[#allocation10] sm:$0x1]
    %v336 = vlaneseq
    %v337 = vshrl.u32 %v336, 7
    %v338 = vsub.s32 0, %v337
    %v339 = vrot.slane %v334, %v338
    %v341 = vmul.f32 %v332, %v339
    %v342 = vmul.f32 %v333, %v339
    %vm343 = vcmask 64512
    %v344 = vsel %vm343, %v341, 0.0
    %345 = vadd.xlane.f32.xlu0 %v344
    %v346 = vpop.xlane.xlu0 %345
    %v347 = vsel %vm343, %v342, 0.0
    %348 = vadd.xlane.f32.xlu0 %v347
    %v349 = vpop.xlane.xlu0 %348
    %v350 = vld [vmem:[%s13] sm:$0x1]
    %v352 = vlaneseq
    %v353 = vshrl.u32 %v352, 7
    %v354 = vsub.s32 0, %v353
    %v355 = vrot.slane %v350, %v354
    %356 = vset.pattern.permute.xlu0 0
    %357 = vperm.xlu0 %356, %v355
    %v358 = vpop.permute.xlu0 %357
    %v360 = vadd.f32 %v346, %v358
    %v361 = vadd.f32 %v349, %v358
    %v364 = vlaneseq
    %v365 = vand.u32 %v364, 127
    %v366 = vlaneseq
    %v367 = vshrl.u32 %v366, 7
    %v368 = vsub.s32 %v365, %v367
    %v369 = vrot.slane %v360, %v368
    %v370 = vlaneseq
    %v371 = vshrl.u32 %v370, 7
    %v372 = vsub.s32 %v365, %v371
    %v373 = vrot.slane %v361, %v372
    %vm374 = vcmask 1041409
    %v375 = vsel %vm374, %v373, %v369
    %vm377 = vcmask 58368
    %v378 = vsel %vm377, %v375, -inf
    %379 = vmax.xlane.f32.xlu0 %v378
    %v380 = vpop.xlane.xlu0 %379
    %v382 = vlaneseq
    %v383 = vshrl.u32 %v382, 7
    %v384 = vsub.s32 0, %v383
    %v385 = vrot.slane %v380, %v384
    %v386 = vlaneseq
    %v387 = vshrl.u32 %v386, 7
    %v388 = vsub.s32 1, %v387
    %v389 = vrot.slane %v380, %v388
    %v392 = vsub.f32 %v360, %v385
    %v393 = vsub.f32 %v361, %v389
    %v394 = vmul.f32 %v392, 1.442695
    %v395 = vpow.pop %v394
    %v396 = vmul.f32 %v393, 1.442695
    %v397 = vpow.pop %v396
    %400 = vset.pattern.permute.xlu0 0
    %401 = vperm.xlu0 %400, %v395
    %v402 = vpop.permute.xlu0 %401
    %403 = vset.pattern.permute.xlu0 0
    %404 = vperm.xlu0 %403, %v397
    %v405 = vpop.permute.xlu0 %404
    %v406 = vlaneseq
    %v407 = vshrl.u32 %v406, 7
    %v408 = vsub.s32 %v365, %v407
    %v409 = vrot.slane %v402, %v408
    %v410 = vlaneseq
    %v411 = vshrl.u32 %v410, 7
    %v412 = vsub.s32 %v365, %v411
    %v413 = vrot.slane %v405, %v412
    %v414 = vsel %vm374, %v413, %v409
    %v416 = vsel %vm377, %v414, 0.0
    %417 = vadd.xlane.f32.xlu0 %v416
    %v418 = vpop.xlane.xlu0 %417
    %v419 = vrcp.pop %v418
    %v421 = vlaneseq
    %v422 = vshrl.u32 %v421, 7
    %v423 = vsub.s32 0, %v422
    %v424 = vrot.slane %v419, %v423
    %v425 = vlaneseq
    %v426 = vshrl.u32 %v425, 7
    %v427 = vsub.s32 1, %v426
    %v428 = vrot.slane %v419, %v427
    %v431 = vmul.f32 %v395, %v424
    %v432 = vmul.f32 %v397, %v428
    %434 = vset.pattern.permute.xlu0 0
    %435 = vperm.xlu0 %434, %v431
    %v436 = vpop.permute.xlu0 %435
    %439 = vset.pattern.permute.xlu0 0
    %440 = vperm.xlu0 %439, %v432
    %v441 = vpop.permute.xlu0 %440
    %v443 = vmul.f32 %v135, %v436
    %v444 = vmul.f32 %v136, %v441
    %v445 = vsel %vm148, %v443, 0.0
    %v446 = vrot.slane %v445, 4
    %v447 = vadd.f32 %v445, %v446
    %v448 = vrot.slane %v447, 2
    %v449 = vadd.f32 %v447, %v448
    %v450 = vrot.slane %v449, 1
    %v451 = vadd.f32 %v449, %v450
    %v452 = vsel %vm148, %v444, 0.0
    %v453 = vrot.slane %v452, 4
    %v454 = vadd.f32 %v452, %v453
    %v455 = vrot.slane %v454, 2
    %v456 = vadd.f32 %v454, %v455
    %v457 = vrot.slane %v456, 1
    %v458 = vadd.f32 %v456, %v457
    %v459 = vld [vmem:[%s4] sm:$0xff]
    %v460 = vld [vmem:[%s4 + $0x8] sm:$0xff]
    %v461 = vld [vmem:[%s4 + $0x10] sm:$0xff]
    %v462 = vld [vmem:[%s4 + $0x18] sm:$0xff]
    %v463 = vld [vmem:[%s4 + $0x20] sm:$0xff]
    %v464 = vld [vmem:[%s4 + $0x28] sm:$0xff]
    %v465 = vld [vmem:[%s4 + $0x30] sm:$0xff]
    %v466 = vld [vmem:[%s4 + $0x38] sm:$0xff]
    %v467 = vld [vmem:[%s5] sm:$0xff]
    %v468 = vld [vmem:[%s5 + $0x8] sm:$0xff]
    %v469 = vld [vmem:[%s5 + $0x10] sm:$0xff]
    %v470 = vld [vmem:[%s5 + $0x18] sm:$0xff]
    %v471 = vld [vmem:[%s5 + $0x20] sm:$0xff]
    %v472 = vld [vmem:[%s5 + $0x28] sm:$0xff]
    %v473 = vld [vmem:[%s5 + $0x30] sm:$0xff]
    %v474 = vld [vmem:[%s5 + $0x38] sm:$0xff]
    %475 = vmatprep.subr.mxu0 %v468
    %476 = vmatpush1.msra.mxu0 %v467
    %477 = vmatprep.subr.mxu0 %v470
    %478 = vmatpush1.msra.mxu0 %v469
    %479 = vmatprep.subr.mxu0 %v472
    %480 = vmatpush1.msra.mxu0 %v471
    %481 = vmatprep.subr.mxu0 %v474
    %482 = vmatpush1.msra.mxu0 %v473
    %483 = vmatprep.subr.mxu0 0.0
    %484 = vmatpush1.msra.mxu0 0.0
    %485 = vmatprep.subr.mxu0 0.0
    %486 = vmatpush1.msra.mxu0 0.0
    %487 = vmatprep.subr.mxu0 0.0
    %488 = vmatpush1.msra.mxu0 0.0
    %489 = vmatprep.subr.mxu0 0.0
    %490 = vmatpush1.msra.mxu0 0.0
    %491 = vmatprep.subr.mxu0 0.0
    %492 = vmatpush1.msra.mxu0 0.0
    %493 = vmatprep.subr.mxu0 0.0
    %494 = vmatpush1.msra.mxu0 0.0
    %495 = vmatprep.subr.mxu0 0.0
    %496 = vmatpush1.msra.mxu0 0.0
    %497 = vmatprep.subr.mxu0 0.0
    %498 = vmatpush1.msra.mxu0 0.0
    %499 = vmatprep.subr.mxu0 0.0
    %500 = vmatpush1.msra.mxu0 0.0
    %501 = vmatprep.subr.mxu0 0.0
    %502 = vmatpush1.msra.mxu0 0.0
    %503 = vmatprep.subr.mxu0 0.0
    %504 = vmatpush1.msra.mxu0 0.0
    %505 = vmatprep.subr.mxu0 0.0
    %506 = vmatpush1.msra.mxu0 0.0
    %507 = vmatprep.subr.mxu0 0.0
    %508 = vmatpush1.msra.mxu0 0.0
    %509 = vmatprep.subr.mxu0 0.0
    %510 = vmatpush1.msra.mxu0 0.0
    %511 = vmatprep.subr.mxu0 0.0
    %512 = vmatpush1.msra.mxu0 0.0
    %513 = vmatprep.subr.mxu0 0.0
    %514 = vmatpush1.msra.mxu0 0.0
    %515 = vmatprep.subr.mxu0 0.0
    %516 = vmatpush1.msra.mxu0 0.0
    %517 = vmatprep.subr.mxu0 0.0
    %518 = vmatpush1.msra.mxu0 0.0
    %519 = vmatprep.subr.mxu0 0.0
    %520 = vmatpush1.msra.mxu0 0.0
    %521 = vmatprep.subr.mxu0 0.0
    %522 = vmatpush1.msra.mxu0 0.0
    %523 = vmatprep.subr.mxu0 0.0
    %524 = vmatpush1.msra.mxu0 0.0
    %525 = vmatprep.subr.mxu0 0.0
    %526 = vmatpush1.msra.mxu0 0.0
    %527 = vmatprep.subr.mxu0 0.0
    %528 = vmatpush1.msra.mxu0 0.0
    %529 = vmatprep.subr.mxu0 0.0
    %530 = vmatpush1.msra.mxu0 0.0
    %531 = vmatprep.subr.mxu0 0.0
    %532 = vmatpush1.msra.mxu0 0.0
    %533 = vmatprep.subr.mxu0 0.0
    %534 = vmatpush1.msra.mxu0 0.0
    %535 = vmatprep.subr.mxu0 0.0
    %536 = vmatpush1.msra.mxu0 0.0
    %537 = vmatprep.subr.mxu0 0.0
    %538 = vmatpush1.msra.mxu0 0.0
    %539 = vmatprep.mubr.f32.mxu0 0.0
    %540 = vmatmul.mubr.f32.gmra.mrb[0].mxu0 %v244
    %v541 = vpop.f32.mrb[0].mxu0
    %v542 = vadd.f32 0.0, %v541
    %v543 = vpop.f32.mrb[0].mxu0
    %v544 = vadd.f32 0.0, %v543
    %545 = vdwg.mxu0
    %v547 = vsel %vm148, %v134, 0
    %549 = vmatprep.subr.mxu0 %v460
    %550 = vmatpush1.msra.mxu0 %v459
    %551 = vmatprep.subr.mxu0 %v462
    %552 = vmatpush1.msra.mxu0 %v461
    %553 = vmatprep.subr.mxu0 %v464
    %554 = vmatpush1.msra.mxu0 %v463
    %555 = vmatprep.subr.mxu0 %v466
    %556 = vmatpush1.msra.mxu0 %v465
    %557 = vmatprep.subr.mxu0 0.0
    %558 = vmatpush1.msra.mxu0 0.0
    %559 = vmatprep.subr.mxu0 0.0
    %560 = vmatpush1.msra.mxu0 0.0
    %561 = vmatprep.subr.mxu0 0.0
    %562 = vmatpush1.msra.mxu0 0.0
    %563 = vmatprep.subr.mxu0 0.0
    %564 = vmatpush1.msra.mxu0 0.0
    %565 = vmatprep.subr.mxu0 0.0
    %566 = vmatpush1.msra.mxu0 0.0
    %567 = vmatprep.subr.mxu0 0.0
    %568 = vmatpush1.msra.mxu0 0.0
    %569 = vmatprep.subr.mxu0 0.0
    %570 = vmatpush1.msra.mxu0 0.0
    %571 = vmatprep.subr.mxu0 0.0
    %572 = vmatpush1.msra.mxu0 0.0
    %573 = vmatprep.subr.mxu0 0.0
    %574 = vmatpush1.msra.mxu0 0.0
    %575 = vmatprep.subr.mxu0 0.0
    %576 = vmatpush1.msra.mxu0 0.0
    %577 = vmatprep.subr.mxu0 0.0
    %578 = vmatpush1.msra.mxu0 0.0
    %579 = vmatprep.subr.mxu0 0.0
    %580 = vmatpush1.msra.mxu0 0.0
    %581 = vmatprep.subr.mxu0 0.0
    %582 = vmatpush1.msra.mxu0 0.0
    %583 = vmatprep.subr.mxu0 0.0
    %584 = vmatpush1.msra.mxu0 0.0
    %585 = vmatprep.subr.mxu0 0.0
    %586 = vmatpush1.msra.mxu0 0.0
    %587 = vmatprep.subr.mxu0 0.0
    %588 = vmatpush1.msra.mxu0 0.0
    %589 = vmatprep.subr.mxu0 0.0
    %590 = vmatpush1.msra.mxu0 0.0
    %591 = vmatprep.subr.mxu0 0.0
    %592 = vmatpush1.msra.mxu0 0.0
    %593 = vmatprep.subr.mxu0 0.0
    %594 = vmatpush1.msra.mxu0 0.0
    %595 = vmatprep.subr.mxu0 0.0
    %596 = vmatpush1.msra.mxu0 0.0
    %597 = vmatprep.subr.mxu0 0.0
    %598 = vmatpush1.msra.mxu0 0.0
    %599 = vmatprep.subr.mxu0 0.0
    %600 = vmatpush1.msra.mxu0 0.0
    %601 = vmatprep.subr.mxu0 0.0
    %602 = vmatpush1.msra.mxu0 0.0
    %603 = vmatprep.subr.mxu0 0.0
    %604 = vmatpush1.msra.mxu0 0.0
    %605 = vmatprep.subr.mxu0 0.0
    %606 = vmatpush1.msra.mxu0 0.0
    %607 = vmatprep.subr.mxu0 0.0
    %608 = vmatpush1.msra.mxu0 0.0
    %609 = vmatprep.subr.mxu0 0.0
    %610 = vmatpush1.msra.mxu0 0.0
    %611 = vmatprep.subr.mxu0 0.0
    %612 = vmatpush1.msra.mxu0 0.0
    %613 = vmatprep.mubr.f32.mxu0 0.0
    %614 = vmatmul.mubr.f32.gmra.mrb[0].mxu0 %v547
    %v615 = vpop.f32.mrb[0].mxu0
    %v616 = vadd.f32 %v542, %v615
    %v617 = vpop.f32.mrb[0].mxu0
    %v618 = vadd.f32 %v544, %v617
    %619 = vdwg.mxu0
    %v620 = vld [vmem:[#allocation4] sm:$0xff]
    %v621 = vld [vmem:[#allocation4 + $0x8] sm:$0xff]
    %v622 = vld [vmem:[#allocation4 + $0x10] sm:$0xff]
    %v623 = vld [vmem:[#allocation4 + $0x18] sm:$0xff]
    %v624 = vld [vmem:[#allocation4 + $0x20] sm:$0xff]
    %v625 = vld [vmem:[#allocation4 + $0x28] sm:$0xff]
    %v626 = vld [vmem:[#allocation4 + $0x30] sm:$0xff]
    %v627 = vld [vmem:[#allocation4 + $0x38] sm:$0xff]
    %v630 = vsel %vm374, %v458, %v451
    %v631 = vsel %vm148, %v630, 0
    %633 = vmatprep.subr.mxu0 %v621
    %634 = vmatpush1.msra.mxu0 %v620
    %635 = vmatprep.subr.mxu0 %v623
    %636 = vmatpush1.msra.mxu0 %v622
    %637 = vmatprep.subr.mxu0 %v625
    %638 = vmatpush1.msra.mxu0 %v624
    %639 = vmatprep.subr.mxu0 %v627
    %640 = vmatpush1.msra.mxu0 %v626
    %641 = vmatprep.subr.mxu0 0.0
    %642 = vmatpush1.msra.mxu0 0.0
    %643 = vmatprep.subr.mxu0 0.0
    %644 = vmatpush1.msra.mxu0 0.0
    %645 = vmatprep.subr.mxu0 0.0
    %646 = vmatpush1.msra.mxu0 0.0
    %647 = vmatprep.subr.mxu0 0.0
    %648 = vmatpush1.msra.mxu0 0.0
    %649 = vmatprep.subr.mxu0 0.0
    %650 = vmatpush1.msra.mxu0 0.0
    %651 = vmatprep.subr.mxu0 0.0
    %652 = vmatpush1.msra.mxu0 0.0
    %653 = vmatprep.subr.mxu0 0.0
    %654 = vmatpush1.msra.mxu0 0.0
    %655 = vmatprep.subr.mxu0 0.0
    %656 = vmatpush1.msra.mxu0 0.0
    %657 = vmatprep.subr.mxu0 0.0
    %658 = vmatpush1.msra.mxu0 0.0
    %659 = vmatprep.subr.mxu0 0.0
    %660 = vmatpush1.msra.mxu0 0.0
    %661 = vmatprep.subr.mxu0 0.0
    %662 = vmatpush1.msra.mxu0 0.0
    %663 = vmatprep.subr.mxu0 0.0
    %664 = vmatpush1.msra.mxu0 0.0
    %665 = vmatprep.subr.mxu0 0.0
    %666 = vmatpush1.msra.mxu0 0.0
    %667 = vmatprep.subr.mxu0 0.0
    %668 = vmatpush1.msra.mxu0 0.0
    %669 = vmatprep.subr.mxu0 0.0
    %670 = vmatpush1.msra.mxu0 0.0
    %671 = vmatprep.subr.mxu0 0.0
    %672 = vmatpush1.msra.mxu0 0.0
    %673 = vmatprep.subr.mxu0 0.0
    %674 = vmatpush1.msra.mxu0 0.0
    %675 = vmatprep.subr.mxu0 0.0
    %676 = vmatpush1.msra.mxu0 0.0
    %677 = vmatprep.subr.mxu0 0.0
    %678 = vmatpush1.msra.mxu0 0.0
    %679 = vmatprep.subr.mxu0 0.0
    %680 = vmatpush1.msra.mxu0 0.0
    %681 = vmatprep.subr.mxu0 0.0
    %682 = vmatpush1.msra.mxu0 0.0
    %683 = vmatprep.subr.mxu0 0.0
    %684 = vmatpush1.msra.mxu0 0.0
    %685 = vmatprep.subr.mxu0 0.0
    %686 = vmatpush1.msra.mxu0 0.0
    %687 = vmatprep.subr.mxu0 0.0
    %688 = vmatpush1.msra.mxu0 0.0
    %689 = vmatprep.subr.mxu0 0.0
    %690 = vmatpush1.msra.mxu0 0.0
    %691 = vmatprep.subr.mxu0 0.0
    %692 = vmatpush1.msra.mxu0 0.0
    %693 = vmatprep.subr.mxu0 0.0
    %694 = vmatpush1.msra.mxu0 0.0
    %695 = vmatprep.subr.mxu0 0.0
    %696 = vmatpush1.msra.mxu0 0.0
    %697 = vmatprep.mubr.f32.mxu0 0.0
    %698 = vmatmul.mubr.f32.gmra.mrb[0].mxu0 %v631
    %v699 = vpop.f32.mrb[0].mxu0
    %v700 = vadd.f32 0.0, %v699
    %v701 = vpop.f32.mrb[0].mxu0
    %v702 = vadd.f32 0.0, %v701
    %703 = vdwg.mxu0
    %v704 = vadd.f32 %v616, %v700
    %v705 = vadd.f32 %v618, %v702
    %v706 = vld [vmem:[#allocation6] sm:$0x3]
    %v708 = vlaneseq
    %v709 = vshrl.u32 %v708, 7
    %v710 = vsub.s32 0, %v709
    %v711 = vrot.slane %v706, %v710
    %v712 = vlaneseq
    %v713 = vshrl.u32 %v712, 7
    %v714 = vsub.s32 1, %v713
    %v715 = vrot.slane %v706, %v714
    %v718 = vadd.f32 %v704, %v711
    %v719 = vadd.f32 %v705, %v715
    %v720 = vxor.u32 %v718, 2147483648
    %v721 = vxor.u32 %v719, 2147483648
    %v722 = vmul.f32 %v720, 1.442695
    %v723 = vpow.pop %v722
    %v724 = vmul.f32 %v721, 1.442695
    %v725 = vpow.pop %v724
    %v726 = vadd.f32 %v723, 1.0
    %v727 = vadd.f32 %v725, 1.0
    %v728 = vrcp.pop %v726
    %v729 = vmul.f32 1.0, %v728
    %v730 = vrcp.pop %v727
    %v731 = vmul.f32 1.0, %v730
    %v732 = vtanh.pop %v719
    %734 = vrot.lane.b32.xlu0 %v230, 64
    %v735 = vpop.permute.xlu0 %734
    %v737 = vmul.f32 %v729, %v735
    %739 = vrot.lane.b32.xlu0 %v732, 64
    %v740 = vpop.permute.xlu0 %739
    %v742 = vmul.f32 %v729, %v740
    %744 = vrot.lane.b32.xlu0 %v742, 64
    %v745 = vpop.permute.xlu0 %744
    %v747 = vadd.f32 %v737, %v745
    %v748 = vtanh.pop %v747
    %750 = vrot.lane.b32.xlu0 %v748, 64
    %v751 = vpop.permute.xlu0 %750
    %v753 = vmul.f32 %v731, %v751
    %754 = vrot.lane.b32.xlu0 %v230, 96
    %v755 = vpop.permute.xlu0 %754
    %v757 = vmul.f32 %v729, %v755
    %v758 = vadd.f32 %v757, %v745
    %v759 = vtanh.pop %v758
    %761 = vrot.lane.b32.xlu0 %v759, 64
    %v762 = vpop.permute.xlu0 %761
    %v764 = vmul.f32 %v731, %v762
    %v765 = vadd.f32 %v747, 0.0
    %767 = vrot.lane.b32.xlu0 %v758, 96
    %v768 = vpop.permute.xlu0 %767
    %v770 = vadd.f32 %v765, %v768
    %v771 = vmul.f32 %v770, 0.5
    %v772 = vadd.f32 %v753, 0.0
    %774 = vrot.lane.b32.xlu0 %v764, 96
    %v775 = vpop.permute.xlu0 %774
    %v777 = vadd.f32 %v772, %v775
    %v778 = vmul.f32 %v777, 0.5
    %s779 = scalar_lea.vmem %s10, 32
    %v780 = vld [vmem:[%s779] sm:$0xff]
    %v781 = vld [vmem:[%s779 + $0x8] sm:$0xff]
    %v782 = vld [vmem:[%s779 + $0x10] sm:$0xff]
    %v783 = vld [vmem:[%s779 + $0x18] sm:$0xff]
    %s784 = scalar_lea.vmem [#allocation9], 1
    %v785 = vld [vmem:[%s784] sm:$0x1]
    %v787 = vlaneseq
    %v788 = vshrl.u32 %v787, 7
    %v789 = vsub.s32 0, %v788
    %v790 = vrot.slane %v785, %v789
    %v793 = vsel %vm148, %v778, 0
    %795 = vmatprep.subr.mxu0 0.0
    %796 = vmatpush1.msra.mxu0 %v780
    %797 = vmatprep.subr.mxu0 0.0
    %798 = vmatpush1.msra.mxu0 %v781
    %799 = vmatprep.subr.mxu0 0.0
    %800 = vmatpush1.msra.mxu0 %v782
    %801 = vmatprep.subr.mxu0 0.0
    %802 = vmatpush1.msra.mxu0 %v783
    %803 = vmatprep.subr.mxu0 0.0
    %804 = vmatpush1.msra.mxu0 0.0
    %805 = vmatprep.subr.mxu0 0.0
    %806 = vmatpush1.msra.mxu0 0.0
    %807 = vmatprep.subr.mxu0 0.0
    %808 = vmatpush1.msra.mxu0 0.0
    %809 = vmatprep.subr.mxu0 0.0
    %810 = vmatpush1.msra.mxu0 0.0
    %811 = vmatprep.subr.mxu0 0.0
    %812 = vmatpush1.msra.mxu0 0.0
    %813 = vmatprep.subr.mxu0 0.0
    %814 = vmatpush1.msra.mxu0 0.0
    %815 = vmatprep.subr.mxu0 0.0
    %816 = vmatpush1.msra.mxu0 0.0
    %817 = vmatprep.subr.mxu0 0.0
    %818 = vmatpush1.msra.mxu0 0.0
    %819 = vmatprep.subr.mxu0 0.0
    %820 = vmatpush1.msra.mxu0 0.0
    %821 = vmatprep.subr.mxu0 0.0
    %822 = vmatpush1.msra.mxu0 0.0
    %823 = vmatprep.subr.mxu0 0.0
    %824 = vmatpush1.msra.mxu0 0.0
    %825 = vmatprep.subr.mxu0 0.0
    %826 = vmatpush1.msra.mxu0 0.0
    %827 = vmatprep.subr.mxu0 0.0
    %828 = vmatpush1.msra.mxu0 0.0
    %829 = vmatprep.subr.mxu0 0.0
    %830 = vmatpush1.msra.mxu0 0.0
    %831 = vmatprep.subr.mxu0 0.0
    %832 = vmatpush1.msra.mxu0 0.0
    %833 = vmatprep.subr.mxu0 0.0
    %834 = vmatpush1.msra.mxu0 0.0
    %835 = vmatprep.subr.mxu0 0.0
    %836 = vmatpush1.msra.mxu0 0.0
    %837 = vmatprep.subr.mxu0 0.0
    %838 = vmatpush1.msra.mxu0 0.0
    %839 = vmatprep.subr.mxu0 0.0
    %840 = vmatpush1.msra.mxu0 0.0
    %841 = vmatprep.subr.mxu0 0.0
    %842 = vmatpush1.msra.mxu0 0.0
    %843 = vmatprep.subr.mxu0 0.0
    %844 = vmatpush1.msra.mxu0 0.0
    %845 = vmatprep.subr.mxu0 0.0
    %846 = vmatpush1.msra.mxu0 0.0
    %847 = vmatprep.subr.mxu0 0.0
    %848 = vmatpush1.msra.mxu0 0.0
    %849 = vmatprep.subr.mxu0 0.0
    %850 = vmatpush1.msra.mxu0 0.0
    %851 = vmatprep.subr.mxu0 0.0
    %852 = vmatpush1.msra.mxu0 0.0
    %853 = vmatprep.subr.mxu0 0.0
    %854 = vmatpush1.msra.mxu0 0.0
    %855 = vmatprep.subr.mxu0 0.0
    %856 = vmatpush1.msra.mxu0 0.0
    %857 = vmatprep.subr.mxu0 0.0
    %858 = vmatpush1.msra.mxu0 0.0
    %859 = vmatprep.mubr.f32.mxu0 0.0
    %860 = vmatmul.mubr.f32.gmra.mrb[0].mxu0 %v793
    %v861 = vpop.f32.mrb[0].mxu0
    %v862 = vadd.f32 %v790, %v861
    %v863 = vpop.f32.mrb[0].mxu0
    %864 = vdwg.mxu0
    %v865 = vlaneseq
    %v866 = vshrl.u32 %v865, 7
    %v867 = vsub.s32 0, %v866
    %v868 = vrot.slane %v862, %v867
    %870 = vbcast.lane.b32.xlu0 %v868, 256
    %v871 = vpop.permute.xlu0 %870
    %v872 = vlaneseq
    %v873 = vshrl.u32 %v872, 7
    %v874 = vsub.s32 1, %v873
    %v875 = vrot.slane %v862, %v874
    %877 = vbcast.lane.b32.xlu0 %v875, 256
    %v878 = vpop.permute.xlu0 %877
    %v879 = vadd.f32 %v222, %v871
    %v880 = vadd.f32 %v227, %v878
    %v881 = vtanh.pop %v879
    %v882 = vtanh.pop %v880
    %s883 = scalar_lea.vmem [#allocation10], 1
    %v884 = vld [vmem:[%s883] sm:$0x1]
    %v886 = vlaneseq
    %v887 = vshrl.u32 %v886, 7
    %v888 = vsub.s32 0, %v887
    %v889 = vrot.slane %v884, %v888
    %890 = vrot.lane.b32.xlu0 %v889, 8
    %v891 = vpop.permute.xlu0 %890
    %v893 = vmul.f32 %v881, %v891
    %v894 = vmul.f32 %v882, %v891
    %897 = vrot.lane.b32.xlu0 %v893, 120
    %v898 = vpop.permute.xlu0 %897
    %899 = vrot.lane.b32.xlu0 %v894, 120
    %v900 = vpop.permute.xlu0 %899
    %v903 = vsel %vm343, %v898, 0.0
    %904 = vadd.xlane.f32.xlu0 %v903
    %v905 = vpop.xlane.xlu0 %904
    %v906 = vsel %vm343, %v900, 0.0
    %907 = vadd.xlane.f32.xlu0 %v906
    %v908 = vpop.xlane.xlu0 %907
    %s909 = scalar_lea.vmem %s13, 1
    %v910 = vld [vmem:[%s909] sm:$0x1]
    %v912 = vlaneseq
    %v913 = vshrl.u32 %v912, 7
    %v914 = vsub.s32 0, %v913
    %v915 = vrot.slane %v910, %v914
    %916 = vset.pattern.permute.xlu0 0
    %917 = vperm.xlu0 %916, %v915
    %v918 = vpop.permute.xlu0 %917
    %v920 = vadd.f32 %v905, %v918
    %v921 = vadd.f32 %v908, %v918
    %v924 = vlaneseq
    %v925 = vshrl.u32 %v924, 7
    %v926 = vsub.s32 %v365, %v925
    %v927 = vrot.slane %v920, %v926
    %v928 = vlaneseq
    %v929 = vshrl.u32 %v928, 7
    %v930 = vsub.s32 %v365, %v929
    %v931 = vrot.slane %v921, %v930
    %v932 = vsel %vm374, %v931, %v927
    %v934 = vsel %vm377, %v932, -inf
    %935 = vmax.xlane.f32.xlu0 %v934
    %v936 = vpop.xlane.xlu0 %935
    %v938 = vlaneseq
    %v939 = vshrl.u32 %v938, 7
    %v940 = vsub.s32 0, %v939
    %v941 = vrot.slane %v936, %v940
    %v942 = vlaneseq
    %v943 = vshrl.u32 %v942, 7
    %v944 = vsub.s32 1, %v943
    %v945 = vrot.slane %v936, %v944
    %v948 = vsub.f32 %v920, %v941
    %v949 = vsub.f32 %v921, %v945
    %v950 = vmul.f32 %v948, 1.442695
    %v951 = vpow.pop %v950
    %v952 = vmul.f32 %v949, 1.442695
    %v953 = vpow.pop %v952
    %956 = vset.pattern.permute.xlu0 0
    %957 = vperm.xlu0 %956, %v951
    %v958 = vpop.permute.xlu0 %957
    %959 = vset.pattern.permute.xlu0 0
    %960 = vperm.xlu0 %959, %v953
    %v961 = vpop.permute.xlu0 %960
    %v962 = vlaneseq
    %v963 = vshrl.u32 %v962, 7
    %v964 = vsub.s32 %v365, %v963
    %v965 = vrot.slane %v958, %v964
    %v966 = vlaneseq
    %v967 = vshrl.u32 %v966, 7
    %v968 = vsub.s32 %v365, %v967
    %v969 = vrot.slane %v961, %v968
    %v970 = vsel %vm374, %v969, %v965
    %v972 = vsel %vm377, %v970, 0.0
    %973 = vadd.xlane.f32.xlu0 %v972
    %v974 = vpop.xlane.xlu0 %973
    %v975 = vrcp.pop %v974
    %v977 = vlaneseq
    %v978 = vshrl.u32 %v977, 7
    %v979 = vsub.s32 0, %v978
    %v980 = vrot.slane %v975, %v979
    %v981 = vlaneseq
    %v982 = vshrl.u32 %v981, 7
    %v983 = vsub.s32 1, %v982
    %v984 = vrot.slane %v975, %v983
    %v987 = vmul.f32 %v951, %v980
    %v988 = vmul.f32 %v953, %v984
    %990 = vset.pattern.permute.xlu0 0
    %991 = vperm.xlu0 %990, %v987
    %v992 = vpop.permute.xlu0 %991
    %995 = vset.pattern.permute.xlu0 0
    %996 = vperm.xlu0 %995, %v988
    %v997 = vpop.permute.xlu0 %996
    %v999 = vmul.f32 %v135, %v992
    %v1000 = vmul.f32 %v136, %v997
    %v1001 = vsel %vm148, %v999, 0.0
    %v1002 = vrot.slane %v1001, 4
    %v1003 = vadd.f32 %v1001, %v1002
    %v1004 = vrot.slane %v1003, 2
    %v1005 = vadd.f32 %v1003, %v1004
    %v1006 = vrot.slane %v1005, 1
    %v1007 = vadd.f32 %v1005, %v1006
    %v1008 = vsel %vm148, %v1000, 0.0
    %v1009 = vrot.slane %v1008, 4
    %v1010 = vadd.f32 %v1008, %v1009
    %v1011 = vrot.slane %v1010, 2
    %v1012 = vadd.f32 %v1010, %v1011
    %v1013 = vrot.slane %v1012, 1
    %v1014 = vadd.f32 %v1012, %v1013
    %v1015 = vrot.slane %v778, 1
    %v1018 = vadd.f32 %v1007, %v778
    %v1019 = vadd.f32 %v1014, %v1015
    %v1020 = vld [vmem:[%s14] sm:$0xff]
    %v1021 = vld [vmem:[%s14 + $0x8] sm:$0xff]
    %v1022 = vld [vmem:[%s14 + $0x10] sm:$0xff]
    %v1023 = vld [vmem:[%s14 + $0x18] sm:$0xff]
    %v1024 = vld [vmem:[%s15] sm:$0x1]
    %v1026 = vlaneseq
    %v1027 = vshrl.u32 %v1026, 7
    %v1028 = vsub.s32 0, %v1027
    %v1029 = vrot.slane %v1024, %v1028
    %v1033 = vrot.slane %v1019, 7
    %v1034 = vsel %vm374, %v1033, %v1018
    %v1035 = vsel %vm148, %v1034, 0
    %1037 = vmatprep.subr.mxu0 0.0
    %1038 = vmatpush1.msra.mxu0 %v1020
    %1039 = vmatprep.subr.mxu0 0.0
    %1040 = vmatpush1.msra.mxu0 %v1021
    %1041 = vmatprep.subr.mxu0 0.0
    %1042 = vmatpush1.msra.mxu0 %v1022
    %1043 = vmatprep.subr.mxu0 0.0
    %1044 = vmatpush1.msra.mxu0 %v1023
    %1045 = vmatprep.subr.mxu0 0.0
    %1046 = vmatpush1.msra.mxu0 0.0
    %1047 = vmatprep.subr.mxu0 0.0
    %1048 = vmatpush1.msra.mxu0 0.0
    %1049 = vmatprep.subr.mxu0 0.0
    %1050 = vmatpush1.msra.mxu0 0.0
    %1051 = vmatprep.subr.mxu0 0.0
    %1052 = vmatpush1.msra.mxu0 0.0
    %1053 = vmatprep.subr.mxu0 0.0
    %1054 = vmatpush1.msra.mxu0 0.0
    %1055 = vmatprep.subr.mxu0 0.0
    %1056 = vmatpush1.msra.mxu0 0.0
    %1057 = vmatprep.subr.mxu0 0.0
    %1058 = vmatpush1.msra.mxu0 0.0
    %1059 = vmatprep.subr.mxu0 0.0
    %1060 = vmatpush1.msra.mxu0 0.0
    %1061 = vmatprep.subr.mxu0 0.0
    %1062 = vmatpush1.msra.mxu0 0.0
    %1063 = vmatprep.subr.mxu0 0.0
    %1064 = vmatpush1.msra.mxu0 0.0
    %1065 = vmatprep.subr.mxu0 0.0
    %1066 = vmatpush1.msra.mxu0 0.0
    %1067 = vmatprep.subr.mxu0 0.0
    %1068 = vmatpush1.msra.mxu0 0.0
    %1069 = vmatprep.subr.mxu0 0.0
    %1070 = vmatpush1.msra.mxu0 0.0
    %1071 = vmatprep.subr.mxu0 0.0
    %1072 = vmatpush1.msra.mxu0 0.0
    %1073 = vmatprep.subr.mxu0 0.0
    %1074 = vmatpush1.msra.mxu0 0.0
    %1075 = vmatprep.subr.mxu0 0.0
    %1076 = vmatpush1.msra.mxu0 0.0
    %1077 = vmatprep.subr.mxu0 0.0
    %1078 = vmatpush1.msra.mxu0 0.0
    %1079 = vmatprep.subr.mxu0 0.0
    %1080 = vmatpush1.msra.mxu0 0.0
    %1081 = vmatprep.subr.mxu0 0.0
    %1082 = vmatpush1.msra.mxu0 0.0
    %1083 = vmatprep.subr.mxu0 0.0
    %1084 = vmatpush1.msra.mxu0 0.0
    %1085 = vmatprep.subr.mxu0 0.0
    %1086 = vmatpush1.msra.mxu0 0.0
    %1087 = vmatprep.subr.mxu0 0.0
    %1088 = vmatpush1.msra.mxu0 0.0
    %1089 = vmatprep.subr.mxu0 0.0
    %1090 = vmatpush1.msra.mxu0 0.0
    %1091 = vmatprep.subr.mxu0 0.0
    %1092 = vmatpush1.msra.mxu0 0.0
    %1093 = vmatprep.subr.mxu0 0.0
    %1094 = vmatpush1.msra.mxu0 0.0
    %1095 = vmatprep.subr.mxu0 0.0
    %1096 = vmatpush1.msra.mxu0 0.0
    %1097 = vmatprep.subr.mxu0 0.0
    %1098 = vmatpush1.msra.mxu0 0.0
    %1099 = vmatprep.subr.mxu0 0.0
    %1100 = vmatpush1.msra.mxu0 0.0
    %1101 = vmatprep.mubr.f32.mxu0 0.0
    %1102 = vmatmul.mubr.f32.gmra.mrb[0].mxu0 %v1035
    %v1103 = vpop.f32.mrb[0].mxu0
    %v1104 = vadd.f32 %v1029, %v1103
    %v1105 = vpop.f32.mrb[0].mxu0
    %1106 = vdwg.mxu0
    %vm1107 = vcmask 123904
    %v1108 = vsel %vm1107, %v1104, -inf
    %1109 = vmax.xlane.f32.xlu0 %v1108
    %v1110 = vpop.xlane.xlu0 %1109
    %v1111 = vsub.f32 %v1104, %v1110
    %v1112 = vmul.f32 %v1111, 1.442695
    %v1113 = vpow.pop %v1112
    %v1114 = vsel %vm1107, %v1113, 0.0
    %1115 = vadd.xlane.f32.xlu0 %v1114
    %v1116 = vpop.xlane.xlu0 %1115
    %v1117 = vlog2.pop %v1116
    %v1118 = vmul.f32 %v1117, 0.6931472
    %v1119 = vadd.f32 %v1110, %v1118
    %1121 = vrot.lane.b32.xlu0 %v771, 64
    %v1122 = vpop.permute.xlu0 %1121
    %vm1124 = vcmask 254976
    %1125 = vst.msk [vmem:[%s16] sm:$0x3] %vm1124, %v1122
    %1127 = vst.msk [vmem:[%s17] sm:$0x3] %vm1124, %v1034
    %v1128 = vsub.f32 %v1104, %v1119
    %1129 = vst.msk [vmem:[%s18] sm:$0x3] %vm1107, %v1128
    %s1130 = scalar_lea.vmem %s2, 2
    %v1131 = vld [vmem:[%s1130] sm:$0x3]
    %s1132 = scalar_lea.vmem %s3, 2
    %v1133 = vld [vmem:[%s1132] sm:$0x3]
    %v1134 = vadd.f32 %v134, %v1034
    %s1135 = scalar_lea.vmem %s10, 64
    %v1136 = vld [vmem:[%s1135] sm:$0xff]
    %v1137 = vld [vmem:[%s1135 + $0x8] sm:$0xff]
    %v1138 = vld [vmem:[%s1135 + $0x10] sm:$0xff]
    %v1139 = vld [vmem:[%s1135 + $0x18] sm:$0xff]
    %s1140 = scalar_lea.vmem [#allocation9], 2
    %v1141 = vld [vmem:[%s1140] sm:$0x1]
    %v1143 = vlaneseq
    %v1144 = vshrl.u32 %v1143, 7
    %v1145 = vsub.s32 0, %v1144
    %v1146 = vrot.slane %v1141, %v1145
    %v1149 = vsel %vm148, %v1133, 0
    %1151 = vmatprep.subr.mxu0 0.0
    %1152 = vmatpush1.msra.mxu0 %v1136
    %1153 = vmatprep.subr.mxu0 0.0
    %1154 = vmatpush1.msra.mxu0 %v1137
    %1155 = vmatprep.subr.mxu0 0.0
    %1156 = vmatpush1.msra.mxu0 %v1138
    %1157 = vmatprep.subr.mxu0 0.0
    %1158 = vmatpush1.msra.mxu0 %v1139
    %1159 = vmatprep.subr.mxu0 0.0
    %1160 = vmatpush1.msra.mxu0 0.0
    %1161 = vmatprep.subr.mxu0 0.0
    %1162 = vmatpush1.msra.mxu0 0.0
    %1163 = vmatprep.subr.mxu0 0.0
    %1164 = vmatpush1.msra.mxu0 0.0
    %1165 = vmatprep.subr.mxu0 0.0
    %1166 = vmatpush1.msra.mxu0 0.0
    %1167 = vmatprep.subr.mxu0 0.0
    %1168 = vmatpush1.msra.mxu0 0.0
    %1169 = vmatprep.subr.mxu0 0.0
    %1170 = vmatpush1.msra.mxu0 0.0
    %1171 = vmatprep.subr.mxu0 0.0
    %1172 = vmatpush1.msra.mxu0 0.0
    %1173 = vmatprep.subr.mxu0 0.0
    %1174 = vmatpush1.msra.mxu0 0.0
    %1175 = vmatprep.subr.mxu0 0.0
    %1176 = vmatpush1.msra.mxu0 0.0
    %1177 = vmatprep.subr.mxu0 0.0
    %1178 = vmatpush1.msra.mxu0 0.0
    %1179 = vmatprep.subr.mxu0 0.0
    %1180 = vmatpush1.msra.mxu0 0.0
    %1181 = vmatprep.subr.mxu0 0.0
    %1182 = vmatpush1.msra.mxu0 0.0
    %1183 = vmatprep.subr.mxu0 0.0
    %1184 = vmatpush1.msra.mxu0 0.0
    %1185 = vmatprep.subr.mxu0 0.0
    %1186 = vmatpush1.msra.mxu0 0.0
    %1187 = vmatprep.subr.mxu0 0.0
    %1188 = vmatpush1.msra.mxu0 0.0
    %1189 = vmatprep.subr.mxu0 0.0
    %1190 = vmatpush1.msra.mxu0 0.0
    %1191 = vmatprep.subr.mxu0 0.0
    %1192 = vmatpush1.msra.mxu0 0.0
    %1193 = vmatprep.subr.mxu0 0.0
    %1194 = vmatpush1.msra.mxu0 0.0
    %1195 = vmatprep.subr.mxu0 0.0
    %1196 = vmatpush1.msra.mxu0 0.0
    %1197 = vmatprep.subr.mxu0 0.0
    %1198 = vmatpush1.msra.mxu0 0.0
    %1199 = vmatprep.subr.mxu0 0.0
    %1200 = vmatpush1.msra.mxu0 0.0
    %1201 = vmatprep.subr.mxu0 0.0
    %1202 = vmatpush1.msra.mxu0 0.0
    %1203 = vmatprep.subr.mxu0 0.0
    %1204 = vmatpush1.msra.mxu0 0.0
    %1205 = vmatprep.subr.mxu0 0.0
    %1206 = vmatpush1.msra.mxu0 0.0
    %1207 = vmatprep.subr.mxu0 0.0
    %1208 = vmatpush1.msra.mxu0 0.0
    %1209 = vmatprep.subr.mxu0 0.0
    %1210 = vmatpush1.msra.mxu0 0.0
    %1211 = vmatprep.subr.mxu0 0.0
    %1212 = vmatpush1.msra.mxu0 0.0
    %1213 = vmatprep.subr.mxu0 0.0
    %1214 = vmatpush1.msra.mxu0 0.0
    %1215 = vmatprep.mubr.f32.mxu0 0.0
    %1216 = vmatmul.mubr.f32.gmra.mrb[0].mxu0 %v1149
    %v1217 = vpop.f32.mrb[0].mxu0
    %v1218 = vadd.f32 %v1146, %v1217
    %v1219 = vpop.f32.mrb[0].mxu0
    %1220 = vdwg.mxu0
    %v1221 = vlaneseq
    %v1222 = vshrl.u32 %v1221, 7
    %v1223 = vsub.s32 0, %v1222
    %v1224 = vrot.slane %v1218, %v1223
    %1226 = vbcast.lane.b32.xlu0 %v1224, 256
    %v1227 = vpop.permute.xlu0 %1226
    %v1228 = vlaneseq
    %v1229 = vshrl.u32 %v1228, 7
    %v1230 = vsub.s32 1, %v1229
    %v1231 = vrot.slane %v1218, %v1230
    %1233 = vbcast.lane.b32.xlu0 %v1231, 256
    %v1234 = vpop.permute.xlu0 %1233
    %v1235 = vadd.f32 %v222, %v1227
    %v1236 = vadd.f32 %v227, %v1234
    %v1237 = vtanh.pop %v1235
    %v1238 = vtanh.pop %v1236
    %s1239 = scalar_lea.vmem [#allocation10], 2
    %v1240 = vld [vmem:[%s1239] sm:$0x1]
    %v1242 = vlaneseq
    %v1243 = vshrl.u32 %v1242, 7
    %v1244 = vsub.s32 0, %v1243
    %v1245 = vrot.slane %v1240, %v1244
    %1246 = vrot.lane.b32.xlu0 %v1245, 16
    %v1247 = vpop.permute.xlu0 %1246
    %v1249 = vmul.f32 %v1237, %v1247
    %v1250 = vmul.f32 %v1238, %v1247
    %1253 = vrot.lane.b32.xlu0 %v1249, 112
    %v1254 = vpop.permute.xlu0 %1253
    %1255 = vrot.lane.b32.xlu0 %v1250, 112
    %v1256 = vpop.permute.xlu0 %1255
    %v1259 = vsel %vm343, %v1254, 0.0
    %1260 = vadd.xlane.f32.xlu0 %v1259
    %v1261 = vpop.xlane.xlu0 %1260
    %v1262 = vsel %vm343, %v1256, 0.0
    %1263 = vadd.xlane.f32.xlu0 %v1262
    %v1264 = vpop.xlane.xlu0 %1263
    %s1265 = scalar_lea.vmem %s13, 2
    %v1266 = vld [vmem:[%s1265] sm:$0x1]
    %v1268 = vlaneseq
    %v1269 = vshrl.u32 %v1268, 7
    %v1270 = vsub.s32 0, %v1269
    %v1271 = vrot.slane %v1266, %v1270
    %1272 = vset.pattern.permute.xlu0 0
    %1273 = vperm.xlu0 %1272, %v1271
    %v1274 = vpop.permute.xlu0 %1273
    %v1276 = vadd.f32 %v1261, %v1274
    %v1277 = vadd.f32 %v1264, %v1274
    %v1280 = vlaneseq
    %v1281 = vshrl.u32 %v1280, 7
    %v1282 = vsub.s32 %v365, %v1281
    %v1283 = vrot.slane %v1276, %v1282
    %v1284 = vlaneseq
    %v1285 = vshrl.u32 %v1284, 7
    %v1286 = vsub.s32 %v365, %v1285
    %v1287 = vrot.slane %v1277, %v1286
    %v1288 = vsel %vm374, %v1287, %v1283
    %v1290 = vsel %vm377, %v1288, -inf
    %1291 = vmax.xlane.f32.xlu0 %v1290
    %v1292 = vpop.xlane.xlu0 %1291
    %v1294 = vlaneseq
    %v1295 = vshrl.u32 %v1294, 7
    %v1296 = vsub.s32 0, %v1295
    %v1297 = vrot.slane %v1292, %v1296
    %v1298 = vlaneseq
    %v1299 = vshrl.u32 %v1298, 7
    %v1300 = vsub.s32 1, %v1299
    %v1301 = vrot.slane %v1292, %v1300
    %v1304 = vsub.f32 %v1276, %v1297
    %v1305 = vsub.f32 %v1277, %v1301
    %v1306 = vmul.f32 %v1304, 1.442695
    %v1307 = vpow.pop %v1306
    %v1308 = vmul.f32 %v1305, 1.442695
    %v1309 = vpow.pop %v1308
    %1312 = vset.pattern.permute.xlu0 0
    %1313 = vperm.xlu0 %1312, %v1307
    %v1314 = vpop.permute.xlu0 %1313
    %1315 = vset.pattern.permute.xlu0 0
    %1316 = vperm.xlu0 %1315, %v1309
    %v1317 = vpop.permute.xlu0 %1316
    %v1318 = vlaneseq
    %v1319 = vshrl.u32 %v1318, 7
    %v1320 = vsub.s32 %v365, %v1319
    %v1321 = vrot.slane %v1314, %v1320
    %v1322 = vlaneseq
    %v1323 = vshrl.u32 %v1322, 7
    %v1324 = vsub.s32 %v365, %v1323
    %v1325 = vrot.slane %v1317, %v1324
    %v1326 = vsel %vm374, %v1325, %v1321
    %v1328 = vsel %vm377, %v1326, 0.0
    %1329 = vadd.xlane.f32.xlu0 %v1328
    %v1330 = vpop.xlane.xlu0 %1329
    %v1331 = vrcp.pop %v1330
    %v1333 = vlaneseq
    %v1334 = vshrl.u32 %v1333, 7
    %v1335 = vsub.s32 0, %v1334
    %v1336 = vrot.slane %v1331, %v1335
    %v1337 = vlaneseq
    %v1338 = vshrl.u32 %v1337, 7
    %v1339 = vsub.s32 1, %v1338
    %v1340 = vrot.slane %v1331, %v1339
    %v1343 = vmul.f32 %v1307, %v1336
    %v1344 = vmul.f32 %v1309, %v1340
    %1346 = vset.pattern.permute.xlu0 0
    %1347 = vperm.xlu0 %1346, %v1343
    %v1348 = vpop.permute.xlu0 %1347
    %1351 = vset.pattern.permute.xlu0 0
    %1352 = vperm.xlu0 %1351, %v1344
    %v1353 = vpop.permute.xlu0 %1352
    %v1355 = vmul.f32 %v135, %v1348
    %v1356 = vmul.f32 %v136, %v1353
    %v1357 = vsel %vm148, %v1355, 0.0
    %v1358 = vrot.slane %v1357, 4
    %v1359 = vadd.f32 %v1357, %v1358
    %v1360 = vrot.slane %v1359, 2
    %v1361 = vadd.f32 %v1359, %v1360
    %v1362 = vrot.slane %v1361, 1
    %v1363 = vadd.f32 %v1361, %v1362
    %v1364 = vsel %vm148, %v1356, 0.0
    %v1365 = vrot.slane %v1364, 4
    %v1366 = vadd.f32 %v1364, %v1365
    %v1367 = vrot.slane %v1366, 2
    %v1368 = vadd.f32 %v1366, %v1367
    %v1369 = vrot.slane %v1368, 1
    %v1370 = vadd.f32 %v1368, %v1369
    %s1371 = scalar_lea.vmem %s4, 64
    %v1372 = vld [vmem:[%s1371] sm:$0xff]
    %v1373 = vld [vmem:[%s1371 + $0x8] sm:$0xff]
    %v1374 = vld [vmem:[%s1371 + $0x10] sm:$0xff]
    %v1375 = vld [vmem:[%s1371 + $0x18] sm:$0xff]
    %v1376 = vld [vmem:[%s1371 + $0x20] sm:$0xff]
    %v1377 = vld [vmem:[%s1371 + $0x28] sm:$0xff]
    %v1378 = vld [vmem:[%s1371 + $0x30] sm:$0xff]
    %v1379 = vld [vmem:[%s1371 + $0x38] sm:$0xff]
    %s1380 = scalar_lea.vmem %s5, 64
    %v1381 = vld [vmem:[%s1380] sm:$0xff]
    %v1382 = vld [vmem:[%s1380 + $0x8] sm:$0xff]
    %v1383 = vld [vmem:[%s1380 + $0x10] sm:$0xff]
    %v1384 = vld [vmem:[%s1380 + $0x18] sm:$0xff]
    %v1385 = vld [vmem:[%s1380 + $0x20] sm:$0xff]
    %v1386 = vld [vmem:[%s1380 + $0x28] sm:$0xff]
    %v1387 = vld [vmem:[%s1380 + $0x30] sm:$0xff]
    %v1388 = vld [vmem:[%s1380 + $0x38] sm:$0xff]
    %1389 = vmatprep.subr.mxu0 %v1382
    %1390 = vmatpush1.msra.mxu0 %v1381
    %1391 = vmatprep.subr.mxu0 %v1384
    %1392 = vmatpush1.msra.mxu0 %v1383
    %1393 = vmatprep.subr.mxu0 %v1386
    %1394 = vmatpush1.msra.mxu0 %v1385
    %1395 = vmatprep.subr.mxu0 %v1388
    %1396 = vmatpush1.msra.mxu0 %v1387
    %1397 = vmatprep.subr.mxu0 0.0
    %1398 = vmatpush1.msra.mxu0 0.0
    %1399 = vmatprep.subr.mxu0 0.0
    %1400 = vmatpush1.msra.mxu0 0.0
    %1401 = vmatprep.subr.mxu0 0.0
    %1402 = vmatpush1.msra.mxu0 0.0
    %1403 = vmatprep.subr.mxu0 0.0
    %1404 = vmatpush1.msra.mxu0 0.0
    %1405 = vmatprep.subr.mxu0 0.0
    %1406 = vmatpush1.msra.mxu0 0.0
    %1407 = vmatprep.subr.mxu0 0.0
    %1408 = vmatpush1.msra.mxu0 0.0
    %1409 = vmatprep.subr.mxu0 0.0
    %1410 = vmatpush1.msra.mxu0 0.0
    %1411 = vmatprep.subr.mxu0 0.0
    %1412 = vmatpush1.msra.mxu0 0.0
    %1413 = vmatprep.subr.mxu0 0.0
    %1414 = vmatpush1.msra.mxu0 0.0
    %1415 = vmatprep.subr.mxu0 0.0
    %1416 = vmatpush1.msra.mxu0 0.0
    %1417 = vmatprep.subr.mxu0 0.0
    %1418 = vmatpush1.msra.mxu0 0.0
    %1419 = vmatprep.subr.mxu0 0.0
    %1420 = vmatpush1.msra.mxu0 0.0
    %1421 = vmatprep.subr.mxu0 0.0
    %1422 = vmatpush1.msra.mxu0 0.0
    %1423 = vmatprep.subr.mxu0 0.0
    %1424 = vmatpush1.msra.mxu0 0.0
    %1425 = vmatprep.subr.mxu0 0.0
    %1426 = vmatpush1.msra.mxu0 0.0
    %1427 = vmatprep.subr.mxu0 0.0
    %1428 = vmatpush1.msra.mxu0 0.0
    %1429 = vmatprep.subr.mxu0 0.0
    %1430 = vmatpush1.msra.mxu0 0.0
    %1431 = vmatprep.subr.mxu0 0.0
    %1432 = vmatpush1.msra.mxu0 0.0
    %1433 = vmatprep.subr.mxu0 0.0
    %1434 = vmatpush1.msra.mxu0 0.0
    %1435 = vmatprep.subr.mxu0 0.0
    %1436 = vmatpush1.msra.mxu0 0.0
    %1437 = vmatprep.subr.mxu0 0.0
    %1438 = vmatpush1.msra.mxu0 0.0
    %1439 = vmatprep.subr.mxu0 0.0
    %1440 = vmatpush1.msra.mxu0 0.0
    %1441 = vmatprep.subr.mxu0 0.0
    %1442 = vmatpush1.msra.mxu0 0.0
    %1443 = vmatprep.subr.mxu0 0.0
    %1444 = vmatpush1.msra.mxu0 0.0
    %1445 = vmatprep.subr.mxu0 0.0
    %1446 = vmatpush1.msra.mxu0 0.0
    %1447 = vmatprep.subr.mxu0 0.0
    %1448 = vmatpush1.msra.mxu0 0.0
    %1449 = vmatprep.subr.mxu0 0.0
    %1450 = vmatpush1.msra.mxu0 0.0
    %1451 = vmatprep.subr.mxu0 0.0
    %1452 = vmatpush1.msra.mxu0 0.0
    %1453 = vmatprep.mubr.f32.mxu0 0.0
    %1454 = vmatmul.mubr.f32.gmra.mrb[0].mxu0 %v1149
    %v1455 = vpop.f32.mrb[0].mxu0
    %v1456 = vadd.f32 0.0, %v1455
    %v1457 = vpop.f32.mrb[0].mxu0
    %v1458 = vadd.f32 0.0, %v1457
    %1459 = vdwg.mxu0
    %v1461 = vsel %vm148, %v1134, 0
    %1463 = vmatprep.subr.mxu0 %v1373
    %1464 = vmatpush1.msra.mxu0 %v1372
    %1465 = vmatprep.subr.mxu0 %v1375
    %1466 = vmatpush1.msra.mxu0 %v1374
    %1467 = vmatprep.subr.mxu0 %v1377
    %1468 = vmatpush1.msra.mxu0 %v1376
    %1469 = vmatprep.subr.mxu0 %v1379
    %1470 = vmatpush1.msra.mxu0 %v1378
    %1471 = vmatprep.subr.mxu0 0.0
    %1472 = vmatpush1.msra.mxu0 0.0
    %1473 = vmatprep.subr.mxu0 0.0
    %1474 = vmatpush1.msra.mxu0 0.0
    %1475 = vmatprep.subr.mxu0 0.0
    %1476 = vmatpush1.msra.mxu0 0.0
    %1477 = vmatprep.subr.mxu0 0.0
    %1478 = vmatpush1.msra.mxu0 0.0
    %1479 = vmatprep.subr.mxu0 0.0
    %1480 = vmatpush1.msra.mxu0 0.0
    %1481 = vmatprep.subr.mxu0 0.0
    %1482 = vmatpush1.msra.mxu0 0.0
    %1483 = vmatprep.subr.mxu0 0.0
    %1484 = vmatpush1.msra.mxu0 0.0
    %1485 = vmatprep.subr.mxu0 0.0
    %1486 = vmatpush1.msra.mxu0 0.0
    %1487 = vmatprep.subr.mxu0 0.0
    %1488 = vmatpush1.msra.mxu0 0.0
    %1489 = vmatprep.subr.mxu0 0.0
    %1490 = vmatpush1.msra.mxu0 0.0
    %1491 = vmatprep.subr.mxu0 0.0
    %1492 = vmatpush1.msra.mxu0 0.0
    %1493 = vmatprep.subr.mxu0 0.0
    %1494 = vmatpush1.msra.mxu0 0.0
    %1495 = vmatprep.subr.mxu0 0.0
    %1496 = vmatpush1.msra.mxu0 0.0
    %1497 = vmatprep.subr.mxu0 0.0
    %1498 = vmatpush1.msra.mxu0 0.0
    %1499 = vmatprep.subr.mxu0 0.0
    %1500 = vmatpush1.msra.mxu0 0.0
    %1501 = vmatprep.subr.mxu0 0.0
    %1502 = vmatpush1.msra.mxu0 0.0
    %1503 = vmatprep.subr.mxu0 0.0
    %1504 = vmatpush1.msra.mxu0 0.0
    %1505 = vmatprep.subr.mxu0 0.0
    %1506 = vmatpush1.msra.mxu0 0.0
    %1507 = vmatprep.subr.mxu0 0.0
    %1508 = vmatpush1.msra.mxu0 0.0
    %1509 = vmatprep.subr.mxu0 0.0
    %1510 = vmatpush1.msra.mxu0 0.0
    %1511 = vmatprep.subr.mxu0 0.0
    %1512 = vmatpush1.msra.mxu0 0.0
    %1513 = vmatprep.subr.mxu0 0.0
    %1514 = vmatpush1.msra.mxu0 0.0
    %1515 = vmatprep.subr.mxu0 0.0
    %1516 = vmatpush1.msra.mxu0 0.0
    %1517 = vmatprep.subr.mxu0 0.0
    %1518 = vmatpush1.msra.mxu0 0.0
    %1519 = vmatprep.subr.mxu0 0.0
    %1520 = vmatpush1.msra.mxu0 0.0
    %1521 = vmatprep.subr.mxu0 0.0
    %1522 = vmatpush1.msra.mxu0 0.0
    %1523 = vmatprep.subr.mxu0 0.0
    %1524 = vmatpush1.msra.mxu0 0.0
    %1525 = vmatprep.subr.mxu0 0.0
    %1526 = vmatpush1.msra.mxu0 0.0
    %1527 = vmatprep.mubr.f32.mxu0 0.0
    %1528 = vmatmul.mubr.f32.gmra.mrb[0].mxu0 %v1461
    %v1529 = vpop.f32.mrb[0].mxu0
    %v1530 = vadd.f32 %v1456, %v1529
    %v1531 = vpop.f32.mrb[0].mxu0
    %v1532 = vadd.f32 %v1458, %v1531
    %1533 = vdwg.mxu0
    %s1534 = scalar_lea.vmem [#allocation4], 64
    %v1535 = vld [vmem:[%s1534] sm:$0xff]
    %v1536 = vld [vmem:[%s1534 + $0x8] sm:$0xff]
    %v1537 = vld [vmem:[%s1534 + $0x10] sm:$0xff]
    %v1538 = vld [vmem:[%s1534 + $0x18] sm:$0xff]
    %v1539 = vld [vmem:[%s1534 + $0x20] sm:$0xff]
    %v1540 = vld [vmem:[%s1534 + $0x28] sm:$0xff]
    %v1541 = vld [vmem:[%s1534 + $0x30] sm:$0xff]
    %v1542 = vld [vmem:[%s1534 + $0x38] sm:$0xff]
    %v1545 = vsel %vm374, %v1370, %v1363
    %v1546 = vsel %vm148, %v1545, 0
    %1548 = vmatprep.subr.mxu0 %v1536
    %1549 = vmatpush1.msra.mxu0 %v1535
    %1550 = vmatprep.subr.mxu0 %v1538
    %1551 = vmatpush1.msra.mxu0 %v1537
    %1552 = vmatprep.subr.mxu0 %v1540
    %1553 = vmatpush1.msra.mxu0 %v1539
    %1554 = vmatprep.subr.mxu0 %v1542
    %1555 = vmatpush1.msra.mxu0 %v1541
    %1556 = vmatprep.subr.mxu0 0.0
    %1557 = vmatpush1.msra.mxu0 0.0
    %1558 = vmatprep.subr.mxu0 0.0
    %1559 = vmatpush1.msra.mxu0 0.0
    %1560 = vmatprep.subr.mxu0 0.0
    %1561 = vmatpush1.msra.mxu0 0.0
    %1562 = vmatprep.subr.mxu0 0.0
    %1563 = vmatpush1.msra.mxu0 0.0
    %1564 = vmatprep.subr.mxu0 0.0
    %1565 = vmatpush1.msra.mxu0 0.0
    %1566 = vmatprep.subr.mxu0 0.0
    %1567 = vmatpush1.msra.mxu0 0.0
    %1568 = vmatprep.subr.mxu0 0.0
    %1569 = vmatpush1.msra.mxu0 0.0
    %1570 = vmatprep.subr.mxu0 0.0
    %1571 = vmatpush1.msra.mxu0 0.0
    %1572 = vmatprep.subr.mxu0 0.0
    %1573 = vmatpush1.msra.mxu0 0.0
    %1574 = vmatprep.subr.mxu0 0.0
    %1575 = vmatpush1.msra.mxu0 0.0
    %1576 = vmatprep.subr.mxu0 0.0
    %1577 = vmatpush1.msra.mxu0 0.0
    %1578 = vmatprep.subr.mxu0 0.0
    %1579 = vmatpush1.msra.mxu0 0.0
    %1580 = vmatprep.subr.mxu0 0.0
    %1581 = vmatpush1.msra.mxu0 0.0
    %1582 = vmatprep.subr.mxu0 0.0
    %1583 = vmatpush1.msra.mxu0 0.0
    %1584 = vmatprep.subr.mxu0 0.0
    %1585 = vmatpush1.msra.mxu0 0.0
    %1586 = vmatprep.subr.mxu0 0.0
    %1587 = vmatpush1.msra.mxu0 0.0
    %1588 = vmatprep.subr.mxu0 0.0
    %1589 = vmatpush1.msra.mxu0 0.0
    %1590 = vmatprep.subr.mxu0 0.0
    %1591 = vmatpush1.msra.mxu0 0.0
    %1592 = vmatprep.subr.mxu0 0.0
    %1593 = vmatpush1.msra.mxu0 0.0
    %1594 = vmatprep.subr.mxu0 0.0
    %1595 = vmatpush1.msra.mxu0 0.0
    %1596 = vmatprep.subr.mxu0 0.0
    %1597 = vmatpush1.msra.mxu0 0.0
    %1598 = vmatprep.subr.mxu0 0.0
    %1599 = vmatpush1.msra.mxu0 0.0
    %1600 = vmatprep.subr.mxu0 0.0
    %1601 = vmatpush1.msra.mxu0 0.0
    %1602 = vmatprep.subr.mxu0 0.0
    %1603 = vmatpush1.msra.mxu0 0.0
    %1604 = vmatprep.subr.mxu0 0.0
    %1605 = vmatpush1.msra.mxu0 0.0
    %1606 = vmatprep.subr.mxu0 0.0
    %1607 = vmatpush1.msra.mxu0 0.0
    %1608 = vmatprep.subr.mxu0 0.0
    %1609 = vmatpush1.msra.mxu0 0.0
    %1610 = vmatprep.subr.mxu0 0.0
    %1611 = vmatpush1.msra.mxu0 0.0
    %1612 = vmatprep.mubr.f32.mxu0 0.0
    %1613 = vmatmul.mubr.f32.gmra.mrb[0].mxu0 %v1546
    %v1614 = vpop.f32.mrb[0].mxu0
    %v1615 = vadd.f32 0.0, %v1614
    %v1616 = vpop.f32.mrb[0].mxu0
    %v1617 = vadd.f32 0.0, %v1616
    %1618 = vdwg.mxu0
    %v1619 = vadd.f32 %v1530, %v1615
    %v1620 = vadd.f32 %v1532, %v1617
    %s1621 = scalar_lea.vmem [#allocation6], 2
    %v1622 = vld [vmem:[%s1621] sm:$0x3]
    %v1624 = vlaneseq
    %v1625 = vshrl.u32 %v1624, 7
    %v1626 = vsub.s32 0, %v1625
    %v1627 = vrot.slane %v1622, %v1626
    %v1628 = vlaneseq
    %v1629 = vshrl.u32 %v1628, 7
    %v1630 = vsub.s32 1, %v1629
    %v1631 = vrot.slane %v1622, %v1630
    %v1634 = vadd.f32 %v1619, %v1627
    %v1635 = vadd.f32 %v1620, %v1631
    %v1636 = vxor.u32 %v1634, 2147483648
    %v1637 = vxor.u32 %v1635, 2147483648
    %v1638 = vmul.f32 %v1636, 1.442695
    %v1639 = vpow.pop %v1638
    %v1640 = vmul.f32 %v1637, 1.442695
    %v1641 = vpow.pop %v1640
    %v1642 = vadd.f32 %v1639, 1.0
    %v1643 = vadd.f32 %v1641, 1.0
    %v1644 = vrcp.pop %v1642
    %v1645 = vmul.f32 1.0, %v1644
    %v1646 = vrcp.pop %v1643
    %v1647 = vmul.f32 1.0, %v1646
    %v1648 = vtanh.pop %v1635
    %1650 = vrot.lane.b32.xlu0 %v1131, 64
    %v1651 = vpop.permute.xlu0 %1650
    %v1653 = vmul.f32 %v1645, %v1651
    %1655 = vrot.lane.b32.xlu0 %v1648, 64
    %v1656 = vpop.permute.xlu0 %1655
    %v1658 = vmul.f32 %v1645, %v1656
    %1660 = vrot.lane.b32.xlu0 %v1658, 64
    %v1661 = vpop.permute.xlu0 %1660
    %v1663 = vadd.f32 %v1653, %v1661
    %v1664 = vtanh.pop %v1663
    %1666 = vrot.lane.b32.xlu0 %v1664, 64
    %v1667 = vpop.permute.xlu0 %1666
    %v1669 = vmul.f32 %v1647, %v1667
    %1670 = vrot.lane.b32.xlu0 %v1131, 96
    %v1671 = vpop.permute.xlu0 %1670
    %v1673 = vmul.f32 %v1645, %v1671
    %v1674 = vadd.f32 %v1673, %v1661
    %v1675 = vtanh.pop %v1674
    %1677 = vrot.lane.b32.xlu0 %v1675, 64
    %v1678 = vpop.permute.xlu0 %1677
    %v1680 = vmul.f32 %v1647, %v1678
    %v1681 = vadd.f32 %v1663, 0.0
    %1683 = vrot.lane.b32.xlu0 %v1674, 96
    %v1684 = vpop.permute.xlu0 %1683
    %v1686 = vadd.f32 %v1681, %v1684
    %v1687 = vmul.f32 %v1686, 0.5
    %v1688 = vadd.f32 %v1669, 0.0
    %1690 = vrot.lane.b32.xlu0 %v1680, 96
    %v1691 = vpop.permute.xlu0 %1690
    %v1693 = vadd.f32 %v1688, %v1691
    %v1694 = vmul.f32 %v1693, 0.5
    %s1695 = scalar_lea.vmem %s10, 96
    %v1696 = vld [vmem:[%s1695] sm:$0xff]
    %v1697 = vld [vmem:[%s1695 + $0x8] sm:$0xff]
    %v1698 = vld [vmem:[%s1695 + $0x10] sm:$0xff]
    %v1699 = vld [vmem:[%s1695 + $0x18] sm:$0xff]
    %s1700 = scalar_lea.vmem [#allocation9], 3
    %v1701 = vld [vmem:[%s1700] sm:$0x1]
    %v1703 = vlaneseq
    %v1704 = vshrl.u32 %v1703, 7
    %v1705 = vsub.s32 0, %v1704
    %v1706 = vrot.slane %v1701, %v1705
    %v1709 = vsel %vm148, %v1694, 0
    %1711 = vmatprep.subr.mxu0 0.0
    %1712 = vmatpush1.msra.mxu0 %v1696
    %1713 = vmatprep.subr.mxu0 0.0
    %1714 = vmatpush1.msra.mxu0 %v1697
    %1715 = vmatprep.subr.mxu0 0.0
    %1716 = vmatpush1.msra.mxu0 %v1698
    %1717 = vmatprep.subr.mxu0 0.0
    %1718 = vmatpush1.msra.mxu0 %v1699
    %1719 = vmatprep.subr.mxu0 0.0
    %1720 = vmatpush1.msra.mxu0 0.0
    %1721 = vmatprep.subr.mxu0 0.0
    %1722 = vmatpush1.msra.mxu0 0.0
    %1723 = vmatprep.subr.mxu0 0.0
    %1724 = vmatpush1.msra.mxu0 0.0
    %1725 = vmatprep.subr.mxu0 0.0
    %1726 = vmatpush1.msra.mxu0 0.0
    %1727 = vmatprep.subr.mxu0 0.0
    %1728 = vmatpush1.msra.mxu0 0.0
    %1729 = vmatprep.subr.mxu0 0.0
    %1730 = vmatpush1.msra.mxu0 0.0
    %1731 = vmatprep.subr.mxu0 0.0
    %1732 = vmatpush1.msra.mxu0 0.0
    %1733 = vmatprep.subr.mxu0 0.0
    %1734 = vmatpush1.msra.mxu0 0.0
    %1735 = vmatprep.subr.mxu0 0.0
    %1736 = vmatpush1.msra.mxu0 0.0
    %1737 = vmatprep.subr.mxu0 0.0
    %1738 = vmatpush1.msra.mxu0 0.0
    %1739 = vmatprep.subr.mxu0 0.0
    %1740 = vmatpush1.msra.mxu0 0.0
    %1741 = vmatprep.subr.mxu0 0.0
    %1742 = vmatpush1.msra.mxu0 0.0
    %1743 = vmatprep.subr.mxu0 0.0
    %1744 = vmatpush1.msra.mxu0 0.0
    %1745 = vmatprep.subr.mxu0 0.0
    %1746 = vmatpush1.msra.mxu0 0.0
    %1747 = vmatprep.subr.mxu0 0.0
    %1748 = vmatpush1.msra.mxu0 0.0
    %1749 = vmatprep.subr.mxu0 0.0
    %1750 = vmatpush1.msra.mxu0 0.0
    %1751 = vmatprep.subr.mxu0 0.0
    %1752 = vmatpush1.msra.mxu0 0.0
    %1753 = vmatprep.subr.mxu0 0.0
    %1754 = vmatpush1.msra.mxu0 0.0
    %1755 = vmatprep.subr.mxu0 0.0
    %1756 = vmatpush1.msra.mxu0 0.0
    %1757 = vmatprep.subr.mxu0 0.0
    %1758 = vmatpush1.msra.mxu0 0.0
    %1759 = vmatprep.subr.mxu0 0.0
    %1760 = vmatpush1.msra.mxu0 0.0
    %1761 = vmatprep.subr.mxu0 0.0
    %1762 = vmatpush1.msra.mxu0 0.0
    %1763 = vmatprep.subr.mxu0 0.0
    %1764 = vmatpush1.msra.mxu0 0.0
    %1765 = vmatprep.subr.mxu0 0.0
    %1766 = vmatpush1.msra.mxu0 0.0
    %1767 = vmatprep.subr.mxu0 0.0
    %1768 = vmatpush1.msra.mxu0 0.0
    %1769 = vmatprep.subr.mxu0 0.0
    %1770 = vmatpush1.msra.mxu0 0.0
    %1771 = vmatprep.subr.mxu0 0.0
    %1772 = vmatpush1.msra.mxu0 0.0
    %1773 = vmatprep.subr.mxu0 0.0
    %1774 = vmatpush1.msra.mxu0 0.0
    %1775 = vmatprep.mubr.f32.mxu0 0.0
    %1776 = vmatmul.mubr.f32.gmra.mrb[0].mxu0 %v1709
    %v1777 = vpop.f32.mrb[0].mxu0
    %v1778 = vadd.f32 %v1706, %v1777
    %v1779 = vpop.f32.mrb[0].mxu0
    %1780 = vdwg.mxu0
    %v1781 = vlaneseq
    %v1782 = vshrl.u32 %v1781, 7
    %v1783 = vsub.s32 0, %v1782
    %v1784 = vrot.slane %v1778, %v1783
    %1786 = vbcast.lane.b32.xlu0 %v1784, 256
    %v1787 = vpop.permute.xlu0 %1786
    %v1788 = vlaneseq
    %v1789 = vshrl.u32 %v1788, 7
    %v1790 = vsub.s32 1, %v1789
    %v1791 = vrot.slane %v1778, %v1790
    %1793 = vbcast.lane.b32.xlu0 %v1791, 256
    %v1794 = vpop.permute.xlu0 %1793
    %v1795 = vadd.f32 %v222, %v1787
    %v1796 = vadd.f32 %v227, %v1794
    %v1797 = vtanh.pop %v1795
    %v1798 = vtanh.pop %v1796
    %s1799 = scalar_lea.vmem [#allocation10], 3
    %v1800 = vld [vmem:[%s1799] sm:$0x1]
    %v1802 = vlaneseq
    %v1803 = vshrl.u32 %v1802, 7
    %v1804 = vsub.s32 0, %v1803
    %v1805 = vrot.slane %v1800, %v1804
    %1806 = vrot.lane.b32.xlu0 %v1805, 24
    %v1807 = vpop.permute.xlu0 %1806
    %v1809 = vmul.f32 %v1797, %v1807
    %v1810 = vmul.f32 %v1798, %v1807
    %1813 = vrot.lane.b32.xlu0 %v1809, 104
    %v1814 = vpop.permute.xlu0 %1813
    %1815 = vrot.lane.b32.xlu0 %v1810, 104
    %v1816 = vpop.permute.xlu0 %1815
    %v1819 = vsel %vm343, %v1814, 0.0
    %1820 = vadd.xlane.f32.xlu0 %v1819
    %v1821 = vpop.xlane.xlu0 %1820
    %v1822 = vsel %vm343, %v1816, 0.0
    %1823 = vadd.xlane.f32.xlu0 %v1822
    %v1824 = vpop.xlane.xlu0 %1823
    %s1825 = scalar_lea.vmem %s13, 3
    %v1826 = vld [vmem:[%s1825] sm:$0x1]
    %v1828 = vlaneseq
    %v1829 = vshrl.u32 %v1828, 7
    %v1830 = vsub.s32 0, %v1829
    %v1831 = vrot.slane %v1826, %v1830
    %1832 = vset.pattern.permute.xlu0 0
    %1833 = vperm.xlu0 %1832, %v1831
    %v1834 = vpop.permute.xlu0 %1833
    %v1836 = vadd.f32 %v1821, %v1834
    %v1837 = vadd.f32 %v1824, %v1834
    %v1840 = vlaneseq
    %v1841 = vshrl.u32 %v1840, 7
    %v1842 = vsub.s32 %v365, %v1841
    %v1843 = vrot.slane %v1836, %v1842
    %v1844 = vlaneseq
    %v1845 = vshrl.u32 %v1844, 7
    %v1846 = vsub.s32 %v365, %v1845
    %v1847 = vrot.slane %v1837, %v1846
    %v1848 = vsel %vm374, %v1847, %v1843
    %v1850 = vsel %vm377, %v1848, -inf
    %1851 = vmax.xlane.f32.xlu0 %v1850
    %v1852 = vpop.xlane.xlu0 %1851
    %v1854 = vlaneseq
    %v1855 = vshrl.u32 %v1854, 7
    %v1856 = vsub.s32 0, %v1855
    %v1857 = vrot.slane %v1852, %v1856
    %v1858 = vlaneseq
    %v1859 = vshrl.u32 %v1858, 7
    %v1860 = vsub.s32 1, %v1859
    %v1861 = vrot.slane %v1852, %v1860
    %v1864 = vsub.f32 %v1836, %v1857
    %v1865 = vsub.f32 %v1837, %v1861
    %v1866 = vmul.f32 %v1864, 1.442695
    %v1867 = vpow.pop %v1866
    %v1868 = vmul.f32 %v1865, 1.442695
    %v1869 = vpow.pop %v1868
    %1872 = vset.pattern.permute.xlu0 0
    %1873 = vperm.xlu0 %1872, %v1867
    %v1874 = vpop.permute.xlu0 %1873
    %1875 = vset.pattern.permute.xlu0 0
    %1876 = vperm.xlu0 %1875, %v1869
    %v1877 = vpop.permute.xlu0 %1876
    %v1878 = vlaneseq
    %v1879 = vshrl.u32 %v1878, 7
    %v1880 = vsub.s32 %v365, %v1879
    %v1881 = vrot.slane %v1874, %v1880
    %v1882 = vlaneseq
    %v1883 = vshrl.u32 %v1882, 7
    %v1884 = vsub.s32 %v365, %v1883
    %v1885 = vrot.slane %v1877, %v1884
    %v1886 = vsel %vm374, %v1885, %v1881
    %v1888 = vsel %vm377, %v1886, 0.0
    %1889 = vadd.xlane.f32.xlu0 %v1888
    %v1890 = vpop.xlane.xlu0 %1889
    %v1891 = vrcp.pop %v1890
    %v1893 = vlaneseq
    %v1894 = vshrl.u32 %v1893, 7
    %v1895 = vsub.s32 0, %v1894
    %v1896 = vrot.slane %v1891, %v1895
    %v1897 = vlaneseq
    %v1898 = vshrl.u32 %v1897, 7
    %v1899 = vsub.s32 1, %v1898
    %v1900 = vrot.slane %v1891, %v1899
    %v1903 = vmul.f32 %v1867, %v1896
    %v1904 = vmul.f32 %v1869, %v1900
    %1906 = vset.pattern.permute.xlu0 0
    %1907 = vperm.xlu0 %1906, %v1903
    %v1908 = vpop.permute.xlu0 %1907
    %1911 = vset.pattern.permute.xlu0 0
    %1912 = vperm.xlu0 %1911, %v1904
    %v1913 = vpop.permute.xlu0 %1912
    %v1915 = vmul.f32 %v135, %v1908
    %v1916 = vmul.f32 %v136, %v1913
    %v1917 = vsel %vm148, %v1915, 0.0
    %v1918 = vrot.slane %v1917, 4
    %v1919 = vadd.f32 %v1917, %v1918
    %v1920 = vrot.slane %v1919, 2
    %v1921 = vadd.f32 %v1919, %v1920
    %v1922 = vrot.slane %v1921, 1
    %v1923 = vadd.f32 %v1921, %v1922
    %v1924 = vsel %vm148, %v1916, 0.0
    %v1925 = vrot.slane %v1924, 4
    %v1926 = vadd.f32 %v1924, %v1925
    %v1927 = vrot.slane %v1926, 2
    %v1928 = vadd.f32 %v1926, %v1927
    %v1929 = vrot.slane %v1928, 1
    %v1930 = vadd.f32 %v1928, %v1929
    %v1931 = vrot.slane %v1694, 1
    %v1934 = vadd.f32 %v1923, %v1694
    %v1935 = vadd.f32 %v1930, %v1931
    %s1936 = scalar_lea.vmem %s14, 32
    %v1937 = vld [vmem:[%s1936] sm:$0xff]
    %v1938 = vld [vmem:[%s1936 + $0x8] sm:$0xff]
    %v1939 = vld [vmem:[%s1936 + $0x10] sm:$0xff]
    %v1940 = vld [vmem:[%s1936 + $0x18] sm:$0xff]
    %s1941 = scalar_lea.vmem %s15, 1
    %v1942 = vld [vmem:[%s1941] sm:$0x1]
    %v1944 = vlaneseq
    %v1945 = vshrl.u32 %v1944, 7
    %v1946 = vsub.s32 0, %v1945
    %v1947 = vrot.slane %v1942, %v1946
    %v1951 = vrot.slane %v1935, 7
    %v1952 = vsel %vm374, %v1951, %v1934
    %v1953 = vsel %vm148, %v1952, 0
    %1955 = vmatprep.subr.mxu0 0.0
    %1956 = vmatpush1.msra.mxu0 %v1937
    %1957 = vmatprep.subr.mxu0 0.0
    %1958 = vmatpush1.msra.mxu0 %v1938
    %1959 = vmatprep.subr.mxu0 0.0
    %1960 = vmatpush1.msra.mxu0 %v1939
    %1961 = vmatprep.subr.mxu0 0.0
    %1962 = vmatpush1.msra.mxu0 %v1940
    %1963 = vmatprep.subr.mxu0 0.0
    %1964 = vmatpush1.msra.mxu0 0.0
    %1965 = vmatprep.subr.mxu0 0.0
    %1966 = vmatpush1.msra.mxu0 0.0
    %1967 = vmatprep.subr.mxu0 0.0
    %1968 = vmatpush1.msra.mxu0 0.0
    %1969 = vmatprep.subr.mxu0 0.0
    %1970 = vmatpush1.msra.mxu0 0.0
    %1971 = vmatprep.subr.mxu0 0.0
    %1972 = vmatpush1.msra.mxu0 0.0
    %1973 = vmatprep.subr.mxu0 0.0
    %1974 = vmatpush1.msra.mxu0 0.0
    %1975 = vmatprep.subr.mxu0 0.0
    %1976 = vmatpush1.msra.mxu0 0.0
    %1977 = vmatprep.subr.mxu0 0.0
    %1978 = vmatpush1.msra.mxu0 0.0
    %1979 = vmatprep.subr.mxu0 0.0
    %1980 = vmatpush1.msra.mxu0 0.0
    %1981 = vmatprep.subr.mxu0 0.0
    %1982 = vmatpush1.msra.mxu0 0.0
    %1983 = vmatprep.subr.mxu0 0.0
    %1984 = vmatpush1.msra.mxu0 0.0
    %1985 = vmatprep.subr.mxu0 0.0
    %1986 = vmatpush1.msra.mxu0 0.0
    %1987 = vmatprep.subr.mxu0 0.0
    %1988 = vmatpush1.msra.mxu0 0.0
    %1989 = vmatprep.subr.mxu0 0.0
    %1990 = vmatpush1.msra.mxu0 0.0
    %1991 = vmatprep.subr.mxu0 0.0
    %1992 = vmatpush1.msra.mxu0 0.0
    %1993 = vmatprep.subr.mxu0 0.0
    %1994 = vmatpush1.msra.mxu0 0.0
    %1995 = vmatprep.subr.mxu0 0.0
    %1996 = vmatpush1.msra.mxu0 0.0
    %1997 = vmatprep.subr.mxu0 0.0
    %1998 = vmatpush1.msra.mxu0 0.0
    %1999 = vmatprep.subr.mxu0 0.0
    %2000 = vmatpush1.msra.mxu0 0.0
    %2001 = vmatprep.subr.mxu0 0.0
    %2002 = vmatpush1.msra.mxu0 0.0
    %2003 = vmatprep.subr.mxu0 0.0
    %2004 = vmatpush1.msra.mxu0 0.0
    %2005 = vmatprep.subr.mxu0 0.0
    %2006 = vmatpush1.msra.mxu0 0.0
    %2007 = vmatprep.subr.mxu0 0.0
    %2008 = vmatpush1.msra.mxu0 0.0
    %2009 = vmatprep.subr.mxu0 0.0
    %2010 = vmatpush1.msra.mxu0 0.0
    %2011 = vmatprep.subr.mxu0 0.0
    %2012 = vmatpush1.msra.mxu0 0.0
    %2013 = vmatprep.subr.mxu0 0.0
    %2014 = vmatpush1.msra.mxu0 0.0
    %2015 = vmatprep.subr.mxu0 0.0
    %2016 = vmatpush1.msra.mxu0 0.0
    %2017 = vmatprep.subr.mxu0 0.0
    %2018 = vmatpush1.msra.mxu0 0.0
    %2019 = vmatprep.mubr.f32.mxu0 0.0
    %2020 = vmatmul.mubr.f32.gmra.mrb[0].mxu0 %v1953
    %v2021 = vpop.f32.mrb[0].mxu0
    %v2022 = vadd.f32 %v1947, %v2021
    %v2023 = vpop.f32.mrb[0].mxu0
    %2024 = vdwg.mxu0
    %v2025 = vsel %vm1107, %v2022, -inf
    %2026 = vmax.xlane.f32.xlu0 %v2025
    %v2027 = vpop.xlane.xlu0 %2026
    %v2028 = vsub.f32 %v2022, %v2027
    %v2029 = vmul.f32 %v2028, 1.442695
    %v2030 = vpow.pop %v2029
    %v2031 = vsel %vm1107, %v2030, 0.0
    %2032 = vadd.xlane.f32.xlu0 %v2031
    %v2033 = vpop.xlane.xlu0 %2032
    %v2034 = vlog2.pop %v2033
    %v2035 = vmul.f32 %v2034, 0.6931472
    %v2036 = vadd.f32 %v2027, %v2035
    %2038 = vrot.lane.b32.xlu0 %v1687, 64
    %v2039 = vpop.permute.xlu0 %2038
    %s2041 = scalar_lea.vmem %s16, 2
    %2042 = vst.msk [vmem:[%s2041] sm:$0x3] %vm1124, %v2039
    %s2044 = scalar_lea.vmem %s17, 2
    %2045 = vst.msk [vmem:[%s2044] sm:$0x3] %vm1124, %v1952
    %v2046 = vsub.f32 %v2022, %v2036
    %s2047 = scalar_lea.vmem %s18, 2
    %2048 = vst.msk [vmem:[%s2047] sm:$0x3] %vm1107, %v2046
    %s2049 = scalar_lea.vmem %s2, 4
    %v2050 = vld [vmem:[%s2049] sm:$0x3]
    %s2051 = scalar_lea.vmem %s3, 4
    %v2052 = vld [vmem:[%s2051] sm:$0x3]
    %v2053 = vadd.f32 %v134, %v1952
    %s2054 = scalar_lea.vmem %s10, 128
    %v2055 = vld [vmem:[%s2054] sm:$0xff]
    %v2056 = vld [vmem:[%s2054 + $0x8] sm:$0xff]
    %v2057 = vld [vmem:[%s2054 + $0x10] sm:$0xff]
    %v2058 = vld [vmem:[%s2054 + $0x18] sm:$0xff]
    %s2059 = scalar_lea.vmem [#allocation9], 4
    %v2060 = vld [vmem:[%s2059] sm:$0x1]
    %v2062 = vlaneseq
    %v2063 = vshrl.u32 %v2062, 7
    %v2064 = vsub.s32 0, %v2063
    %v2065 = vrot.slane %v2060, %v2064
    %v2068 = vsel %vm148, %v2052, 0
    %2070 = vmatprep.subr.mxu0 0.0
    %2071 = vmatpush1.msra.mxu0 %v2055
    %2072 = vmatprep.subr.mxu0 0.0
    %2073 = vmatpush1.msra.mxu0 %v2056
    %2074 = vmatprep.subr.mxu0 0.0
    %2075 = vmatpush1.msra.mxu0 %v2057
    %2076 = vmatprep.subr.mxu0 0.0
    %2077 = vmatpush1.msra.mxu0 %v2058
    %2078 = vmatprep.subr.mxu0 0.0
    %2079 = vmatpush1.msra.mxu0 0.0
    %2080 = vmatprep.subr.mxu0 0.0
    %2081 = vmatpush1.msra.mxu0 0.0
    %2082 = vmatprep.subr.mxu0 0.0
    %2083 = vmatpush1.msra.mxu0 0.0
    %2084 = vmatprep.subr.mxu0 0.0
    %2085 = vmatpush1.msra.mxu0 0.0
    %2086 = vmatprep.subr.mxu0 0.0
    %2087 = vmatpush1.msra.mxu0 0.0
    %2088 = vmatprep.subr.mxu0 0.0
    %2089 = vmatpush1.msra.mxu0 0.0
    %2090 = vmatprep.subr.mxu0 0.0
    %2091 = vmatpush1.msra.mxu0 0.0
    %2092 = vmatprep.subr.mxu0 0.0
    %2093 = vmatpush1.msra.mxu0 0.0
    %2094 = vmatprep.subr.mxu0 0.0
    %2095 = vmatpush1.msra.mxu0 0.0
    %2096 = vmatprep.subr.mxu0 0.0
    %2097 = vmatpush1.msra.mxu0 0.0
    %2098 = vmatprep.subr.mxu0 0.0
    %2099 = vmatpush1.msra.mxu0 0.0
    %2100 = vmatprep.subr.mxu0 0.0
    %2101 = vmatpush1.msra.mxu0 0.0
    %2102 = vmatprep.subr.mxu0 0.0
    %2103 = vmatpush1.msra.mxu0 0.0
    %2104 = vmatprep.subr.mxu0 0.0
    %2105 = vmatpush1.msra.mxu0 0.0
    %2106 = vmatprep.subr.mxu0 0.0
    %2107 = vmatpush1.msra.mxu0 0.0
    %2108 = vmatprep.subr.mxu0 0.0
    %2109 = vmatpush1.msra.mxu0 0.0
    %2110 = vmatprep.subr.mxu0 0.0
    %2111 = vmatpush1.msra.mxu0 0.0
    %2112 = vmatprep.subr.mxu0 0.0
    %2113 = vmatpush1.msra.mxu0 0.0
    %2114 = vmatprep.subr.mxu0 0.0
    %2115 = vmatpush1.msra.mxu0 0.0
    %2116 = vmatprep.subr.mxu0 0.0
    %2117 = vmatpush1.msra.mxu0 0.0
    %2118 = vmatprep.subr.mxu0 0.0
    %2119 = vmatpush1.msra.mxu0 0.0
    %2120 = vmatprep.subr.mxu0 0.0
    %2121 = vmatpush1.msra.mxu0 0.0
    %2122 = vmatprep.subr.mxu0 0.0
    %2123 = vmatpush1.msra.mxu0 0.0
    %2124 = vmatprep.subr.mxu0 0.0
    %2125 = vmatpush1.msra.mxu0 0.0
    %2126 = vmatprep.subr.mxu0 0.0
    %2127 = vmatpush1.msra.mxu0 0.0
    %2128 = vmatprep.subr.mxu0 0.0
    %2129 = vmatpush1.msra.mxu0 0.0
    %2130 = vmatprep.subr.mxu0 0.0
    %2131 = vmatpush1.msra.mxu0 0.0
    %2132 = vmatprep.subr.mxu0 0.0
    %2133 = vmatpush1.msra.mxu0 0.0
    %2134 = vmatprep.mubr.f32.mxu0 0.0
    %2135 = vmatmul.mubr.f32.gmra.mrb[0].mxu0 %v2068
    %v2136 = vpop.f32.mrb[0].mxu0
    %v2137 = vadd.f32 %v2065, %v2136
    %v2138 = vpop.f32.mrb[0].mxu0
    %2139 = vdwg.mxu0
    %v2140 = vlaneseq
    %v2141 = vshrl.u32 %v2140, 7
    %v2142 = vsub.s32 0, %v2141
    %v2143 = vrot.slane %v2137, %v2142
    %2145 = vbcast.lane.b32.xlu0 %v2143, 256
    %v2146 = vpop.permute.xlu0 %2145
    %v2147 = vlaneseq
    %v2148 = vshrl.u32 %v2147, 7
    %v2149 = vsub.s32 1, %v2148
    %v2150 = vrot.slane %v2137, %v2149
    %2152 = vbcast.lane.b32.xlu0 %v2150, 256
    %v2153 = vpop.permute.xlu0 %2152
    %v2154 = vadd.f32 %v222, %v2146
    %v2155 = vadd.f32 %v227, %v2153
    %v2156 = vtanh.pop %v2154
    %v2157 = vtanh.pop %v2155
    %s2158 = scalar_lea.vmem [#allocation10], 4
    %v2159 = vld [vmem:[%s2158] sm:$0x1]
    %v2161 = vlaneseq
    %v2162 = vshrl.u32 %v2161, 7
    %v2163 = vsub.s32 0, %v2162
    %v2164 = vrot.slane %v2159, %v2163
    %2165 = vrot.lane.b32.xlu0 %v2164, 32
    %v2166 = vpop.permute.xlu0 %2165
    %v2168 = vmul.f32 %v2156, %v2166
    %v2169 = vmul.f32 %v2157, %v2166
    %2172 = vrot.lane.b32.xlu0 %v2168, 96
    %v2173 = vpop.permute.xlu0 %2172
    %2174 = vrot.lane.b32.xlu0 %v2169, 96
    %v2175 = vpop.permute.xlu0 %2174
    %v2178 = vsel %vm343, %v2173, 0.0
    %2179 = vadd.xlane.f32.xlu0 %v2178
    %v2180 = vpop.xlane.xlu0 %2179
    %v2181 = vsel %vm343, %v2175, 0.0
    %2182 = vadd.xlane.f32.xlu0 %v2181
    %v2183 = vpop.xlane.xlu0 %2182
    %s2184 = scalar_lea.vmem %s13, 4
    %v2185 = vld [vmem:[%s2184] sm:$0x1]
    %v2187 = vlaneseq
    %v2188 = vshrl.u32 %v2187, 7
    %v2189 = vsub.s32 0, %v2188
    %v2190 = vrot.slane %v2185, %v2189
    %2191 = vset.pattern.permute.xlu0 0
    %2192 = vperm.xlu0 %2191, %v2190
    %v2193 = vpop.permute.xlu0 %2192
    %v2195 = vadd.f32 %v2180, %v2193
    %v2196 = vadd.f32 %v2183, %v2193
    %v2199 = vlaneseq
    %v2200 = vshrl.u32 %v2199, 7
    %v2201 = vsub.s32 %v365, %v2200
    %v2202 = vrot.slane %v2195, %v2201
    %v2203 = vlaneseq
    %v2204 = vshrl.u32 %v2203, 7
    %v2205 = vsub.s32 %v365, %v2204
    %v2206 = vrot.slane %v2196, %v2205
    %v2207 = vsel %vm374, %v2206, %v2202
    %v2209 = vsel %vm377, %v2207, -inf
    %2210 = vmax.xlane.f32.xlu0 %v2209
    %v2211 = vpop.xlane.xlu0 %2210
    %v2213 = vlaneseq
    %v2214 = vshrl.u32 %v2213, 7
    %v2215 = vsub.s32 0, %v2214
    %v2216 = vrot.slane %v2211, %v2215
    %v2217 = vlaneseq
    %v2218 = vshrl.u32 %v2217, 7
    %v2219 = vsub.s32 1, %v2218
    %v2220 = vrot.slane %v2211, %v2219
    %v2223 = vsub.f32 %v2195, %v2216
    %v2224 = vsub.f32 %v2196, %v2220
    %v2225 = vmul.f32 %v2223, 1.442695
    %v2226 = vpow.pop %v2225
    %v2227 = vmul.f32 %v2224, 1.442695
    %v2228 = vpow.pop %v2227
    %2231 = vset.pattern.permute.xlu0 0
    %2232 = vperm.xlu0 %2231, %v2226
    %v2233 = vpop.permute.xlu0 %2232
    %2234 = vset.pattern.permute.xlu0 0
    %2235 = vperm.xlu0 %2234, %v2228
    %v2236 = vpop.permute.xlu0 %2235
    %v2237 = vlaneseq
    %v2238 = vshrl.u32 %v2237, 7
    %v2239 = vsub.s32 %v365, %v2238
    %v2240 = vrot.slane %v2233, %v2239
    %v2241 = vlaneseq
    %v2242 = vshrl.u32 %v2241, 7
    %v2243 = vsub.s32 %v365, %v2242
    %v2244 = vrot.slane %v2236, %v2243
    %v2245 = vsel %vm374, %v2244, %v2240
    %v2247 = vsel %vm377, %v2245, 0.0
    %2248 = vadd.xlane.f32.xlu0 %v2247
    %v2249 = vpop.xlane.xlu0 %2248
    %v2250 = vrcp.pop %v2249
    %v2252 = vlaneseq
    %v2253 = vshrl.u32 %v2252, 7
    %v2254 = vsub.s32 0, %v2253
    %v2255 = vrot.slane %v2250, %v2254
    %v2256 = vlaneseq
    %v2257 = vshrl.u32 %v2256, 7
    %v2258 = vsub.s32 1, %v2257
    %v2259 = vrot.slane %v2250, %v2258
    %v2262 = vmul.f32 %v2226, %v2255
    %v2263 = vmul.f32 %v2228, %v2259
    %2265 = vset.pattern.permute.xlu0 0
    %2266 = vperm.xlu0 %2265, %v2262
    %v2267 = vpop.permute.xlu0 %2266
    %2270 = vset.pattern.permute.xlu0 0
    %2271 = vperm.xlu0 %2270, %v2263
    %v2272 = vpop.permute.xlu0 %2271
    %v2274 = vmul.f32 %v135, %v2267
    %v2275 = vmul.f32 %v136, %v2272
    %v2276 = vsel %vm148, %v2274, 0.0
    %v2277 = vrot.slane %v2276, 4
    %v2278 = vadd.f32 %v2276, %v2277
    %v2279 = vrot.slane %v2278, 2
    %v2280 = vadd.f32 %v2278, %v2279
    %v2281 = vrot.slane %v2280, 1
    %v2282 = vadd.f32 %v2280, %v2281
    %v2283 = vsel %vm148, %v2275, 0.0
    %v2284 = vrot.slane %v2283, 4
    %v2285 = vadd.f32 %v2283, %v2284
    %v2286 = vrot.slane %v2285, 2
    %v2287 = vadd.f32 %v2285, %v2286
    %v2288 = vrot.slane %v2287, 1
    %v2289 = vadd.f32 %v2287, %v2288
    %s2290 = scalar_lea.vmem %s4, 128
    %v2291 = vld [vmem:[%s2290] sm:$0xff]
    %v2292 = vld [vmem:[%s2290 + $0x8] sm:$0xff]
    %v2293 = vld [vmem:[%s2290 + $0x10] sm:$0xff]
    %v2294 = vld [vmem:[%s2290 + $0x18] sm:$0xff]
    %v2295 = vld [vmem:[%s2290 + $0x20] sm:$0xff]
    %v2296 = vld [vmem:[%s2290 + $0x28] sm:$0xff]
    %v2297 = vld [vmem:[%s2290 + $0x30] sm:$0xff]
    %v2298 = vld [vmem:[%s2290 + $0x38] sm:$0xff]
    %s2299 = scalar_lea.vmem %s5, 128
    %v2300 = vld [vmem:[%s2299] sm:$0xff]
    %v2301 = vld [vmem:[%s2299 + $0x8] sm:$0xff]
    %v2302 = vld [vmem:[%s2299 + $0x10] sm:$0xff]
    %v2303 = vld [vmem:[%s2299 + $0x18] sm:$0xff]
    %v2304 = vld [vmem:[%s2299 + $0x20] sm:$0xff]
    %v2305 = vld [vmem:[%s2299 + $0x28] sm:$0xff]
    %v2306 = vld [vmem:[%s2299 + $0x30] sm:$0xff]
    %v2307 = vld [vmem:[%s2299 + $0x38] sm:$0xff]
    %2308 = vmatprep.subr.mxu0 %v2301
    %2309 = vmatpush1.msra.mxu0 %v2300
    %2310 = vmatprep.subr.mxu0 %v2303
    %2311 = vmatpush1.msra.mxu0 %v2302
    %2312 = vmatprep.subr.mxu0 %v2305
    %2313 = vmatpush1.msra.mxu0 %v2304
    %2314 = vmatprep.subr.mxu0 %v2307
    %2315 = vmatpush1.msra.mxu0 %v2306
    %2316 = vmatprep.subr.mxu0 0.0
    %2317 = vmatpush1.msra.mxu0 0.0
    %2318 = vmatprep.subr.mxu0 0.0
    %2319 = vmatpush1.msra.mxu0 0.0
    %2320 = vmatprep.subr.mxu0 0.0
    %2321 = vmatpush1.msra.mxu0 0.0
    %2322 = vmatprep.subr.mxu0 0.0
    %2323 = vmatpush1.msra.mxu0 0.0
    %2324 = vmatprep.subr.mxu0 0.0
    %2325 = vmatpush1.msra.mxu0 0.0
    %2326 = vmatprep.subr.mxu0 0.0
    %2327 = vmatpush1.msra.mxu0 0.0
    %2328 = vmatprep.subr.mxu0 0.0
    %2329 = vmatpush1.msra.mxu0 0.0
    %2330 = vmatprep.subr.mxu0 0.0
    %2331 = vmatpush1.msra.mxu0 0.0
    %2332 = vmatprep.subr.mxu0 0.0
    %2333 = vmatpush1.msra.mxu0 0.0
    %2334 = vmatprep.subr.mxu0 0.0
    %2335 = vmatpush1.msra.mxu0 0.0
    %2336 = vmatprep.subr.mxu0 0.0
    %2337 = vmatpush1.msra.mxu0 0.0
    %2338 = vmatprep.subr.mxu0 0.0
    %2339 = vmatpush1.msra.mxu0 0.0
    %2340 = vmatprep.subr.mxu0 0.0
    %2341 = vmatpush1.msra.mxu0 0.0
    %2342 = vmatprep.subr.mxu0 0.0
    %2343 = vmatpush1.msra.mxu0 0.0
    %2344 = vmatprep.subr.mxu0 0.0
    %2345 = vmatpush1.msra.mxu0 0.0
    %2346 = vmatprep.subr.mxu0 0.0
    %2347 = vmatpush1.msra.mxu0 0.0
    %2348 = vmatprep.subr.mxu0 0.0
    %2349 = vmatpush1.msra.mxu0 0.0
    %2350 = vmatprep.subr.mxu0 0.0
    %2351 = vmatpush1.msra.mxu0 0.0
    %2352 = vmatprep.subr.mxu0 0.0
    %2353 = vmatpush1.msra.mxu0 0.0
    %2354 = vmatprep.subr.mxu0 0.0
    %2355 = vmatpush1.msra.mxu0 0.0
    %2356 = vmatprep.subr.mxu0 0.0
    %2357 = vmatpush1.msra.mxu0 0.0
    %2358 = vmatprep.subr.mxu0 0.0
    %2359 = vmatpush1.msra.mxu0 0.0
    %2360 = vmatprep.subr.mxu0 0.0
    %2361 = vmatpush1.msra.mxu0 0.0
    %2362 = vmatprep.subr.mxu0 0.0
    %2363 = vmatpush1.msra.mxu0 0.0
    %2364 = vmatprep.subr.mxu0 0.0
    %2365 = vmatpush1.msra.mxu0 0.0
    %2366 = vmatprep.subr.mxu0 0.0
    %2367 = vmatpush1.msra.mxu0 0.0
    %2368 = vmatprep.subr.mxu0 0.0
    %2369 = vmatpush1.msra.mxu0 0.0
    %2370 = vmatprep.subr.mxu0 0.0
    %2371 = vmatpush1.msra.mxu0 0.0
    %2372 = vmatprep.mubr.f32.mxu0 0.0
    %2373 = vmatmul.mubr.f32.gmra.mrb[0].mxu0 %v2068
    %v2374 = vpop.f32.mrb[0].mxu0
    %v2375 = vadd.f32 0.0, %v2374
    %v2376 = vpop.f32.mrb[0].mxu0
    %v2377 = vadd.f32 0.0, %v2376
    %2378 = vdwg.mxu0
    %v2380 = vsel %vm148, %v2053, 0
    %2382 = vmatprep.subr.mxu0 %v2292
    %2383 = vmatpush1.msra.mxu0 %v2291
    %2384 = vmatprep.subr.mxu0 %v2294
    %2385 = vmatpush1.msra.mxu0 %v2293
    %2386 = vmatprep.subr.mxu0 %v2296
    %2387 = vmatpush1.msra.mxu0 %v2295
    %2388 = vmatprep.subr.mxu0 %v2298
    %2389 = vmatpush1.msra.mxu0 %v2297
    %2390 = vmatprep.subr.mxu0 0.0
    %2391 = vmatpush1.msra.mxu0 0.0
    %2392 = vmatprep.subr.mxu0 0.0
    %2393 = vmatpush1.msra.mxu0 0.0
    %2394 = vmatprep.subr.mxu0 0.0
    %2395 = vmatpush1.msra.mxu0 0.0
    %2396 = vmatprep.subr.mxu0 0.0
    %2397 = vmatpush1.msra.mxu0 0.0
    %2398 = vmatprep.subr.mxu0 0.0
    %2399 = vmatpush1.msra.mxu0 0.0
    %2400 = vmatprep.subr.mxu0 0.0
    %2401 = vmatpush1.msra.mxu0 0.0
    %2402 = vmatprep.subr.mxu0 0.0
    %2403 = vmatpush1.msra.mxu0 0.0
    %2404 = vmatprep.subr.mxu0 0.0
    %2405 = vmatpush1.msra.mxu0 0.0
    %2406 = vmatprep.subr.mxu0 0.0
    %2407 = vmatpush1.msra.mxu0 0.0
    %2408 = vmatprep.subr.mxu0 0.0
    %2409 = vmatpush1.msra.mxu0 0.0
    %2410 = vmatprep.subr.mxu0 0.0
    %2411 = vmatpush1.msra.mxu0 0.0
    %2412 = vmatprep.subr.mxu0 0.0
    %2413 = vmatpush1.msra.mxu0 0.0
    %2414 = vmatprep.subr.mxu0 0.0
    %2415 = vmatpush1.msra.mxu0 0.0
    %2416 = vmatprep.subr.mxu0 0.0
    %2417 = vmatpush1.msra.mxu0 0.0
    %2418 = vmatprep.subr.mxu0 0.0
    %2419 = vmatpush1.msra.mxu0 0.0
    %2420 = vmatprep.subr.mxu0 0.0
    %2421 = vmatpush1.msra.mxu0 0.0
    %2422 = vmatprep.subr.mxu0 0.0
    %2423 = vmatpush1.msra.mxu0 0.0
    %2424 = vmatprep.subr.mxu0 0.0
    %2425 = vmatpush1.msra.mxu0 0.0
    %2426 = vmatprep.subr.mxu0 0.0
    %2427 = vmatpush1.msra.mxu0 0.0
    %2428 = vmatprep.subr.mxu0 0.0
    %2429 = vmatpush1.msra.mxu0 0.0
    %2430 = vmatprep.subr.mxu0 0.0
    %2431 = vmatpush1.msra.mxu0 0.0
    %2432 = vmatprep.subr.mxu0 0.0
    %2433 = vmatpush1.msra.mxu0 0.0
    %2434 = vmatprep.subr.mxu0 0.0
    %2435 = vmatpush1.msra.mxu0 0.0
    %2436 = vmatprep.subr.mxu0 0.0
    %2437 = vmatpush1.msra.mxu0 0.0
    %2438 = vmatprep.subr.mxu0 0.0
    %2439 = vmatpush1.msra.mxu0 0.0
    %2440 = vmatprep.subr.mxu0 0.0
    %2441 = vmatpush1.msra.mxu0 0.0
    %2442 = vmatprep.subr.mxu0 0.0
    %2443 = vmatpush1.msra.mxu0 0.0
    %2444 = vmatprep.subr.mxu0 0.0
    %2445 = vmatpush1.msra.mxu0 0.0
    %2446 = vmatprep.mubr.f32.mxu0 0.0
    %2447 = vmatmul.mubr.f32.gmra.mrb[0].mxu0 %v2380
    %v2448 = vpop.f32.mrb[0].mxu0
    %v2449 = vadd.f32 %v2375, %v2448
    %v2450 = vpop.f32.mrb[0].mxu0
    %v2451 = vadd.f32 %v2377, %v2450
    %2452 = vdwg.mxu0
    %s2453 = scalar_lea.vmem [#allocation4], 128
    %v2454 = vld [vmem:[%s2453] sm:$0xff]
    %v2455 = vld [vmem:[%s2453 + $0x8] sm:$0xff]
    %v2456 = vld [vmem:[%s2453 + $0x10] sm:$0xff]
    %v2457 = vld [vmem:[%s2453 + $0x18] sm:$0xff]
    %v2458 = vld [vmem:[%s2453 + $0x20] sm:$0xff]
    %v2459 = vld [vmem:[%s2453 + $0x28] sm:$0xff]
    %v2460 = vld [vmem:[%s2453 + $0x30] sm:$0xff]
    %v2461 = vld [vmem:[%s2453 + $0x38] sm:$0xff]
    %v2464 = vsel %vm374, %v2289, %v2282
    %v2465 = vsel %vm148, %v2464, 0
    %2467 = vmatprep.subr.mxu0 %v2455
    %2468 = vmatpush1.msra.mxu0 %v2454
    %2469 = vmatprep.subr.mxu0 %v2457
    %2470 = vmatpush1.msra.mxu0 %v2456
    %2471 = vmatprep.subr.mxu0 %v2459
    %2472 = vmatpush1.msra.mxu0 %v2458
    %2473 = vmatprep.subr.mxu0 %v2461
    %2474 = vmatpush1.msra.mxu0 %v2460
    %2475 = vmatprep.subr.mxu0 0.0
    %2476 = vmatpush1.msra.mxu0 0.0
    %2477 = vmatprep.subr.mxu0 0.0
    %2478 = vmatpush1.msra.mxu0 0.0
    %2479 = vmatprep.subr.mxu0 0.0
    %2480 = vmatpush1.msra.mxu0 0.0
    %2481 = vmatprep.subr.mxu0 0.0
    %2482 = vmatpush1.msra.mxu0 0.0
    %2483 = vmatprep.subr.mxu0 0.0
    %2484 = vmatpush1.msra.mxu0 0.0
    %2485 = vmatprep.subr.mxu0 0.0
    %2486 = vmatpush1.msra.mxu0 0.0
    %2487 = vmatprep.subr.mxu0 0.0
    %2488 = vmatpush1.msra.mxu0 0.0
    %2489 = vmatprep.subr.mxu0 0.0
    %2490 = vmatpush1.msra.mxu0 0.0
    %2491 = vmatprep.subr.mxu0 0.0
    %2492 = vmatpush1.msra.mxu0 0.0
    %2493 = vmatprep.subr.mxu0 0.0
    %2494 = vmatpush1.msra.mxu0 0.0
    %2495 = vmatprep.subr.mxu0 0.0
    %2496 = vmatpush1.msra.mxu0 0.0
    %2497 = vmatprep.subr.mxu0 0.0
    %2498 = vmatpush1.msra.mxu0 0.0
    %2499 = vmatprep.subr.mxu0 0.0
    %2500 = vmatpush1.msra.mxu0 0.0
    %2501 = vmatprep.subr.mxu0 0.0
    %2502 = vmatpush1.msra.mxu0 0.0
    %2503 = vmatprep.subr.mxu0 0.0
    %2504 = vmatpush1.msra.mxu0 0.0
    %2505 = vmatprep.subr.mxu0 0.0
    %2506 = vmatpush1.msra.mxu0 0.0
    %2507 = vmatprep.subr.mxu0 0.0
    %2508 = vmatpush1.msra.mxu0 0.0
    %2509 = vmatprep.subr.mxu0 0.0
    %2510 = vmatpush1.msra.mxu0 0.0
    %2511 = vmatprep.subr.mxu0 0.0
    %2512 = vmatpush1.msra.mxu0 0.0
    %2513 = vmatprep.subr.mxu0 0.0
    %2514 = vmatpush1.msra.mxu0 0.0
    %2515 = vmatprep.subr.mxu0 0.0
    %2516 = vmatpush1.msra.mxu0 0.0
    %2517 = vmatprep.subr.mxu0 0.0
    %2518 = vmatpush1.msra.mxu0 0.0
    %2519 = vmatprep.subr.mxu0 0.0
    %2520 = vmatpush1.msra.mxu0 0.0
    %2521 = vmatprep.subr.mxu0 0.0
    %2522 = vmatpush1.msra.mxu0 0.0
    %2523 = vmatprep.subr.mxu0 0.0
    %2524 = vmatpush1.msra.mxu0 0.0
    %2525 = vmatprep.subr.mxu0 0.0
    %2526 = vmatpush1.msra.mxu0 0.0
    %2527 = vmatprep.subr.mxu0 0.0
    %2528 = vmatpush1.msra.mxu0 0.0
    %2529 = vmatprep.subr.mxu0 0.0
    %2530 = vmatpush1.msra.mxu0 0.0
    %2531 = vmatprep.mubr.f32.mxu0 0.0
    %2532 = vmatmul.mubr.f32.gmra.mrb[0].mxu0 %v2465
    %v2533 = vpop.f32.mrb[0].mxu0
    %v2534 = vadd.f32 0.0, %v2533
    %v2535 = vpop.f32.mrb[0].mxu0
    %v2536 = vadd.f32 0.0, %v2535
    %2537 = vdwg.mxu0
    %v2538 = vadd.f32 %v2449, %v2534
    %v2539 = vadd.f32 %v2451, %v2536
    %s2540 = scalar_lea.vmem [#allocation6], 4
    %v2541 = vld [vmem:[%s2540] sm:$0x3]
    %v2543 = vlaneseq
    %v2544 = vshrl.u32 %v2543, 7
    %v2545 = vsub.s32 0, %v2544
    %v2546 = vrot.slane %v2541, %v2545
    %v2547 = vlaneseq
    %v2548 = vshrl.u32 %v2547, 7
    %v2549 = vsub.s32 1, %v2548
    %v2550 = vrot.slane %v2541, %v2549
    %v2553 = vadd.f32 %v2538, %v2546
    %v2554 = vadd.f32 %v2539, %v2550
    %v2555 = vxor.u32 %v2553, 2147483648
    %v2556 = vxor.u32 %v2554, 2147483648
    %v2557 = vmul.f32 %v2555, 1.442695
    %v2558 = vpow.pop %v2557
    %v2559 = vmul.f32 %v2556, 1.442695
    %v2560 = vpow.pop %v2559
    %v2561 = vadd.f32 %v2558, 1.0
    %v2562 = vadd.f32 %v2560, 1.0
    %v2563 = vrcp.pop %v2561
    %v2564 = vmul.f32 1.0, %v2563
    %v2565 = vrcp.pop %v2562
    %v2566 = vmul.f32 1.0, %v2565
    %v2567 = vtanh.pop %v2554
    %2569 = vrot.lane.b32.xlu0 %v2050, 64
    %v2570 = vpop.permute.xlu0 %2569
    %v2572 = vmul.f32 %v2564, %v2570
    %2574 = vrot.lane.b32.xlu0 %v2567, 64
    %v2575 = vpop.permute.xlu0 %2574
    %v2577 = vmul.f32 %v2564, %v2575
    %2579 = vrot.lane.b32.xlu0 %v2577, 64
    %v2580 = vpop.permute.xlu0 %2579
    %v2582 = vadd.f32 %v2572, %v2580
    %v2583 = vtanh.pop %v2582
    %2585 = vrot.lane.b32.xlu0 %v2583, 64
    %v2586 = vpop.permute.xlu0 %2585
    %v2588 = vmul.f32 %v2566, %v2586
    %2589 = vrot.lane.b32.xlu0 %v2050, 96
    %v2590 = vpop.permute.xlu0 %2589
    %v2592 = vmul.f32 %v2564, %v2590
    %v2593 = vadd.f32 %v2592, %v2580
    %v2594 = vtanh.pop %v2593
    %2596 = vrot.lane.b32.xlu0 %v2594, 64
    %v2597 = vpop.permute.xlu0 %2596
    %v2599 = vmul.f32 %v2566, %v2597
    %v2600 = vadd.f32 %v2582, 0.0
    %2602 = vrot.lane.b32.xlu0 %v2593, 96
    %v2603 = vpop.permute.xlu0 %2602
    %v2605 = vadd.f32 %v2600, %v2603
    %v2606 = vmul.f32 %v2605, 0.5
    %v2607 = vadd.f32 %v2588, 0.0
    %2609 = vrot.lane.b32.xlu0 %v2599, 96
    %v2610 = vpop.permute.xlu0 %2609
    %v2612 = vadd.f32 %v2607, %v2610
    %v2613 = vmul.f32 %v2612, 0.5
    %s2614 = scalar_lea.vmem %s10, 160
    %v2615 = vld [vmem:[%s2614] sm:$0xff]
    %v2616 = vld [vmem:[%s2614 + $0x8] sm:$0xff]
    %v2617 = vld [vmem:[%s2614 + $0x10] sm:$0xff]
    %v2618 = vld [vmem:[%s2614 + $0x18] sm:$0xff]
    %s2619 = scalar_lea.vmem [#allocation9], 5
    %v2620 = vld [vmem:[%s2619] sm:$0x1]
    %v2622 = vlaneseq
    %v2623 = vshrl.u32 %v2622, 7
    %v2624 = vsub.s32 0, %v2623
    %v2625 = vrot.slane %v2620, %v2624
    %v2628 = vsel %vm148, %v2613, 0
    %2630 = vmatprep.subr.mxu0 0.0
    %2631 = vmatpush1.msra.mxu0 %v2615
    %2632 = vmatprep.subr.mxu0 0.0
    %2633 = vmatpush1.msra.mxu0 %v2616
    %2634 = vmatprep.subr.mxu0 0.0
    %2635 = vmatpush1.msra.mxu0 %v2617
    %2636 = vmatprep.subr.mxu0 0.0
    %2637 = vmatpush1.msra.mxu0 %v2618
    %2638 = vmatprep.subr.mxu0 0.0
    %2639 = vmatpush1.msra.mxu0 0.0
    %2640 = vmatprep.subr.mxu0 0.0
    %2641 = vmatpush1.msra.mxu0 0.0
    %2642 = vmatprep.subr.mxu0 0.0
    %2643 = vmatpush1.msra.mxu0 0.0
    %2644 = vmatprep.subr.mxu0 0.0
    %2645 = vmatpush1.msra.mxu0 0.0
    %2646 = vmatprep.subr.mxu0 0.0
    %2647 = vmatpush1.msra.mxu0 0.0
    %2648 = vmatprep.subr.mxu0 0.0
    %2649 = vmatpush1.msra.mxu0 0.0
    %2650 = vmatprep.subr.mxu0 0.0
    %2651 = vmatpush1.msra.mxu0 0.0
    %2652 = vmatprep.subr.mxu0 0.0
    %2653 = vmatpush1.msra.mxu0 0.0
    %2654 = vmatprep.subr.mxu0 0.0
    %2655 = vmatpush1.msra.mxu0 0.0
    %2656 = vmatprep.subr.mxu0 0.0
    %2657 = vmatpush1.msra.mxu0 0.0
    %2658 = vmatprep.subr.mxu0 0.0
    %2659 = vmatpush1.msra.mxu0 0.0
    %2660 = vmatprep.subr.mxu0 0.0
    %2661 = vmatpush1.msra.mxu0 0.0
    %2662 = vmatprep.subr.mxu0 0.0
    %2663 = vmatpush1.msra.mxu0 0.0
    %2664 = vmatprep.subr.mxu0 0.0
    %2665 = vmatpush1.msra.mxu0 0.0
    %2666 = vmatprep.subr.mxu0 0.0
    %2667 = vmatpush1.msra.mxu0 0.0
    %2668 = vmatprep.subr.mxu0 0.0
    %2669 = vmatpush1.msra.mxu0 0.0
    %2670 = vmatprep.subr.mxu0 0.0
    %2671 = vmatpush1.msra.mxu0 0.0
    %2672 = vmatprep.subr.mxu0 0.0
    %2673 = vmatpush1.msra.mxu0 0.0
    %2674 = vmatprep.subr.mxu0 0.0
    %2675 = vmatpush1.msra.mxu0 0.0
    %2676 = vmatprep.subr.mxu0 0.0
    %2677 = vmatpush1.msra.mxu0 0.0
    %2678 = vmatprep.subr.mxu0 0.0
    %2679 = vmatpush1.msra.mxu0 0.0
    %2680 = vmatprep.subr.mxu0 0.0
    %2681 = vmatpush1.msra.mxu0 0.0
    %2682 = vmatprep.subr.mxu0 0.0
    %2683 = vmatpush1.msra.mxu0 0.0
    %2684 = vmatprep.subr.mxu0 0.0
    %2685 = vmatpush1.msra.mxu0 0.0
    %2686 = vmatprep.subr.mxu0 0.0
    %2687 = vmatpush1.msra.mxu0 0.0
    %2688 = vmatprep.subr.mxu0 0.0
    %2689 = vmatpush1.msra.mxu0 0.0
    %2690 = vmatprep.subr.mxu0 0.0
    %2691 = vmatpush1.msra.mxu0 0.0
    %2692 = vmatprep.subr.mxu0 0.0
    %2693 = vmatpush1.msra.mxu0 0.0
    %2694 = vmatprep.mubr.f32.mxu0 0.0
    %2695 = vmatmul.mubr.f32.gmra.mrb[0].mxu0 %v2628
    %v2696 = vpop.f32.mrb[0].mxu0
    %v2697 = vadd.f32 %v2625, %v2696
    %v2698 = vpop.f32.mrb[0].mxu0
    %2699 = vdwg.mxu0
    %v2700 = vlaneseq
    %v2701 = vshrl.u32 %v2700, 7
    %v2702 = vsub.s32 0, %v2701
    %v2703 = vrot.slane %v2697, %v2702
    %2705 = vbcast.lane.b32.xlu0 %v2703, 256
    %v2706 = vpop.permute.xlu0 %2705
    %v2707 = vlaneseq
    %v2708 = vshrl.u32 %v2707, 7
    %v2709 = vsub.s32 1, %v2708
    %v2710 = vrot.slane %v2697, %v2709
    %2712 = vbcast.lane.b32.xlu0 %v2710, 256
    %v2713 = vpop.permute.xlu0 %2712
    %v2714 = vadd.f32 %v222, %v2706
    %v2715 = vadd.f32 %v227, %v2713
    %v2716 = vtanh.pop %v2714
    %v2717 = vtanh.pop %v2715
    %s2718 = scalar_lea.vmem [#allocation10], 5
    %v2719 = vld [vmem:[%s2718] sm:$0x1]
    %v2721 = vlaneseq
    %v2722 = vshrl.u32 %v2721, 7
    %v2723 = vsub.s32 0, %v2722
    %v2724 = vrot.slane %v2719, %v2723
    %2725 = vrot.lane.b32.xlu0 %v2724, 40
    %v2726 = vpop.permute.xlu0 %2725
    %v2728 = vmul.f32 %v2716, %v2726
    %v2729 = vmul.f32 %v2717, %v2726
    %2732 = vrot.lane.b32.xlu0 %v2728, 88
    %v2733 = vpop.permute.xlu0 %2732
    %2734 = vrot.lane.b32.xlu0 %v2729, 88
    %v2735 = vpop.permute.xlu0 %2734
    %v2738 = vsel %vm343, %v2733, 0.0
    %2739 = vadd.xlane.f32.xlu0 %v2738
    %v2740 = vpop.xlane.xlu0 %2739
    %v2741 = vsel %vm343, %v2735, 0.0
    %2742 = vadd.xlane.f32.xlu0 %v2741
    %v2743 = vpop.xlane.xlu0 %2742
    %s2744 = scalar_lea.vmem %s13, 5
    %v2745 = vld [vmem:[%s2744] sm:$0x1]
    %v2747 = vlaneseq
    %v2748 = vshrl.u32 %v2747, 7
    %v2749 = vsub.s32 0, %v2748
    %v2750 = vrot.slane %v2745, %v2749
    %2751 = vset.pattern.permute.xlu0 0
    %2752 = vperm.xlu0 %2751, %v2750
    %v2753 = vpop.permute.xlu0 %2752
    %v2755 = vadd.f32 %v2740, %v2753
    %v2756 = vadd.f32 %v2743, %v2753
    %v2759 = vlaneseq
    %v2760 = vshrl.u32 %v2759, 7
    %v2761 = vsub.s32 %v365, %v2760
    %v2762 = vrot.slane %v2755, %v2761
    %v2763 = vlaneseq
    %v2764 = vshrl.u32 %v2763, 7
    %v2765 = vsub.s32 %v365, %v2764
    %v2766 = vrot.slane %v2756, %v2765
    %v2767 = vsel %vm374, %v2766, %v2762
    %v2769 = vsel %vm377, %v2767, -inf
    %2770 = vmax.xlane.f32.xlu0 %v2769
    %v2771 = vpop.xlane.xlu0 %2770
    %v2773 = vlaneseq
    %v2774 = vshrl.u32 %v2773, 7
    %v2775 = vsub.s32 0, %v2774
    %v2776 = vrot.slane %v2771, %v2775
    %v2777 = vlaneseq
    %v2778 = vshrl.u32 %v2777, 7
    %v2779 = vsub.s32 1, %v2778
    %v2780 = vrot.slane %v2771, %v2779
    %v2783 = vsub.f32 %v2755, %v2776
    %v2784 = vsub.f32 %v2756, %v2780
    %v2785 = vmul.f32 %v2783, 1.442695
    %v2786 = vpow.pop %v2785
    %v2787 = vmul.f32 %v2784, 1.442695
    %v2788 = vpow.pop %v2787
    %2791 = vset.pattern.permute.xlu0 0
    %2792 = vperm.xlu0 %2791, %v2786
    %v2793 = vpop.permute.xlu0 %2792
    %2794 = vset.pattern.permute.xlu0 0
    %2795 = vperm.xlu0 %2794, %v2788
    %v2796 = vpop.permute.xlu0 %2795
    %v2797 = vlaneseq
    %v2798 = vshrl.u32 %v2797, 7
    %v2799 = vsub.s32 %v365, %v2798
    %v2800 = vrot.slane %v2793, %v2799
    %v2801 = vlaneseq
    %v2802 = vshrl.u32 %v2801, 7
    %v2803 = vsub.s32 %v365, %v2802
    %v2804 = vrot.slane %v2796, %v2803
    %v2805 = vsel %vm374, %v2804, %v2800
    %v2807 = vsel %vm377, %v2805, 0.0
    %2808 = vadd.xlane.f32.xlu0 %v2807
    %v2809 = vpop.xlane.xlu0 %2808
    %v2810 = vrcp.pop %v2809
    %v2812 = vlaneseq
    %v2813 = vshrl.u32 %v2812, 7
    %v2814 = vsub.s32 0, %v2813
    %v2815 = vrot.slane %v2810, %v2814
    %v2816 = vlaneseq
    %v2817 = vshrl.u32 %v2816, 7
    %v2818 = vsub.s32 1, %v2817
    %v2819 = vrot.slane %v2810, %v2818
    %v2822 = vmul.f32 %v2786, %v2815
    %v2823 = vmul.f32 %v2788, %v2819
    %2825 = vset.pattern.permute.xlu0 0
    %2826 = vperm.xlu0 %2825, %v2822
    %v2827 = vpop.permute.xlu0 %2826
    %2830 = vset.pattern.permute.xlu0 0
    %2831 = vperm.xlu0 %2830, %v2823
    %v2832 = vpop.permute.xlu0 %2831
    %v2834 = vmul.f32 %v135, %v2827
    %v2835 = vmul.f32 %v136, %v2832
    %v2836 = vsel %vm148, %v2834, 0.0
    %v2837 = vrot.slane %v2836, 4
    %v2838 = vadd.f32 %v2836, %v2837
    %v2839 = vrot.slane %v2838, 2
    %v2840 = vadd.f32 %v2838, %v2839
    %v2841 = vrot.slane %v2840, 1
    %v2842 = vadd.f32 %v2840, %v2841
    %v2843 = vsel %vm148, %v2835, 0.0
    %v2844 = vrot.slane %v2843, 4
    %v2845 = vadd.f32 %v2843, %v2844
    %v2846 = vrot.slane %v2845, 2
    %v2847 = vadd.f32 %v2845, %v2846
    %v2848 = vrot.slane %v2847, 1
    %v2849 = vadd.f32 %v2847, %v2848
    %v2850 = vrot.slane %v2613, 1
    %v2853 = vadd.f32 %v2842, %v2613
    %v2854 = vadd.f32 %v2849, %v2850
    %s2855 = scalar_lea.vmem %s14, 64
    %v2856 = vld [vmem:[%s2855] sm:$0xff]
    %v2857 = vld [vmem:[%s2855 + $0x8] sm:$0xff]
    %v2858 = vld [vmem:[%s2855 + $0x10] sm:$0xff]
    %v2859 = vld [vmem:[%s2855 + $0x18] sm:$0xff]
    %s2860 = scalar_lea.vmem %s15, 2
    %v2861 = vld [vmem:[%s2860] sm:$0x1]
    %v2863 = vlaneseq
    %v2864 = vshrl.u32 %v2863, 7
    %v2865 = vsub.s32 0, %v2864
    %v2866 = vrot.slane %v2861, %v2865
    %v2870 = vrot.slane %v2854, 7
    %v2871 = vsel %vm374, %v2870, %v2853
    %v2872 = vsel %vm148, %v2871, 0
    %2874 = vmatprep.subr.mxu0 0.0
    %2875 = vmatpush1.msra.mxu0 %v2856
    %2876 = vmatprep.subr.mxu0 0.0
    %2877 = vmatpush1.msra.mxu0 %v2857
    %2878 = vmatprep.subr.mxu0 0.0
    %2879 = vmatpush1.msra.mxu0 %v2858
    %2880 = vmatprep.subr.mxu0 0.0
    %2881 = vmatpush1.msra.mxu0 %v2859
    %2882 = vmatprep.subr.mxu0 0.0
    %2883 = vmatpush1.msra.mxu0 0.0
    %2884 = vmatprep.subr.mxu0 0.0
    %2885 = vmatpush1.msra.mxu0 0.0
    %2886 = vmatprep.subr.mxu0 0.0
    %2887 = vmatpush1.msra.mxu0 0.0
    %2888 = vmatprep.subr.mxu0 0.0
    %2889 = vmatpush1.msra.mxu0 0.0
    %2890 = vmatprep.subr.mxu0 0.0
    %2891 = vmatpush1.msra.mxu0 0.0
    %2892 = vmatprep.subr.mxu0 0.0
    %2893 = vmatpush1.msra.mxu0 0.0
    %2894 = vmatprep.subr.mxu0 0.0
    %2895 = vmatpush1.msra.mxu0 0.0
    %2896 = vmatprep.subr.mxu0 0.0
    %2897 = vmatpush1.msra.mxu0 0.0
    %2898 = vmatprep.subr.mxu0 0.0
    %2899 = vmatpush1.msra.mxu0 0.0
    %2900 = vmatprep.subr.mxu0 0.0
    %2901 = vmatpush1.msra.mxu0 0.0
    %2902 = vmatprep.subr.mxu0 0.0
    %2903 = vmatpush1.msra.mxu0 0.0
    %2904 = vmatprep.subr.mxu0 0.0
    %2905 = vmatpush1.msra.mxu0 0.0
    %2906 = vmatprep.subr.mxu0 0.0
    %2907 = vmatpush1.msra.mxu0 0.0
    %2908 = vmatprep.subr.mxu0 0.0
    %2909 = vmatpush1.msra.mxu0 0.0
    %2910 = vmatprep.subr.mxu0 0.0
    %2911 = vmatpush1.msra.mxu0 0.0
    %2912 = vmatprep.subr.mxu0 0.0
    %2913 = vmatpush1.msra.mxu0 0.0
    %2914 = vmatprep.subr.mxu0 0.0
    %2915 = vmatpush1.msra.mxu0 0.0
    %2916 = vmatprep.subr.mxu0 0.0
    %2917 = vmatpush1.msra.mxu0 0.0
    %2918 = vmatprep.subr.mxu0 0.0
    %2919 = vmatpush1.msra.mxu0 0.0
    %2920 = vmatprep.subr.mxu0 0.0
    %2921 = vmatpush1.msra.mxu0 0.0
    %2922 = vmatprep.subr.mxu0 0.0
    %2923 = vmatpush1.msra.mxu0 0.0
    %2924 = vmatprep.subr.mxu0 0.0
    %2925 = vmatpush1.msra.mxu0 0.0
    %2926 = vmatprep.subr.mxu0 0.0
    %2927 = vmatpush1.msra.mxu0 0.0
    %2928 = vmatprep.subr.mxu0 0.0
    %2929 = vmatpush1.msra.mxu0 0.0
    %2930 = vmatprep.subr.mxu0 0.0
    %2931 = vmatpush1.msra.mxu0 0.0
    %2932 = vmatprep.subr.mxu0 0.0
    %2933 = vmatpush1.msra.mxu0 0.0
    %2934 = vmatprep.subr.mxu0 0.0
    %2935 = vmatpush1.msra.mxu0 0.0
    %2936 = vmatprep.subr.mxu0 0.0
    %2937 = vmatpush1.msra.mxu0 0.0
    %2938 = vmatprep.mubr.f32.mxu0 0.0
    %2939 = vmatmul.mubr.f32.gmra.mrb[0].mxu0 %v2872
    %v2940 = vpop.f32.mrb[0].mxu0
    %v2941 = vadd.f32 %v2866, %v2940
    %v2942 = vpop.f32.mrb[0].mxu0
    %2943 = vdwg.mxu0
    %v2944 = vsel %vm1107, %v2941, -inf
    %2945 = vmax.xlane.f32.xlu0 %v2944
    %v2946 = vpop.xlane.xlu0 %2945
    %v2947 = vsub.f32 %v2941, %v2946
    %v2948 = vmul.f32 %v2947, 1.442695
    %v2949 = vpow.pop %v2948
    %v2950 = vsel %vm1107, %v2949, 0.0
    %2951 = vadd.xlane.f32.xlu0 %v2950
    %v2952 = vpop.xlane.xlu0 %2951
    %v2953 = vlog2.pop %v2952
    %v2954 = vmul.f32 %v2953, 0.6931472
    %v2955 = vadd.f32 %v2946, %v2954
    %2957 = vrot.lane.b32.xlu0 %v2606, 64
    %v2958 = vpop.permute.xlu0 %2957
    %s2960 = scalar_lea.vmem %s16, 4
    %2961 = vst.msk [vmem:[%s2960] sm:$0x3] %vm1124, %v2958
    %s2963 = scalar_lea.vmem %s17, 4
    %2964 = vst.msk [vmem:[%s2963] sm:$0x3] %vm1124, %v2871
    %v2965 = vsub.f32 %v2941, %v2955
    %s2966 = scalar_lea.vmem %s18, 4
    %2967 = vst.msk [vmem:[%s2966] sm:$0x3] %vm1107, %v2965
    // Predicated region
    $region90: #{forward.1} parent=1 // pred_check
      _
    $region91: #{forward.1} parent=1 // pred_check_branch
      %2969 = sbr.rel (0) target = $region93
    $region92: #{forward.1} parent=1 // pred_region
      _
    $region93: #{forward.1} parent=1 // pred_fallthru
      _
    // Predicated region
    $region94: #{forward.1} parent=1 // pred_check
      _
    $region95: #{forward.1} parent=1 // pred_check_branch
      %2971 = sbr.rel (0) target = $region97
    $region96: #{forward.1} parent=1 // pred_region
      _
    $region97: #{forward.1} parent=1 // pred_fallthru
      _
    // Predicated region
    $region98: #{forward.1} parent=1 // pred_check
      _
    $region99: #{forward.1} parent=1 // pred_check_branch
      %2973 = sbr.rel (0) target = $region101
    $region100: #{forward.1} parent=1 // pred_region
      _
    $region101: #{forward.1} parent=1 // pred_fallthru
      _
    // Predicated region
    $region102: #{forward.1} parent=1 // pred_check
      _
    $region103: #{forward.1} parent=1 // pred_check_branch
      %2975 = sbr.rel (0) target = $region105
    $region104: #{forward.1} parent=1 // pred_region
      _
    $region105: #{forward.1} parent=1 // pred_fallthru
      _
    // Predicated region
    $region106: #{forward.1} parent=1 // pred_check
      _
    $region107: #{forward.1} parent=1 // pred_check_branch
      %2977 = sbr.rel (0) target = $region109
    $region108: #{forward.1} parent=1 // pred_region
      _
    $region109: #{forward.1} parent=1 // pred_fallthru
      _
    // Predicated region
    $region110: #{forward.1} parent=1 // pred_check
      _
    $region111: #{forward.1} parent=1 // pred_check_branch
      %2979 = sbr.rel (0) target = $region113
    $region112: #{forward.1} parent=1 // pred_region
      _
    $region113: #{forward.1} parent=1 // pred_fallthru
      _
    %2980 = vsyncpa [#allocation3], 1
    %2981 = vsyncpa [#allocation5], 1
    %2982 = vsyncpa [#allocation8], 1
    %2983 = vsyncpa [#allocation11], 1

</llo_original>
